<compile_context>
chip_gen: v6e
topology: v6e:2x2x1
jax: 0.10.0
libtpu: 0.0.40
codegen_flags: <defaults>
</compile_context>

<pallas_src>
import jax
import jax.numpy as jnp
from jax.experimental import pallas as pl
from jax.experimental.pallas import tpu as pltpu

BN_EPS = 1e-5


def _round_up(x, m):
    return (x + m - 1) // m * m


# ----------------------------- Pallas kernels -----------------------------

def _partial_conv_kernel(x_ref, halo_ref, msum_ref, w_ref, y_ref, stats_ref):
    # x_ref   : (th, W+2, Cinp)  bf16  -- rows [j*th, j*th+th) of the zero-padded (x*mask)
    # halo_ref: (2, W+2, Cinp)   bf16  -- the two rows after the block (bottom halo)
    # msum_ref: (th, W, 1)       f32   -- 3x3 box sum of the channel-summed mask
    # w_ref   : (9*Cinp, Coutp)  bf16  -- conv weights, tap-major / channel-minor
    # y_ref   : (th, 2*wo+2, Coutp) bf16 -- y_pre with a zero left col + zero right pad col(s)
    # stats_ref: (8, Coutp) f32  -- rows 0/1 = per-channel [sum, sum of squares], accumulated
    th, wp, cinp = x_ref.shape
    w_real = wp - 2
    coutp = w_ref.shape[-1]
    pad_r = y_ref.shape[1] - 1 - w_real          # 1 or 2
    j = pl.program_id(1)

    # (th+2)-row window, then single in-VMEM im2col -> one MXU matmul.
    win = jnp.concatenate([x_ref[...], halo_ref[...]], axis=0)          # (th+2, W+2, Cinp)
    taps = [win[kh:kh + th, kw:kw + w_real, :]
            for kh in range(3) for kw in range(3)]
    patch = jnp.concatenate(taps, axis=-1).reshape(th * w_real, 9 * cinp)
    acc = jnp.dot(patch, w_ref[...], preferred_element_type=jnp.float32)  # (th*W, Coutp)

    # Partial-conv renormalization (bias=False -> output_bias == 0).
    msum = msum_ref[...].reshape(th * w_real, 1)
    is_zero = msum == 0.0
    inv = pl.reciprocal(jnp.where(is_zero, 1.0, msum), approx=True)
    out = jnp.where(is_zero, 0.0, acc * inv)                             # f32

    # bf16 writeback, lane-dense, with the down-conv's zero left column built in.
    yb = out.reshape(th, w_real, coutp).astype(jnp.bfloat16)
    y_ref[...] = jnp.concatenate(
        [jnp.zeros((th, 1, coutp), jnp.bfloat16), yb,
         jnp.zeros((th, pad_r, coutp), jnp.bfloat16)], axis=1)

    # Per-channel partial statistics (f32, before the bf16 cast), accumulated over the
    # row-block axis into the per-batch output block.
    s0 = jnp.sum(out, axis=0, keepdims=True)
    s1 = jnp.sum(out * out, axis=0, keepdims=True)
    tile = jnp.concatenate([s0, s1, jnp.zeros((6, coutp), jnp.float32)], axis=0)

    @pl.when(j == 0)
    def _():
        stats_ref[...] = tile

    @pl.when(j > 0)
    def _():
        stats_ref[...] = stats_ref[...] + tile


def _down_fused_kernel(y_ref, prev_ref, aff_ref, cmask_ref, rmask_ref, mcol_ref,
                       wd_ref, wm_ref, xo_ref, mo_ref):
    # y_ref   : (trows, wo+1, 2*Coutp) bf16 -- y_pre rows, column pairs merged into lanes
    # prev_ref: (1, wo+1, 2*Coutp)     bf16 -- the row before the block (zeros for jo==0)
    # aff_ref : (2, 2*Coutp) f32            -- [scale; shift] (BN folded), tiled x2 over lanes
    # cmask_ref: (1, wo+1, 2*Coutp) f32     -- column-validity (down-conv zero padding)
    # rmask_ref: (trows+2, wo+1, 1) f32     -- row-validity for this row block
    # mcol_ref: (tho, wo, 9) f32            -- stride-2 3x3 taps of new_mask (per pixel)
    # wd_ref  : (9*Coutp, Coutp) bf16       -- down-conv weights, tap-major / channel-minor
    # wm_ref  : (9, Coutp) f32              -- down-conv weights summed over input channels
    trows, wo1, c2 = y_ref.shape
    coutp = c2 // 2
    tho = trows // 2
    wo = mcol_ref.shape[1]

    # (trows+2)-row window; fuse BN affine + ReLU + padding masks in VMEM.
    win = jnp.concatenate(
        [prev_ref[...], y_ref[...], jnp.zeros((1, wo1, c2), y_ref.dtype)], axis=0)
    winf = win.astype(jnp.float32)
    sc = aff_ref[0:1, :].reshape(1, 1, c2)
    sh = aff_ref[1:2, :].reshape(1, 1, c2)
    yact = jnp.maximum(winf * sc + sh, 0.0) * cmask_ref[...] * rmask_ref[...]

    # Stride-2 3x3 tap gather with unit-stride slices (rows split in pairs, cols are
    # already pair-merged into the lane dim), then one MXU matmul.
    y4 = yact.astype(jnp.bfloat16).reshape(tho + 1, 2, wo1, c2)
    sel = ((0, 0), (0, 1), (1, 0))
    taps = []
    for kh in range(3):
        ar, br = sel[kh]
        for kw in range(3):
            ac, pc = sel[kw]
            taps.append(y4[ar:ar + tho, br, ac:ac + wo, pc * coutp:(pc + 1) * coutp])
    patch = jnp.concatenate(taps, axis=-1).reshape(tho * wo, 9 * coutp)
    xo = jnp.dot(patch, wd_ref[...], preferred_element_type=jnp.float32)
    xo_ref[...] = xo.reshape(tho, wo, coutp)

    # Mask path: new_mask is channel-constant, so down(new_mask) = (M, 9) @ (9, Coutp).
    mpat = mcol_ref[...].reshape(tho * wo, 9)
    mo = jnp.dot(mpat, wm_ref[...], preferred_element_type=jnp.float32)
    mo_ref[...] = mo.reshape(tho, wo, coutp)


# ----------------------------- params -------------------------------------

def init_params(key, cin, cout):
    k1, k2 = jax.random.split(key)
    # input_conv: kaiming_normal_(a=0, mode='fan_in'): std = sqrt(2 / fan_in)
    w_in = jnp.sqrt(2.0 / (cin * 9)) * jax.random.normal(
        k1, (3, 3, cin, cout), jnp.float32)                         # (kh, kw, ci, co)
    # down conv: PyTorch default kaiming_uniform_(a=sqrt(5)) ~ U(-1/sqrt(fan_in), 1/sqrt(fan_in))
    bound = 1.0 / float((cout * 9) ** 0.5)
    w_dn = jax.random.uniform(k2, (3, 3, cout, cout), jnp.float32, -bound, bound)
    return {
        "w_in": w_in,
        "w_down": w_dn,
        "gamma": jnp.ones((cout,), jnp.float32),
        "beta": jnp.zeros((cout,), jnp.float32),
    }


# ----------------------------- forward ------------------------------------

def partial2d_block_forward(x, mask, params):
    # x, mask: (N, C, H, W) float32 (PyTorch NCHW)
    n, cin, h, w = x.shape
    cout = params["gamma"].shape[0]
    cinp = _round_up(cin, 8)
    coutp = _round_up(cout, 128)                 # lane-dense outputs / MXU N dim
    ho = (h - 1) // 2 + 1
    wo = (w - 1) // 2 + 1

    # Tiling: tho output rows (kernel 2), trows = 2*tho input rows per block for both kernels.
    tho = max(1, min(ho, max(1, 128 // max(wo, 1))))
    trows = 2 * tho
    hob = -(-ho // tho)                           # kernel-2 row blocks
    ho_pad = hob * tho
    th = trows                                    # kernel-1 rows per block
    hb = hob
    h_rows = hob * trows                          # >= h; exactly tiled by both kernels
    w1c = 2 * wo + 2                              # y_pre stored width (zero left col + pad)
    wo1 = wo + 1

    xl = jnp.transpose(x, (0, 2, 3, 1)).astype(jnp.float32)         # (N, H, W, Cin)
    ml = jnp.transpose(mask, (0, 2, 3, 1)).astype(jnp.float32)

    # --- kernel 1 inputs: single zero-padded (x*mask) + 2-row halo per block ---
    xm = jnp.pad(xl * ml, ((0, 0), (0, 0), (0, 0), (0, cinp - cin)))
    xpad = jnp.pad(xm, ((0, 0), (1, h_rows - h + 1), (1, 1), (0, 0))
                   ).astype(jnp.bfloat16)                           # (N, h_rows+2, W+2, Cinp)
    halo = jnp.stack([xpad[:, th::th][:, :hb], xpad[:, th + 1::th][:, :hb]],
                     axis=2)                                        # (N, hb, 2, W+2, Cinp)

    # mask_conv has all-one weights -> 3x3 box sum of the channel-summed mask, per pixel.
    ms_c = jnp.pad(jnp.sum(ml, axis=-1), ((0, 0), (1, 1), (1, 1)))
    msum = sum(ms_c[:, kh:kh + h, kw:kw + w]
               for kh in range(3) for kw in range(3))               # (N, H, W)
    msum_p = jnp.pad(msum, ((0, 0), (0, h_rows - h), (0, 0)))[..., None]  # (N, h_rows, W, 1)

    w_in = jnp.pad(params["w_in"],
                   ((0, 0), (0, 0), (0, cinp - cin), (0, coutp - cout)))
    w_in_mat = w_in.reshape(9 * cinp, coutp).astype(jnp.bfloat16)

    y_pre, stats = pl.pallas_call(
        _partial_conv_kernel,
        out_shape=(jax.ShapeDtypeStruct((n, h_rows, w1c, coutp), jnp.bfloat16),
                   jax.ShapeDtypeStruct((n, 8, coutp), jnp.float32)),
        grid=(n, hb),
        in_specs=[
            pl.BlockSpec((None, th, w + 2, cinp), lambda i, j: (i, j, 0, 0)),
            pl.BlockSpec((None, None, 2, w + 2, cinp), lambda i, j: (i, j, 0, 0, 0)),
            pl.BlockSpec((None, th, w, 1), lambda i, j: (i, j, 0, 0)),
            pl.BlockSpec((9 * cinp, coutp), lambda i, j: (0, 0)),
        ],
        out_specs=(
            pl.BlockSpec((None, th, w1c, coutp), lambda i, j: (i, j, 0, 0)),
            pl.BlockSpec((None, 8, coutp), lambda i, j: (i, 0, 0)),
        ),
        compiler_params=pltpu.CompilerParams(
            dimension_semantics=("parallel", "arbitrary"),
            vmem_limit_bytes=32 * 1024 * 1024),
    )(xpad, halo, msum_p, w_in_mat)

    # --- BatchNorm2d (training mode, biased batch stats) folded into an affine ---
    # NOTE: single-pass E[x^2]-E[x]^2 (clamped >= 0); padded rows/channels contribute zeros.
    count = float(n * h * w)
    s = jnp.sum(stats, axis=0)                                      # (8, Coutp)
    mean = s[0] / count
    var = jnp.maximum(s[1] / count - mean * mean, 0.0)
    gamma_p = jnp.pad(params["gamma"], (0, coutp - cout))
    beta_p = jnp.pad(params["beta"], (0, coutp - cout))
    scale = gamma_p * jax.lax.rsqrt(var + BN_EPS)
    shift = beta_p - mean * scale
    affine = jnp.stack([jnp.concatenate([scale, scale]),
                        jnp.concatenate([shift, shift])], axis=0)   # (2, 2*Coutp)

    # --- kernel 2 inputs ---
    # Free (row-major) reshape: merge column pairs of y_pre into the lane dim.
    y_pm = y_pre.reshape(n, h_rows, wo1, 2 * coutp)
    if hob > 1:
        prev_rows = y_pm[:, trows - 1:hob * trows - 1:trows]        # (N, hob-1, wo+1, 2C)
        prev3 = jnp.concatenate(
            [jnp.zeros((n, 1, wo1, 2 * coutp), jnp.bfloat16), prev_rows], axis=1)
    else:
        prev3 = jnp.zeros((n, 1, wo1, 2 * coutp), jnp.bfloat16)
    prev = prev3[:, :, None]                                        # (N, hob, 1, wo+1, 2C)

    # Column / row validity masks for the down-conv's zero padding.
    c_idx = jnp.arange(wo1)
    v0 = ((2 * c_idx >= 1) & (2 * c_idx <= w)).astype(jnp.float32)
    v1 = ((2 * c_idx + 1 >= 1) & (2 * c_idx + 1 <= w)).astype(jnp.float32)
    cmask = jnp.concatenate(
        [jnp.repeat(v0[:, None], coutp, axis=1),
         jnp.repeat(v1[:, None], coutp, axis=1)], axis=1)[None]     # (1, wo+1, 2C)
    grow = jnp.arange(hob)[:, None] * trows - 1 + jnp.arange(trows + 2)[None, :]
    rmask = jnp.broadcast_to(
        ((grow >= 0) & (grow < h)).astype(jnp.float32)[:, :, None, None],
        (hob, trows + 2, wo1, 1))                                   # (hob, trows+2, wo+1, 1)

    # new_mask (channel-constant) and its stride-2 3x3 taps (narrow, 9 floats per out pixel).
    nm = (msum != 0.0).astype(jnp.float32)                          # (N, H, W)
    nm_p = jnp.pad(nm, ((0, 0), (1, 2 * ho_pad - h), (1, 2 * wo - w)))
    mcol = jnp.stack([nm_p[:, kh:kh + 2 * ho_pad:2, kw:kw + 2 * wo:2]
                      for kh in range(3) for kw in range(3)], axis=-1)  # (N, ho_pad, wo, 9)

    w_dn = jnp.pad(params["w_down"],
                   ((0, 0), (0, 0), (0, coutp - cout), (0, coutp - cout)))
    w2 = w_dn.reshape(9 * coutp, coutp).astype(jnp.bfloat16)
    wm = jnp.pad(jnp.sum(params["w_down"], axis=2),
                 ((0, 0), (0, 0), (0, coutp - cout))).reshape(9, coutp)

    xo2, mo2 = pl.pallas_call(
        _down_fused_kernel,
        out_shape=(jax.ShapeDtypeStruct((n, ho_pad, wo, coutp), jnp.float32),
                   jax.ShapeDtypeStruct((n, ho_pad, wo, coutp), jnp.float32)),
        grid=(n, hob),
        in_specs=[
            pl.BlockSpec((None, trows, wo1, 2 * coutp), lambda i, j: (i, j, 0, 0)),
            pl.BlockSpec((None, None, 1, wo1, 2 * coutp), lambda i, j: (i, j, 0, 0, 0)),
            pl.BlockSpec((2, 2 * coutp), lambda i, j: (0, 0)),
            pl.BlockSpec((1, wo1, 2 * coutp), lambda i, j: (0, 0, 0)),
            pl.BlockSpec((None, trows + 2, wo1, 1), lambda i, j: (j, 0, 0, 0)),
            pl.BlockSpec((None, tho, wo, 9), lambda i, j: (i, j, 0, 0)),
            pl.BlockSpec((9 * coutp, coutp), lambda i, j: (0, 0)),
            pl.BlockSpec((9, coutp), lambda i, j: (0, 0)),
        ],
        out_specs=(pl.BlockSpec((None, tho, wo, coutp), lambda i, j: (i, j, 0, 0)),
                   pl.BlockSpec((None, tho, wo, coutp), lambda i, j: (i, j, 0, 0))),
        compiler_params=pltpu.CompilerParams(
            dimension_semantics=("parallel", "parallel"),
            vmem_limit_bytes=32 * 1024 * 1024),
    )(y_pm, prev, affine, cmask, rmask, mcol, w2, wm)

    xo = xo2[:, :ho, :, :cout]
    mo = mo2[:, :ho, :, :cout]

    # TODO(synk): Dropout2d with p>0 not implemented; drop=0.0 here => identity.
    return jnp.transpose(xo, (0, 3, 1, 2)), jnp.transpose(mo, (0, 3, 1, 2))


# ----------------------------- demo ---------------------------------------

if __name__ == "__main__":
    key = jax.random.PRNGKey(0)
    kx, km, kp = jax.random.split(key, 3)
    N, Cin, Cout, H, W = 2, 4, 8, 16, 16
    x = jax.random.normal(kx, (N, Cin, H, W), jnp.float32)
    mask = (jax.random.uniform(km, (N, Cin, H, W)) > 0.5).astype(jnp.float32)
    params = init_params(kp, Cin, Cout)

    out, new_mask = jax.jit(partial2d_block_forward)(x, mask, params)
    jax.block_until_ready((out, new_mask))

    assert out.shape == (N, Cout, 8, 8), out.shape
    assert new_mask.shape == (N, Cout, 8, 8), new_mask.shape
    assert bool(jnp.all(jnp.isfinite(out))) and bool(jnp.all(jnp.isfinite(new_mask)))
    print("KERNEL_OK")
</pallas_src>

<mosaic_0001>
module attributes {stable_mosaic.version = 11 : i64} {
  func.func @_partial_conv_kernel(%arg0: i32, %arg1: i32, %arg2: memref<1x16x18x8xbf16, #tpu.memory_space<vmem>>, %arg3: memref<1x1x2x18x8xbf16, #tpu.memory_space<vmem>>, %arg4: memref<1x16x16x1xf32, #tpu.memory_space<vmem>>, %arg5: memref<72x128xbf16, #tpu.memory_space<vmem>>, %arg6: memref<1x16x18x128xbf16, #tpu.memory_space<vmem>>, %arg7: memref<1x8x128xf32, #tpu.memory_space<vmem>>) attributes {dimension_semantics = [#tpu.dimension_semantics<parallel>, #tpu.dimension_semantics<arbitrary>], iteration_bounds = array<i64: 2, 1>, scalar_prefetch = 0 : i64, scratch_operands = 0 : i64, tpu.core_type = #tpu.core_type<tc>, window_params = [{transform_indices = @transform_0, window_bounds = array<i64: 1, 16, 18, 8>}, {transform_indices = @transform_1, window_bounds = array<i64: 1, 1, 2, 18, 8>}, {transform_indices = @transform_2, window_bounds = array<i64: 1, 16, 16, 1>}, {pipeline_mode = #tpu.pipeline_mode<synchronous>, transform_indices = @transform_3, window_bounds = array<i64: 72, 128>}, {transform_indices = @transform_4, window_bounds = array<i64: 1, 16, 18, 128>}, {transform_indices = @transform_5, window_bounds = array<i64: 1, 8, 128>}]} {
    %c0 = arith.constant 0 : index
    %c0_0 = arith.constant 0 : index
    %c0_1 = arith.constant 0 : index
    %c0_2 = arith.constant 0 : index
    %0 = vector.load %arg2[%c0, %c0_0, %c0_1, %c0_2] : memref<1x16x18x8xbf16, #tpu.memory_space<vmem>>, vector<1x16x18x8xbf16>
    %1 = vector.shape_cast %0 : vector<1x16x18x8xbf16> to vector<16x18x8xbf16>
    %c0_3 = arith.constant 0 : index
    %c0_4 = arith.constant 0 : index
    %c0_5 = arith.constant 0 : index
    %c0_6 = arith.constant 0 : index
    %c0_7 = arith.constant 0 : index
    %2 = vector.load %arg3[%c0_3, %c0_4, %c0_5, %c0_6, %c0_7] : memref<1x1x2x18x8xbf16, #tpu.memory_space<vmem>>, vector<1x1x2x18x8xbf16>
    %3 = vector.shape_cast %2 : vector<1x1x2x18x8xbf16> to vector<2x18x8xbf16>
    %4 = tpu.concatenate %1, %3 in 0 : vector<16x18x8xbf16>, vector<2x18x8xbf16> -> vector<18x18x8xbf16>
    %5 = vector.extract_strided_slice %4 {offsets = [0, 0, 0], sizes = [16, 16, 8], strides = [1, 1, 1]} : vector<18x18x8xbf16> to vector<16x16x8xbf16>
    %6 = vector.extract_strided_slice %4 {offsets = [0, 1, 0], sizes = [16, 16, 8], strides = [1, 1, 1]} : vector<18x18x8xbf16> to vector<16x16x8xbf16>
    %7 = vector.extract_strided_slice %4 {offsets = [0, 2, 0], sizes = [16, 16, 8], strides = [1, 1, 1]} : vector<18x18x8xbf16> to vector<16x16x8xbf16>
    %8 = vector.extract_strided_slice %4 {offsets = [1, 0, 0], sizes = [16, 16, 8], strides = [1, 1, 1]} : vector<18x18x8xbf16> to vector<16x16x8xbf16>
    %9 = vector.extract_strided_slice %4 {offsets = [1, 1, 0], sizes = [16, 16, 8], strides = [1, 1, 1]} : vector<18x18x8xbf16> to vector<16x16x8xbf16>
    %10 = vector.extract_strided_slice %4 {offsets = [1, 2, 0], sizes = [16, 16, 8], strides = [1, 1, 1]} : vector<18x18x8xbf16> to vector<16x16x8xbf16>
    %11 = vector.extract_strided_slice %4 {offsets = [2, 0, 0], sizes = [16, 16, 8], strides = [1, 1, 1]} : vector<18x18x8xbf16> to vector<16x16x8xbf16>
    %12 = vector.extract_strided_slice %4 {offsets = [2, 1, 0], sizes = [16, 16, 8], strides = [1, 1, 1]} : vector<18x18x8xbf16> to vector<16x16x8xbf16>
    %13 = vector.extract_strided_slice %4 {offsets = [2, 2, 0], sizes = [16, 16, 8], strides = [1, 1, 1]} : vector<18x18x8xbf16> to vector<16x16x8xbf16>
    %14 = tpu.concatenate %5, %6, %7, %8, %9, %10, %11, %12, %13 in 2 : vector<16x16x8xbf16>, vector<16x16x8xbf16>, vector<16x16x8xbf16>, vector<16x16x8xbf16>, vector<16x16x8xbf16>, vector<16x16x8xbf16>, vector<16x16x8xbf16>, vector<16x16x8xbf16>, vector<16x16x8xbf16> -> vector<16x16x72xbf16>
    %15 = vector.shape_cast %14 : vector<16x16x72xbf16> to vector<256x72xbf16>
    %c0_8 = arith.constant 0 : index
    %c0_9 = arith.constant 0 : index
    %16 = vector.load %arg5[%c0_8, %c0_9] : memref<72x128xbf16, #tpu.memory_space<vmem>>, vector<72x128xbf16>
    %cst = arith.constant dense<0.000000e+00> : vector<256x128xf32>
    %17 = tpu.matmul %15, %16, %cst {dimension_numbers = #tpu.dot_dimension_numbers<[1], [0], [0], [1], [0, 0, 1, 1], [], []>} : vector<256x72xbf16>, vector<72x128xbf16>, vector<256x128xf32> -> vector<256x128xf32>
    %c0_10 = arith.constant 0 : index
    %c0_11 = arith.constant 0 : index
    %c0_12 = arith.constant 0 : index
    %c0_13 = arith.constant 0 : index
    %18 = vector.load %arg4[%c0_10, %c0_11, %c0_12, %c0_13] : memref<1x16x16x1xf32, #tpu.memory_space<vmem>>, vector<1x16x16x1xf32>
    %19 = vector.shape_cast %18 : vector<1x16x16x1xf32> to vector<16x16x1xf32>
    %20 = vector.shape_cast %19 : vector<16x16x1xf32> to vector<256x1xf32>
    %cst_14 = arith.constant 0.000000e+00 : f32
    %21 = vector.broadcast %cst_14 : f32 to vector<256x1xf32>
    %22 = arith.cmpf oeq, %20, %21 : vector<256x1xf32>
    %cst_15 = arith.constant 1.000000e+00 : f32
    %23 = vector.broadcast %cst_15 : f32 to vector<256x1xf32>
    %24 = arith.select %22, %23, %20 : vector<256x1xi1>, vector<256x1xf32>
    %25 = tpu.reciprocal %24 {approx = true} : vector<256x1xf32> -> vector<256x1xf32>
    %26 = vector.broadcast %25 : vector<256x1xf32> to vector<256x128xf32>
    %27 = arith.mulf %17, %26 : vector<256x128xf32>
    %cst_16 = arith.constant 0.000000e+00 : f32
    %28 = vector.shape_cast %22 : vector<256x1xi1> to vector<256x1xi1>
    %29 = vector.broadcast %28 : vector<256x1xi1> to vector<256x128xi1>
    %30 = vector.broadcast %cst_16 : f32 to vector<256x128xf32>
    %31 = arith.select %29, %30, %27 : vector<256x128xi1>, vector<256x128xf32>
    %32 = vector.shape_cast %31 : vector<256x128xf32> to vector<16x16x128xf32>
    %33 = arith.truncf %32 : vector<16x16x128xf32> to vector<16x16x128xbf16>
    %cst_17 = arith.constant 0.000000e+00 : bf16
    %34 = vector.broadcast %cst_17 : bf16 to vector<16x1x128xbf16>
    %cst_18 = arith.constant 0.000000e+00 : bf16
    %35 = vector.broadcast %cst_18 : bf16 to vector<16x1x128xbf16>
    %36 = tpu.concatenate %34, %33, %35 in 1 : vector<16x1x128xbf16>, vector<16x16x128xbf16>, vector<16x1x128xbf16> -> vector<16x18x128xbf16>
    %c0_19 = arith.constant 0 : index
    %c0_20 = arith.constant 0 : index
    %c0_21 = arith.constant 0 : index
    %c0_22 = arith.constant 0 : index
    %37 = vector.load %arg6[%c0_19, %c0_20, %c0_21, %c0_22] : memref<1x16x18x128xbf16, #tpu.memory_space<vmem>>, vector<1x16x18x128xbf16>
    %38 = vector.shape_cast %37 : vector<1x16x18x128xbf16> to vector<16x18x128xbf16>
    %39 = vector.shape_cast %36 : vector<16x18x128xbf16> to vector<1x16x18x128xbf16>
    tpu.vector_store %arg6[%c0_19, %c0_20, %c0_21, %c0_22], %39 {strides = array<i32>} : memref<1x16x18x128xbf16, #tpu.memory_space<vmem>>, vector<1x16x18x128xbf16>,
    %cst_23 = arith.constant dense<0.000000e+00> : vector<128xf32>
    %40 = vector.multi_reduction <add>, %31, %cst_23 [0] : vector<256x128xf32> to vector<128xf32>
    %41 = vector.shape_cast %40 : vector<128xf32> to vector<1x128xf32>
    %42 = arith.mulf %31, %31 : vector<256x128xf32>
    %cst_24 = arith.constant dense<0.000000e+00> : vector<128xf32>
    %43 = vector.multi_reduction <add>, %42, %cst_24 [0] : vector<256x128xf32> to vector<128xf32>
    %44 = vector.shape_cast %43 : vector<128xf32> to vector<1x128xf32>
    %cst_25 = arith.constant 0.000000e+00 : f32
    %45 = vector.broadcast %cst_25 : f32 to vector<6x128xf32>
    %46 = tpu.concatenate %41, %44, %45 in 0 : vector<1x128xf32>, vector<1x128xf32>, vector<6x128xf32> -> vector<8x128xf32>
    %c0_i32 = arith.constant 0 : i32
    %47 = arith.cmpi eq, %arg1, %c0_i32 : i32
    %48 = arith.extui %47 : i1 to i32
    %c0_i32_26 = arith.constant 0 : i32
    %49 = arith.cmpi ne, %48, %c0_i32_26 : i32
    scf.if %49 {
      %c0_29 = arith.constant 0 : index
      %c0_30 = arith.constant 0 : index
      %c0_31 = arith.constant 0 : index
      %53 = vector.load %arg7[%c0_29, %c0_30, %c0_31] : memref<1x8x128xf32, #tpu.memory_space<vmem>>, vector<1x8x128xf32>
      %54 = vector.shape_cast %53 : vector<1x8x128xf32> to vector<8x128xf32>
      %55 = vector.shape_cast %46 : vector<8x128xf32> to vector<1x8x128xf32>
      tpu.vector_store %arg7[%c0_29, %c0_30, %c0_31], %55 {strides = array<i32>} : memref<1x8x128xf32, #tpu.memory_space<vmem>>, vector<1x8x128xf32>,
    } else {
    }
    %c0_i32_27 = arith.constant 0 : i32
    %50 = arith.cmpi sgt, %arg1, %c0_i32_27 : i32
    %51 = arith.extui %50 : i1 to i32
    %c0_i32_28 = arith.constant 0 : i32
    %52 = arith.cmpi ne, %51, %c0_i32_28 : i32
    scf.if %52 {
      %c0_29 = arith.constant 0 : index
      %c0_30 = arith.constant 0 : index
      %c0_31 = arith.constant 0 : index
      %53 = vector.load %arg7[%c0_29, %c0_30, %c0_31] : memref<1x8x128xf32, #tpu.memory_space<vmem>>, vector<1x8x128xf32>
      %54 = vector.shape_cast %53 : vector<1x8x128xf32> to vector<8x128xf32>
      %55 = arith.addf %54, %46 : vector<8x128xf32>
      %c0_32 = arith.constant 0 : index
      %c0_33 = arith.constant 0 : index
      %c0_34 = arith.constant 0 : index
      %56 = vector.load %arg7[%c0_32, %c0_33, %c0_34] : memref<1x8x128xf32, #tpu.memory_space<vmem>>, vector<1x8x128xf32>
      %57 = vector.shape_cast %56 : vector<1x8x128xf32> to vector<8x128xf32>
      %58 = vector.shape_cast %55 : vector<8x128xf32> to vector<1x8x128xf32>
      tpu.vector_store %arg7[%c0_32, %c0_33, %c0_34], %58 {strides = array<i32>} : memref<1x8x128xf32, #tpu.memory_space<vmem>>, vector<1x8x128xf32>,
    } else {
    }
    return
  }
  func.func @transform_0(%arg0: i32, %arg1: i32) -> (i32, i32, i32, i32) {
    %c0_i32 = arith.constant 0 : i32
    %c0_i32_0 = arith.constant 0 : i32
    %c0_i32_1 = arith.constant 0 : i32
    return %arg0, %arg1, %c0_i32, %c0_i32_0 : i32, i32, i32, i32
  }
  func.func @transform_1(%arg0: i32, %arg1: i32) -> (i32, i32, i32, i32, i32) {
    %c0_i32 = arith.constant 0 : i32
    %c0_i32_0 = arith.constant 0 : i32
    %c0_i32_1 = arith.constant 0 : i32
    %c0_i32_2 = arith.constant 0 : i32
    return %arg0, %arg1, %c0_i32, %c0_i32_0, %c0_i32_1 : i32, i32, i32, i32, i32
  }
  func.func @transform_2(%arg0: i32, %arg1: i32) -> (i32, i32, i32, i32) {
    %c0_i32 = arith.constant 0 : i32
    %c0_i32_0 = arith.constant 0 : i32
    %c0_i32_1 = arith.constant 0 : i32
    return %arg0, %arg1, %c0_i32, %c0_i32_0 : i32, i32, i32, i32
  }
  func.func @transform_3(%arg0: i32, %arg1: i32) -> (i32, i32) {
    %c0_i32 = arith.constant 0 : i32
    %c0_i32_0 = arith.constant 0 : i32
    %c0_i32_1 = arith.constant 0 : i32
    return %c0_i32, %c0_i32_0 : i32, i32
  }
  func.func @transform_4(%arg0: i32, %arg1: i32) -> (i32, i32, i32, i32) {
    %c0_i32 = arith.constant 0 : i32
    %c0_i32_0 = arith.constant 0 : i32
    %c0_i32_1 = arith.constant 0 : i32
    return %arg0, %arg1, %c0_i32, %c0_i32_0 : i32, i32, i32, i32
  }
  func.func @transform_5(%arg0: i32, %arg1: i32) -> (i32, i32, i32) {
    %c0_i32 = arith.constant 0 : i32
    %c0_i32_0 = arith.constant 0 : i32
    %c0_i32_1 = arith.constant 0 : i32
    return %arg0, %c0_i32, %c0_i32_0 : i32, i32, i32
  }
}

module attributes {stable_mosaic.version = 11 : i64} {
  func.func @_down_fused_kernel(%arg0: i32, %arg1: i32, %arg2: memref<1x16x9x256xbf16, #tpu.memory_space<vmem>>, %arg3: memref<1x1x1x9x256xbf16, #tpu.memory_space<vmem>>, %arg4: memref<2x256xf32, #tpu.memory_space<vmem>>, %arg5: memref<1x9x256xf32, #tpu.memory_space<vmem>>, %arg6: memref<1x18x9x1xf32, #tpu.memory_space<vmem>>, %arg7: memref<1x8x8x9xf32, #tpu.memory_space<vmem>>, %arg8: memref<1152x128xbf16, #tpu.memory_space<vmem>>, %arg9: memref<9x128xf32, #tpu.memory_space<vmem>>, %arg10: memref<1x8x8x128xf32, #tpu.memory_space<vmem>>, %arg11: memref<1x8x8x128xf32, #tpu.memory_space<vmem>>) attributes {dimension_semantics = [#tpu.dimension_semantics<parallel>, #tpu.dimension_semantics<parallel>], iteration_bounds = array<i64: 2, 1>, scalar_prefetch = 0 : i64, scratch_operands = 0 : i64, tpu.core_type = #tpu.core_type<tc>, window_params = [{transform_indices = @transform_0, window_bounds = array<i64: 1, 16, 9, 256>}, {transform_indices = @transform_1, window_bounds = array<i64: 1, 1, 1, 9, 256>}, {pipeline_mode = #tpu.pipeline_mode<synchronous>, transform_indices = @transform_2, window_bounds = array<i64: 2, 256>}, {pipeline_mode = #tpu.pipeline_mode<synchronous>, transform_indices = @transform_3, window_bounds = array<i64: 1, 9, 256>}, {transform_indices = @transform_4, window_bounds = array<i64: 1, 18, 9, 1>}, {transform_indices = @transform_5, window_bounds = array<i64: 1, 8, 8, 9>}, {pipeline_mode = #tpu.pipeline_mode<synchronous>, transform_indices = @transform_6, window_bounds = array<i64: 1152, 128>}, {pipeline_mode = #tpu.pipeline_mode<synchronous>, transform_indices = @transform_7, window_bounds = array<i64: 9, 128>}, {transform_indices = @transform_8, window_bounds = array<i64: 1, 8, 8, 128>}, {transform_indices = @transform_9, window_bounds = array<i64: 1, 8, 8, 128>}]} {
    %c0 = arith.constant 0 : index
    %c0_0 = arith.constant 0 : index
    %c0_1 = arith.constant 0 : index
    %c0_2 = arith.constant 0 : index
    %c0_3 = arith.constant 0 : index
    %0 = vector.load %arg3[%c0, %c0_0, %c0_1, %c0_2, %c0_3] : memref<1x1x1x9x256xbf16, #tpu.memory_space<vmem>>, vector<1x1x1x9x256xbf16>
    %1 = vector.shape_cast %0 : vector<1x1x1x9x256xbf16> to vector<1x9x256xbf16>
    %c0_4 = arith.constant 0 : index
    %c0_5 = arith.constant 0 : index
    %c0_6 = arith.constant 0 : index
    %c0_7 = arith.constant 0 : index
    %2 = vector.load %arg2[%c0_4, %c0_5, %c0_6, %c0_7] : memref<1x16x9x256xbf16, #tpu.memory_space<vmem>>, vector<1x16x9x256xbf16>
    %3 = vector.shape_cast %2 : vector<1x16x9x256xbf16> to vector<16x9x256xbf16>
    %cst = arith.constant 0.000000e+00 : bf16
    %4 = vector.broadcast %cst : bf16 to vector<1x9x256xbf16>
    %5 = tpu.concatenate %1, %3, %4 in 0 : vector<1x9x256xbf16>, vector<16x9x256xbf16>, vector<1x9x256xbf16> -> vector<18x9x256xbf16>
    %6 = arith.extf %5 : vector<18x9x256xbf16> to vector<18x9x256xf32>
    %c0_8 = arith.constant 0 : index
    %c0_9 = arith.constant 0 : index
    %7 = vector.load %arg4[%c0_8, %c0_9] : memref<2x256xf32, #tpu.memory_space<vmem>>, vector<1x256xf32>
    %8 = vector.shape_cast %7 : vector<1x256xf32> to vector<1x1x256xf32>
    %c1 = arith.constant 1 : index
    %c0_10 = arith.constant 0 : index
    %9 = vector.load %arg4[%c1, %c0_10] : memref<2x256xf32, #tpu.memory_space<vmem>>, vector<1x256xf32>
    %10 = vector.shape_cast %9 : vector<1x256xf32> to vector<1x1x256xf32>
    %11 = vector.broadcast %8 : vector<1x1x256xf32> to vector<18x9x256xf32>
    %12 = arith.mulf %6, %11 : vector<18x9x256xf32>
    %13 = vector.broadcast %10 : vector<1x1x256xf32> to vector<18x9x256xf32>
    %14 = arith.addf %12, %13 : vector<18x9x256xf32>
    %cst_11 = arith.constant 0.000000e+00 : f32
    %15 = vector.broadcast %cst_11 : f32 to vector<18x9x256xf32>
    %16 = arith.maximumf %14, %15 : vector<18x9x256xf32>
    %c0_12 = arith.constant 0 : index
    %c0_13 = arith.constant 0 : index
    %c0_14 = arith.constant 0 : index
    %17 = vector.load %arg5[%c0_12, %c0_13, %c0_14] : memref<1x9x256xf32, #tpu.memory_space<vmem>>, vector<1x9x256xf32>
    %18 = vector.broadcast %17 : vector<1x9x256xf32> to vector<18x9x256xf32>
    %19 = arith.mulf %16, %18 : vector<18x9x256xf32>
    %c0_15 = arith.constant 0 : index
    %c0_16 = arith.constant 0 : index
    %c0_17 = arith.constant 0 : index
    %c0_18 = arith.constant 0 : index
    %20 = vector.load %arg6[%c0_15, %c0_16, %c0_17, %c0_18] : memref<1x18x9x1xf32, #tpu.memory_space<vmem>>, vector<1x18x9x1xf32>
    %21 = vector.shape_cast %20 : vector<1x18x9x1xf32> to vector<18x9x1xf32>
    %22 = vector.broadcast %21 : vector<18x9x1xf32> to vector<18x9x256xf32>
    %23 = arith.mulf %19, %22 : vector<18x9x256xf32>
    %24 = arith.truncf %23 : vector<18x9x256xf32> to vector<18x9x256xbf16>
    %25 = vector.shape_cast %24 : vector<18x9x256xbf16> to vector<9x2x9x256xbf16>
    %26 = vector.extract_strided_slice %25 {offsets = [0, 0, 0, 0], sizes = [8, 1, 8, 128], strides = [1, 1, 1, 1]} : vector<9x2x9x256xbf16> to vector<8x1x8x128xbf16>
    %27 = vector.shape_cast %26 : vector<8x1x8x128xbf16> to vector<8x8x128xbf16>
    %28 = vector.extract_strided_slice %25 {offsets = [0, 0, 0, 128], sizes = [8, 1, 8, 128], strides = [1, 1, 1, 1]} : vector<9x2x9x256xbf16> to vector<8x1x8x128xbf16>
    %29 = vector.shape_cast %28 : vector<8x1x8x128xbf16> to vector<8x8x128xbf16>
    %30 = vector.extract_strided_slice %25 {offsets = [0, 0, 1, 0], sizes = [8, 1, 8, 128], strides = [1, 1, 1, 1]} : vector<9x2x9x256xbf16> to vector<8x1x8x128xbf16>
    %31 = vector.shape_cast %30 : vector<8x1x8x128xbf16> to vector<8x8x128xbf16>
    %32 = vector.extract_strided_slice %25 {offsets = [0, 1, 0, 0], sizes = [8, 1, 8, 128], strides = [1, 1, 1, 1]} : vector<9x2x9x256xbf16> to vector<8x1x8x128xbf16>
    %33 = vector.shape_cast %32 : vector<8x1x8x128xbf16> to vector<8x8x128xbf16>
    %34 = vector.extract_strided_slice %25 {offsets = [0, 1, 0, 128], sizes = [8, 1, 8, 128], strides = [1, 1, 1, 1]} : vector<9x2x9x256xbf16> to vector<8x1x8x128xbf16>
    %35 = vector.shape_cast %34 : vector<8x1x8x128xbf16> to vector<8x8x128xbf16>
    %36 = vector.extract_strided_slice %25 {offsets = [0, 1, 1, 0], sizes = [8, 1, 8, 128], strides = [1, 1, 1, 1]} : vector<9x2x9x256xbf16> to vector<8x1x8x128xbf16>
    %37 = vector.shape_cast %36 : vector<8x1x8x128xbf16> to vector<8x8x128xbf16>
    %38 = vector.extract_strided_slice %25 {offsets = [1, 0, 0, 0], sizes = [8, 1, 8, 128], strides = [1, 1, 1, 1]} : vector<9x2x9x256xbf16> to vector<8x1x8x128xbf16>
    %39 = vector.shape_cast %38 : vector<8x1x8x128xbf16> to vector<8x8x128xbf16>
    %40 = vector.extract_strided_slice %25 {offsets = [1, 0, 0, 128], sizes = [8, 1, 8, 128], strides = [1, 1, 1, 1]} : vector<9x2x9x256xbf16> to vector<8x1x8x128xbf16>
    %41 = vector.shape_cast %40 : vector<8x1x8x128xbf16> to vector<8x8x128xbf16>
    %42 = vector.extract_strided_slice %25 {offsets = [1, 0, 1, 0], sizes = [8, 1, 8, 128], strides = [1, 1, 1, 1]} : vector<9x2x9x256xbf16> to vector<8x1x8x128xbf16>
    %43 = vector.shape_cast %42 : vector<8x1x8x128xbf16> to vector<8x8x128xbf16>
    %44 = tpu.concatenate %27, %29, %31, %33, %35, %37, %39, %41, %43 in 2 : vector<8x8x128xbf16>, vector<8x8x128xbf16>, vector<8x8x128xbf16>, vector<8x8x128xbf16>, vector<8x8x128xbf16>, vector<8x8x128xbf16>, vector<8x8x128xbf16>, vector<8x8x128xbf16>, vector<8x8x128xbf16> -> vector<8x8x1152xbf16>
    %45 = vector.shape_cast %44 : vector<8x8x1152xbf16> to vector<64x1152xbf16>
    %c0_19 = arith.constant 0 : index
    %c0_20 = arith.constant 0 : index
    %46 = vector.load %arg8[%c0_19, %c0_20] : memref<1152x128xbf16, #tpu.memory_space<vmem>>, vector<1152x128xbf16>
    %cst_21 = arith.constant dense<0.000000e+00> : vector<64x128xf32>
    %47 = tpu.matmul %45, %46, %cst_21 {dimension_numbers = #tpu.dot_dimension_numbers<[1], [0], [0], [1], [0, 0, 1, 1], [], []>} : vector<64x1152xbf16>, vector<1152x128xbf16>, vector<64x128xf32> -> vector<64x128xf32>
    %48 = vector.shape_cast %47 : vector<64x128xf32> to vector<8x8x128xf32>
    %c0_22 = arith.constant 0 : index
    %c0_23 = arith.constant 0 : index
    %c0_24 = arith.constant 0 : index
    %c0_25 = arith.constant 0 : index
    %49 = vector.load %arg10[%c0_22, %c0_23, %c0_24, %c0_25] : memref<1x8x8x128xf32, #tpu.memory_space<vmem>>, vector<1x8x8x128xf32>
    %50 = vector.shape_cast %49 : vector<1x8x8x128xf32> to vector<8x8x128xf32>
    %51 = vector.shape_cast %48 : vector<8x8x128xf32> to vector<1x8x8x128xf32>
    tpu.vector_store %arg10[%c0_22, %c0_23, %c0_24, %c0_25], %51 {strides = array<i32>} : memref<1x8x8x128xf32, #tpu.memory_space<vmem>>, vector<1x8x8x128xf32>,
    %c0_26 = arith.constant 0 : index
    %c0_27 = arith.constant 0 : index
    %c0_28 = arith.constant 0 : index
    %c0_29 = arith.constant 0 : index
    %52 = vector.load %arg7[%c0_26, %c0_27, %c0_28, %c0_29] : memref<1x8x8x9xf32, #tpu.memory_space<vmem>>, vector<1x8x8x9xf32>
    %53 = vector.shape_cast %52 : vector<1x8x8x9xf32> to vector<8x8x9xf32>
    %54 = vector.shape_cast %53 : vector<8x8x9xf32> to vector<64x9xf32>
    %c0_30 = arith.constant 0 : index
    %c0_31 = arith.constant 0 : index
    %55 = vector.load %arg9[%c0_30, %c0_31] : memref<9x128xf32, #tpu.memory_space<vmem>>, vector<9x128xf32>
    %cst_32 = arith.constant dense<0.000000e+00> : vector<64x128xf32>
    %56 = tpu.matmul %54, %55, %cst_32 {dimension_numbers = #tpu.dot_dimension_numbers<[1], [0], [0], [1], [0, 0, 1, 1], [], []>} : vector<64x9xf32>, vector<9x128xf32>, vector<64x128xf32> -> vector<64x128xf32>
    %57 = vector.shape_cast %56 : vector<64x128xf32> to vector<8x8x128xf32>
    %c0_33 = arith.constant 0 : index
    %c0_34 = arith.constant 0 : index
    %c0_35 = arith.constant 0 : index
    %c0_36 = arith.constant 0 : index
    %58 = vector.load %arg11[%c0_33, %c0_34, %c0_35, %c0_36] : memref<1x8x8x128xf32, #tpu.memory_space<vmem>>, vector<1x8x8x128xf32>
    %59 = vector.shape_cast %58 : vector<1x8x8x128xf32> to vector<8x8x128xf32>
    %60 = vector.shape_cast %57 : vector<8x8x128xf32> to vector<1x8x8x128xf32>
    tpu.vector_store %arg11[%c0_33, %c0_34, %c0_35, %c0_36], %60 {strides = array<i32>} : memref<1x8x8x128xf32, #tpu.memory_space<vmem>>, vector<1x8x8x128xf32>,
    return
  }
  func.func @transform_0(%arg0: i32, %arg1: i32) -> (i32, i32, i32, i32) {
    %c0_i32 = arith.constant 0 : i32
    %c0_i32_0 = arith.constant 0 : i32
    %c0_i32_1 = arith.constant 0 : i32
    return %arg0, %arg1, %c0_i32, %c0_i32_0 : i32, i32, i32, i32
  }
  func.func @transform_1(%arg0: i32, %arg1: i32) -> (i32, i32, i32, i32, i32) {
    %c0_i32 = arith.constant 0 : i32
    %c0_i32_0 = arith.constant 0 : i32
    %c0_i32_1 = arith.constant 0 : i32
    %c0_i32_2 = arith.constant 0 : i32
    return %arg0, %arg1, %c0_i32, %c0_i32_0, %c0_i32_1 : i32, i32, i32, i32, i32
  }
  func.func @transform_2(%arg0: i32, %arg1: i32) -> (i32, i32) {
    %c0_i32 = arith.constant 0 : i32
    %c0_i32_0 = arith.constant 0 : i32
    %c0_i32_1 = arith.constant 0 : i32
    return %c0_i32, %c0_i32_0 : i32, i32
  }
  func.func @transform_3(%arg0: i32, %arg1: i32) -> (i32, i32, i32) {
    %c0_i32 = arith.constant 0 : i32
    %c0_i32_0 = arith.constant 0 : i32
    %c0_i32_1 = arith.constant 0 : i32
    %c0_i32_2 = arith.constant 0 : i32
    return %c0_i32, %c0_i32_0, %c0_i32_1 : i32, i32, i32
  }
  func.func @transform_4(%arg0: i32, %arg1: i32) -> (i32, i32, i32, i32) {
    %c0_i32 = arith.constant 0 : i32
    %c0_i32_0 = arith.constant 0 : i32
    %c0_i32_1 = arith.constant 0 : i32
    %c0_i32_2 = arith.constant 0 : i32
    return %arg1, %c0_i32, %c0_i32_0, %c0_i32_1 : i32, i32, i32, i32
  }
  func.func @transform_5(%arg0: i32, %arg1: i32) -> (i32, i32, i32, i32) {
    %c0_i32 = arith.constant 0 : i32
    %c0_i32_0 = arith.constant 0 : i32
    %c0_i32_1 = arith.constant 0 : i32
    return %arg0, %arg1, %c0_i32, %c0_i32_0 : i32, i32, i32, i32
  }
  func.func @transform_6(%arg0: i32, %arg1: i32) -> (i32, i32) {
    %c0_i32 = arith.constant 0 : i32
    %c0_i32_0 = arith.constant 0 : i32
    %c0_i32_1 = arith.constant 0 : i32
    return %c0_i32, %c0_i32_0 : i32, i32
  }
  func.func @transform_7(%arg0: i32, %arg1: i32) -> (i32, i32) {
    %c0_i32 = arith.constant 0 : i32
    %c0_i32_0 = arith.constant 0 : i32
    %c0_i32_1 = arith.constant 0 : i32
    return %c0_i32, %c0_i32_0 : i32, i32
  }
  func.func @transform_8(%arg0: i32, %arg1: i32) -> (i32, i32, i32, i32) {
    %c0_i32 = arith.constant 0 : i32
    %c0_i32_0 = arith.constant 0 : i32
    %c0_i32_1 = arith.constant 0 : i32
    return %arg0, %arg1, %c0_i32, %c0_i32_0 : i32, i32, i32, i32
  }
  func.func @transform_9(%arg0: i32, %arg1: i32) -> (i32, i32, i32, i32) {
    %c0_i32 = arith.constant 0 : i32
    %c0_i32_0 = arith.constant 0 : i32
    %c0_i32_1 = arith.constant 0 : i32
    return %arg0, %arg1, %c0_i32, %c0_i32_0 : i32, i32, i32, i32
  }
}

</mosaic_0001>

<llo_original>
// kernel: partial2d_block_forward.2
$region0: #{partial2d_block_forward.2}
  #allocation0 [shape = 'u32[]', space=smem, size = 0x4, offset = 0x4, fixed_abs, tag = 'smem constant byte address 0x4 - core index']
  #allocation1 [shape = 'u32[144,128]{1,0:T(1,128)}', space=vmem, size = 0x12000, scoped, tag = 'internal scratch']
  %s0 = inlined_call_operand.vmem [shape: bf16[2,18,18,8], index: 0, kind: input, shape index: {}]
  %s1 = inlined_call_operand.vmem [shape: bf16[2,1,2,18,8], index: 1, kind: input, shape index: {}]
  %s2 = inlined_call_operand.vmem [shape: f32[2,16,16,1], index: 2, kind: input, shape index: {}]
  %s3 = inlined_call_operand.vmem [shape: bf16[72,128], index: 3, kind: input, shape index: {}]
  %s4 = inlined_call_operand.vmem [shape: bf16[2,16,18,128], index: 4, kind: output, shape index: {0}]
  %s5 = inlined_call_operand.vmem [shape: f32[2,8,128], index: 5, kind: output, shape index: {1}]
  %6 = xla_tuple %s4, %s5
  %s7 = sld [smem:[#allocation0]]
  $region65: #{partial2d_block_forward.2} parent=0
    _
  %s9 = ssub.s32 1, %s7
  %s10 = scalar_select 0, %s9, %s7
  loop: start=0, step=1, limit=4
  $region2: #{partial2d_block_forward.2} parent=0 // loop_pre_header
    _
  $region3: #{partial2d_block_forward.2} parent=0 // loop_header
    %s12 = sphi 0, %s16
    %p13 = scmp.ge.s32.totalorder %s12, 4
    %s19 = sphi 0, %s31
    %s20 = sphi 0, %s27
    %s21 = sphi 0, %s19
    %s22 = sphi 0, %s20
    %s23 = sphi 0, %s21
    %s24 = sphi 0, %s22
    %s36 = sphi 0, %s38
    %s39 = sphi 0, %s36
    %s40 = sphi 0, %s39
    %s56 = sphi 0, %s40
    %s64 = sphi 0, %s66
    %s67 = sphi 0, %s64
    %s68 = sphi 0, %s67
    %s84 = sphi 0, %s68
    %s92 = sphi 0, %s94
    %s95 = sphi 0, %s92
    %s96 = sphi 0, %s95
    %s112 = sphi 0, %s96
    %s116 = sphi 0, %s116
    %s118 = sphi 0, %s116
    %s119 = sphi 0, %s118
    %s133 = sphi 0, %s119
    %s141 = sphi 0, %s143
    %s144 = sphi 0, %s141
    %s145 = sphi 0, %s144
    %s161 = sphi 0, %s145
    %s167 = sphi 0, %s169
    %s170 = sphi 0, %s167
    %s171 = sphi 0, %s170
    %s187 = sphi 0, %s171
  $region4: #{partial2d_block_forward.2} parent=0 // loop_header_branch
    %15 = sbr.rel (%p13) target = $region8
  $region5: #{partial2d_block_forward.2} parent=0 // loop_body
    %s17 = ssub.s32 %s12, 1
    %s18 = ssub.s32 %s12, 2
    %s25 = sadd.s32 1, %s20
    %p26 = scmp.ge.s32.totalorder %s25, 1
    %s27 = scalar_select %p26, 0, %s25
    %s28 = sadd.s32 1, %s19
    %s29 = scalar_select %p26, %s28, %s19
    %p30 = scmp.ge.s32.totalorder %s29, 2
    %s31 = scalar_select %p30, 0, %s29
    %s32 = ssub.s32 %s19, %s31
    %s33 = ssub.s32 %s20, %s27
    %s34 = sor.u32 %s32, %s33
    %p35 = scmp.eq.s32.totalorder %s34, 0
    %s37 = sadd.s32 %s36, 1
    %s38 = scalar_select %p35, %s36, %s37
    %p41 = pneg %p35
    %p42 = scmp.eq.s32.totalorder %s12, 1
    %p43 = por %p41, %p42
    %p44 = scmp.ne.s32.totalorder %s36, %s39
    %p45 = scmp.eq.s32.totalorder %s12, 0
    %p46 = por %p44, %p45
    %p47 = scmp.ne.s32.totalorder %s36, %s39
    %p48 = scmp.eq.s32.totalorder %s17, 1
    %p49 = por %p47, %p48
    %p50 = scmp.ne.s32.totalorder %s39, %s40
    %p51 = scmp.eq.s32.totalorder %s17, 0
    %p52 = por %p50, %p51
    %p53 = scmp.ne.s32.totalorder %s39, %s40
    %p54 = scmp.eq.s32.totalorder %s18, 1
    %p55 = por %p53, %p54
    %p57 = scmp.ne.s32.totalorder %s40, %s56
    %p58 = scmp.eq.s32.totalorder %s18, 0
    %p59 = por %p57, %p58
    %s60 = ssub.s32 %s19, %s31
    %s61 = ssub.s32 %s20, %s27
    %s62 = sor.u32 %s60, %s61
    %p63 = scmp.eq.s32.totalorder %s62, 0
    %s65 = sadd.s32 %s64, 1
    %s66 = scalar_select %p63, %s64, %s65
    %p69 = pneg %p63
    %p70 = scmp.eq.s32.totalorder %s12, 1
    %p71 = por %p69, %p70
    %p72 = scmp.ne.s32.totalorder %s64, %s67
    %p73 = scmp.eq.s32.totalorder %s12, 0
    %p74 = por %p72, %p73
    %p75 = scmp.ne.s32.totalorder %s64, %s67
    %p76 = scmp.eq.s32.totalorder %s17, 1
    %p77 = por %p75, %p76
    %p78 = scmp.ne.s32.totalorder %s67, %s68
    %p79 = scmp.eq.s32.totalorder %s17, 0
    %p80 = por %p78, %p79
    %p81 = scmp.ne.s32.totalorder %s67, %s68
    %p82 = scmp.eq.s32.totalorder %s18, 1
    %p83 = por %p81, %p82
    %p85 = scmp.ne.s32.totalorder %s68, %s84
    %p86 = scmp.eq.s32.totalorder %s18, 0
    %p87 = por %p85, %p86
    %s88 = ssub.s32 %s19, %s31
    %s89 = ssub.s32 %s20, %s27
    %s90 = sor.u32 %s88, %s89
    %p91 = scmp.eq.s32.totalorder %s90, 0
    %s93 = sadd.s32 %s92, 1
    %s94 = scalar_select %p91, %s92, %s93
    %p97 = pneg %p91
    %p98 = scmp.eq.s32.totalorder %s12, 1
    %p99 = por %p97, %p98
    %p100 = scmp.ne.s32.totalorder %s92, %s95
    %p101 = scmp.eq.s32.totalorder %s12, 0
    %p102 = por %p100, %p101
    %p103 = scmp.ne.s32.totalorder %s92, %s95
    %p104 = scmp.eq.s32.totalorder %s17, 1
    %p105 = por %p103, %p104
    %p106 = scmp.ne.s32.totalorder %s95, %s96
    %p107 = scmp.eq.s32.totalorder %s17, 0
    %p108 = por %p106, %p107
    %p109 = scmp.ne.s32.totalorder %s95, %s96
    %p110 = scmp.eq.s32.totalorder %s18, 1
    %p111 = por %p109, %p110
    %p113 = scmp.ne.s32.totalorder %s96, %s112
    %p114 = scmp.eq.s32.totalorder %s18, 0
    %p115 = por %p113, %p114
    %s117 = sadd.s32 %s116, 1
    %p120 = scmp.eq.s32.totalorder %s12, 1
    %p121 = scmp.ne.s32.totalorder %s116, %s118
    %p122 = scmp.eq.s32.totalorder %s12, 0
    %p123 = por %p121, %p122
    %p124 = scmp.ne.s32.totalorder %s116, %s118
    %p125 = scmp.eq.s32.totalorder %s17, 1
    %p126 = por %p124, %p125
    %p127 = scmp.ne.s32.totalorder %s118, %s119
    %p128 = scmp.eq.s32.totalorder %s17, 0
    %p129 = por %p127, %p128
    %p130 = scmp.ne.s32.totalorder %s118, %s119
    %p131 = scmp.eq.s32.totalorder %s18, 1
    %p132 = por %p130, %p131
    %p134 = scmp.ne.s32.totalorder %s119, %s133
    %p135 = scmp.eq.s32.totalorder %s18, 0
    %p136 = por %p134, %p135
    %s137 = ssub.s32 %s19, %s31
    %s138 = ssub.s32 %s20, %s27
    %s139 = sor.u32 %s137, %s138
    %p140 = scmp.eq.s32.totalorder %s139, 0
    %s142 = sadd.s32 %s141, 1
    %s143 = scalar_select %p140, %s141, %s142
    %p146 = pneg %p140
    %p147 = scmp.eq.s32.totalorder %s12, 1
    %p148 = por %p146, %p147
    %p149 = scmp.ne.s32.totalorder %s141, %s144
    %p150 = scmp.eq.s32.totalorder %s12, 0
    %p151 = por %p149, %p150
    %p152 = scmp.ne.s32.totalorder %s141, %s144
    %p153 = scmp.eq.s32.totalorder %s17, 1
    %p154 = por %p152, %p153
    %p155 = scmp.ne.s32.totalorder %s144, %s145
    %p156 = scmp.eq.s32.totalorder %s17, 0
    %p157 = por %p155, %p156
    %p158 = scmp.ne.s32.totalorder %s144, %s145
    %p159 = scmp.eq.s32.totalorder %s18, 1
    %p160 = por %p158, %p159
    %p162 = scmp.ne.s32.totalorder %s145, %s161
    %p163 = scmp.eq.s32.totalorder %s18, 0
    %p164 = por %p162, %p163
    %s165 = ssub.s32 %s19, %s31
    %p166 = scmp.eq.s32.totalorder %s165, 0
    %s168 = sadd.s32 %s167, 1
    %s169 = scalar_select %p166, %s167, %s168
    %p172 = pneg %p166
    %p173 = scmp.eq.s32.totalorder %s12, 1
    %p174 = por %p172, %p173
    %p175 = scmp.ne.s32.totalorder %s167, %s170
    %p176 = scmp.eq.s32.totalorder %s12, 0
    %p177 = por %p175, %p176
    %p178 = scmp.ne.s32.totalorder %s167, %s170
    %p179 = scmp.eq.s32.totalorder %s17, 1
    %p180 = por %p178, %p179
    %p181 = scmp.ne.s32.totalorder %s170, %s171
    %p182 = scmp.eq.s32.totalorder %s17, 0
    %p183 = por %p181, %p182
    %p184 = scmp.ne.s32.totalorder %s170, %s171
    %p185 = scmp.eq.s32.totalorder %s18, 1
    %p186 = por %p184, %p185
    %p188 = scmp.ne.s32.totalorder %s171, %s187
    %p189 = scmp.eq.s32.totalorder %s18, 0
    %p190 = por %p188, %p189
    %p191 = scmp.le.s32.totalorder 1, %s12
    %p192 = scmp.lt.s32.totalorder %s12, 3
    %p193 = pnand %p191, %p192
    %p194 = pneg %p193
    // Predicated region
    $region9: #{partial2d_block_forward.2} parent=5 // pred_check
      _
    $region10: #{partial2d_block_forward.2} parent=5 // pred_check_branch
      %196 = sbr.rel (%p193) target = $region12
    $region11: #{partial2d_block_forward.2} parent=5 // pred_region
      %s197 = ssub.s32 %s12, 1
      // Predicated region
      $region13: #{partial2d_block_forward.2} parent=11 // pred_check
        %p198 = pneg %p129
      $region14: #{partial2d_block_forward.2} parent=11 // pred_check_branch
        %200 = sbr.rel (%p198) target = $region16
      $region15: #{partial2d_block_forward.2} parent=11 // pred_region
        _
      $region16: #{partial2d_block_forward.2} parent=11 // pred_fallthru
        _
    $region12: #{partial2d_block_forward.2} parent=5 // pred_fallthru
      _
    %p201 = scmp.lt.s32.totalorder %s12, 2
    // Predicated region
    $region17: #{partial2d_block_forward.2} parent=5 // pred_check
      %p202 = pneg %p201
    $region18: #{partial2d_block_forward.2} parent=5 // pred_check_branch
      %204 = sbr.rel (%p202) target = $region20
    $region19: #{partial2d_block_forward.2} parent=5 // pred_region
      // Predicated region
      $region21: #{partial2d_block_forward.2} parent=19 // pred_check
        %p205 = pneg %p46
      $region22: #{partial2d_block_forward.2} parent=19 // pred_check_branch
        %207 = sbr.rel (%p205) target = $region24
      $region23: #{partial2d_block_forward.2} parent=19 // pred_region
        %s208 = smul.u32 16, %s20
        %s209 = ssub.s32 18, %s208
        %p210 = scmp.lt.s32.totalorder %s209, 16
        %s211 = scalar_select %p210, %s209, 16
        %s212 = smul.u32 64, %s211
        %s213 = smul.u32 %s212, 3
        %p214 = scmp.lt.s32.totalorder %s19, 1
        %s215 = scalar_select %p214, %s19, 1
        %p216 = scmp.lt.s32.totalorder %s208, 17
        %s217 = scalar_select %p216, %s208, 17
        %s218 = smul.addr %s217, 3
        %s219 = smul.addr %s215, 54
        %s220 = sadd.s32 %s218, %s219
        %s221 = smul.addr %s220, 4
        %s222 = scalar_lea.vmem %s0, %s221
        %s223 = smul.u32 16, %s20
        %s224 = ssub.s32 18, %s223
        %p225 = scmp.lt.s32.totalorder %s224, 16
        %s226 = scalar_select %p225, %s224, 16
        %s227 = smul.u32 64, %s226
        %s228 = smul.u32 %s227, 3
      $region24: #{partial2d_block_forward.2} parent=19 // pred_fallthru
        _
      // Predicated region
      $region25: #{partial2d_block_forward.2} parent=19 // pred_check
        %p229 = pneg %p74
      $region26: #{partial2d_block_forward.2} parent=19 // pred_check_branch
        %231 = sbr.rel (%p229) target = $region28
      $region27: #{partial2d_block_forward.2} parent=19 // pred_region
        %p232 = scmp.lt.s32.totalorder %s19, 1
        %s233 = scalar_select %p232, %s19, 1
        %p234 = scmp.lt.s32.totalorder %s20, 0
        %s235 = scalar_select %p234, %s20, 0
        %s236 = smul.addr %s235, 6
        %s237 = smul.addr %s233, 6
        %s238 = sadd.s32 %s236, %s237
        %s239 = smul.addr %s238, 4
        %s240 = scalar_lea.vmem %s1, %s239
      $region28: #{partial2d_block_forward.2} parent=19 // pred_fallthru
        _
      // Predicated region
      $region29: #{partial2d_block_forward.2} parent=19 // pred_check
        %p241 = pneg %p102
      $region30: #{partial2d_block_forward.2} parent=19 // pred_check_branch
        %243 = sbr.rel (%p241) target = $region32
      $region31: #{partial2d_block_forward.2} parent=19 // pred_region
        %s244 = smul.u32 16, %s20
        %p245 = scmp.lt.s32.totalorder %s19, 1
        %s246 = scalar_select %p245, %s19, 1
        %p247 = scmp.lt.s32.totalorder %s244, 15
        %s248 = scalar_select %p247, %s244, 15
        %s249 = smul.addr %s248, 2
        %s250 = smul.addr %s246, 32
        %s251 = sadd.s32 %s249, %s250
        %s252 = smul.addr %s251, 8
        %s253 = scalar_lea.vmem %s2, %s252
        %s254 = smul.u32 16, %s20
      $region32: #{partial2d_block_forward.2} parent=19 // pred_fallthru
        _
    $region20: #{partial2d_block_forward.2} parent=5 // pred_fallthru
      _
    %p255 = scmp.le.s32.totalorder 1, %s12
    %p256 = scmp.lt.s32.totalorder %s12, 3
    %p257 = pnand %p255, %p256
    %p258 = pneg %p257
    // Predicated region
    $region33: #{partial2d_block_forward.2} parent=5 // pred_check
      _
    $region34: #{partial2d_block_forward.2} parent=5 // pred_check_branch
      %260 = sbr.rel (%p257) target = $region36
    $region35: #{partial2d_block_forward.2} parent=5 // pred_region
      %s261 = ssub.s32 %s12, 1
      %s262 = smul.u32 16, %s22
      %s263 = ssub.s32 18, %s262
      %p264 = scmp.lt.s32.totalorder %s263, 16
      %s265 = scalar_select %p264, %s263, 16
      %s266 = smul.u32 64, %s265
      %s267 = smul.u32 %s266, 3
      %p268 = scmp.lt.s32.totalorder %s21, 1
      %s269 = scalar_select %p268, %s21, 1
      %p270 = scmp.lt.s32.totalorder %s262, 17
      %s271 = scalar_select %p270, %s262, 17
      %s272 = smul.addr %s271, 3
      %s273 = smul.addr %s269, 54
      %s274 = sadd.s32 %s272, %s273
      %s275 = smul.addr %s274, 4
      %s276 = scalar_lea.vmem %s0, %s275
      %p277 = pneg %p52
      %p278 = pneg %p49
      %p279 = scmp.lt.s32.totalorder %s21, 1
      %s280 = scalar_select %p279, %s21, 1
      %p281 = scmp.lt.s32.totalorder %s22, 0
      %s282 = scalar_select %p281, %s22, 0
      %s283 = smul.addr %s282, 6
      %s284 = smul.addr %s280, 6
      %s285 = sadd.s32 %s283, %s284
      %s286 = smul.addr %s285, 4
      %s287 = scalar_lea.vmem %s1, %s286
      %p288 = pneg %p80
      %p289 = pneg %p77
      %s290 = smul.u32 16, %s22
      %p291 = scmp.lt.s32.totalorder %s21, 1
      %s292 = scalar_select %p291, %s21, 1
      %p293 = scmp.lt.s32.totalorder %s290, 15
      %s294 = scalar_select %p293, %s290, 15
      %s295 = smul.addr %s294, 2
      %s296 = smul.addr %s292, 32
      %s297 = sadd.s32 %s295, %s296
      %s298 = smul.addr %s297, 8
      %s299 = scalar_lea.vmem %s2, %s298
      %p300 = pneg %p108
      %p301 = pneg %p105
      %p302 = pneg %p129
      %p303 = pneg %p126
      %p304 = pneg %p157
      %p305 = pneg %p154
      %s306 = smul.u32 16, %s22
      %p307 = scmp.lt.s32.totalorder %s21, 1
      %s308 = scalar_select %p307, %s21, 1
      %p309 = scmp.lt.s32.totalorder %s306, 15
      %s310 = scalar_select %p309, %s306, 15
      %s311 = smul.addr %s310, 3
      %s312 = smul.addr %s308, 48
      %s313 = sadd.s32 %s311, %s312
      %s314 = smul.addr %s313, 4
      %s315 = scalar_lea.vmem %s4, %s314
      %p316 = pneg %p183
      %p317 = pneg %p180
      %p318 = scmp.lt.s32.totalorder %s21, 1
      %s319 = scalar_select %p318, %s21, 1
      %s320 = smul.addr %s319, 8
      %s321 = scalar_lea.vmem %s5, %s320
      %s322 = smul.u32 16, %s22
      %s323 = ssub.s32 18, %s322
      %p324 = scmp.lt.s32.totalorder %s323, 16
      %s325 = scalar_select %p324, %s323, 16
      %s326 = smul.u32 64, %s325
      %s327 = smul.u32 %s326, 3
      %p328 = scmp.lt.s32.totalorder %s21, 1
      %s329 = scalar_select %p328, %s21, 1
      %p330 = scmp.lt.s32.totalorder %s322, 17
      %s331 = scalar_select %p330, %s322, 17
      %s332 = smul.addr %s331, 3
      %s333 = smul.addr %s329, 54
      %s334 = sadd.s32 %s332, %s333
      %s335 = smul.addr %s334, 4
      %s336 = scalar_lea.vmem %s0, %s335
      %s337 = smul.u32 16, %s22
      %s338 = ssub.s32 18, %s337
      %p339 = scmp.lt.s32.totalorder %s338, 16
      %s340 = scalar_select %p339, %s338, 16
      %s341 = smul.u32 64, %s340
      %s342 = smul.u32 %s341, 3
      %p343 = scmp.lt.s32.totalorder %s21, 1
      %s344 = scalar_select %p343, %s21, 1
      %p345 = scmp.lt.s32.totalorder %s22, 0
      %s346 = scalar_select %p345, %s22, 0
      %s347 = smul.addr %s346, 6
      %s348 = smul.addr %s344, 6
      %s349 = sadd.s32 %s347, %s348
      %s350 = smul.addr %s349, 4
      %s351 = scalar_lea.vmem %s1, %s350
      %s352 = smul.u32 16, %s22
      %p353 = scmp.lt.s32.totalorder %s21, 1
      %s354 = scalar_select %p353, %s21, 1
      %p355 = scmp.lt.s32.totalorder %s352, 15
      %s356 = scalar_select %p355, %s352, 15
      %s357 = smul.addr %s356, 2
      %s358 = smul.addr %s354, 32
      %s359 = sadd.s32 %s357, %s358
      %s360 = smul.addr %s359, 8
      %s361 = scalar_lea.vmem %s2, %s360
      %s362 = smul.u32 16, %s22
      %s363 = smul.u32 16, %s22
      %p364 = scmp.lt.s32.totalorder %s21, 1
      %s365 = scalar_select %p364, %s21, 1
      %p366 = scmp.lt.s32.totalorder %s363, 15
      %s367 = scalar_select %p366, %s363, 15
      %s368 = smul.addr %s367, 3
      %s369 = smul.addr %s365, 48
      %s370 = sadd.s32 %s368, %s369
      %s371 = smul.addr %s370, 4
      %s372 = scalar_lea.vmem %s4, %s371
      %s373 = smul.u32 16, %s22
      %p374 = scmp.lt.s32.totalorder %s21, 1
      %s375 = scalar_select %p374, %s21, 1
      %s376 = smul.addr %s375, 8
      %s377 = scalar_lea.vmem %s5, %s376
      %v379 = vld [vmem:[%s336] sm:$0xf]
      %v380 = vld [vmem:[%s336 + $0x4] sm:$0xf]
      %v381 = vld [vmem:[%s336 + $0x8] sm:$0x1]
      %v382 = vld [vmem:[%s336 + $0xc] sm:$0xf]
      %v383 = vld [vmem:[%s336 + $0x10] sm:$0xf]
      %v384 = vld [vmem:[%s336 + $0x14] sm:$0x1]
      %v385 = vld [vmem:[%s336 + $0x18] sm:$0xf]
      %v386 = vld [vmem:[%s336 + $0x1c] sm:$0xf]
      %v387 = vld [vmem:[%s336 + $0x20] sm:$0x1]
      %v388 = vld [vmem:[%s336 + $0x24] sm:$0xf]
      %v389 = vld [vmem:[%s336 + $0x28] sm:$0xf]
      %v390 = vld [vmem:[%s336 + $0x2c] sm:$0x1]
      %v391 = vld [vmem:[%s336 + $0x30] sm:$0xf]
      %v392 = vld [vmem:[%s336 + $0x34] sm:$0xf]
      %v393 = vld [vmem:[%s336 + $0x38] sm:$0x1]
      %v394 = vld [vmem:[%s336 + $0x3c] sm:$0xf]
      %v395 = vld [vmem:[%s336 + $0x40] sm:$0xf]
      %v396 = vld [vmem:[%s336 + $0x44] sm:$0x1]
      %v397 = vld [vmem:[%s336 + $0x48] sm:$0xf]
      %v398 = vld [vmem:[%s336 + $0x4c] sm:$0xf]
      %v399 = vld [vmem:[%s336 + $0x50] sm:$0x1]
      %v400 = vld [vmem:[%s336 + $0x54] sm:$0xf]
      %v401 = vld [vmem:[%s336 + $0x58] sm:$0xf]
      %v402 = vld [vmem:[%s336 + $0x5c] sm:$0x1]
      %v403 = vld [vmem:[%s336 + $0x60] sm:$0xf]
      %v404 = vld [vmem:[%s336 + $0x64] sm:$0xf]
      %v405 = vld [vmem:[%s336 + $0x68] sm:$0x1]
      %v406 = vld [vmem:[%s336 + $0x6c] sm:$0xf]
      %v407 = vld [vmem:[%s336 + $0x70] sm:$0xf]
      %v408 = vld [vmem:[%s336 + $0x74] sm:$0x1]
      %v409 = vld [vmem:[%s336 + $0x78] sm:$0xf]
      %v410 = vld [vmem:[%s336 + $0x7c] sm:$0xf]
      %v411 = vld [vmem:[%s336 + $0x80] sm:$0x1]
      %v412 = vld [vmem:[%s336 + $0x84] sm:$0xf]
      %v413 = vld [vmem:[%s336 + $0x88] sm:$0xf]
      %v414 = vld [vmem:[%s336 + $0x8c] sm:$0x1]
      %v415 = vld [vmem:[%s336 + $0x90] sm:$0xf]
      %v416 = vld [vmem:[%s336 + $0x94] sm:$0xf]
      %v417 = vld [vmem:[%s336 + $0x98] sm:$0x1]
      %v418 = vld [vmem:[%s336 + $0x9c] sm:$0xf]
      %v419 = vld [vmem:[%s336 + $0xa0] sm:$0xf]
      %v420 = vld [vmem:[%s336 + $0xa4] sm:$0x1]
      %v421 = vld [vmem:[%s336 + $0xa8] sm:$0xf]
      %v422 = vld [vmem:[%s336 + $0xac] sm:$0xf]
      %v423 = vld [vmem:[%s336 + $0xb0] sm:$0x1]
      %v424 = vld [vmem:[%s336 + $0xb4] sm:$0xf]
      %v425 = vld [vmem:[%s336 + $0xb8] sm:$0xf]
      %v426 = vld [vmem:[%s336 + $0xbc] sm:$0x1]
      %v427 = vld [vmem:[%s351] sm:$0xf]
      %v428 = vld [vmem:[%s351 + $0x4] sm:$0xf]
      %v429 = vld [vmem:[%s351 + $0x8] sm:$0x1]
      %v430 = vld [vmem:[%s351 + $0xc] sm:$0xf]
      %v431 = vld [vmem:[%s351 + $0x10] sm:$0xf]
      %v432 = vld [vmem:[%s351 + $0x14] sm:$0x1]
      %v465 = vunpack.c.l.b16 %v379
      %v466 = vunpack.c.l.b16 %v380
      %v467 = vunpack.c.l.b16 %v382
      %v468 = vunpack.c.l.b16 %v383
      %v469 = vunpack.c.l.b16 %v385
      %v470 = vunpack.c.l.b16 %v386
      %v471 = vunpack.c.l.b16 %v388
      %v472 = vunpack.c.l.b16 %v389
      %v473 = vunpack.c.l.b16 %v391
      %v474 = vunpack.c.l.b16 %v392
      %v475 = vunpack.c.l.b16 %v394
      %v476 = vunpack.c.l.b16 %v395
      %v477 = vunpack.c.l.b16 %v397
      %v478 = vunpack.c.l.b16 %v398
      %v479 = vunpack.c.l.b16 %v400
      %v480 = vunpack.c.l.b16 %v401
      %v481 = vunpack.c.l.b16 %v403
      %v482 = vunpack.c.l.b16 %v404
      %v483 = vunpack.c.l.b16 %v406
      %v484 = vunpack.c.l.b16 %v407
      %v485 = vunpack.c.l.b16 %v409
      %v486 = vunpack.c.l.b16 %v410
      %v487 = vunpack.c.l.b16 %v412
      %v488 = vunpack.c.l.b16 %v413
      %v489 = vunpack.c.l.b16 %v415
      %v490 = vunpack.c.l.b16 %v416
      %v491 = vunpack.c.l.b16 %v418
      %v492 = vunpack.c.l.b16 %v419
      %v493 = vunpack.c.l.b16 %v421
      %v494 = vunpack.c.l.b16 %v422
      %v495 = vunpack.c.l.b16 %v424
      %v496 = vunpack.c.l.b16 %v425
      %v497 = vpack.c.b16 %v466, %v465
      %v498 = vpack.c.b16 %v468, %v467
      %v499 = vpack.c.b16 %v470, %v469
      %v500 = vpack.c.b16 %v472, %v471
      %v501 = vpack.c.b16 %v474, %v473
      %v502 = vpack.c.b16 %v476, %v475
      %v503 = vpack.c.b16 %v478, %v477
      %v504 = vpack.c.b16 %v480, %v479
      %v505 = vpack.c.b16 %v482, %v481
      %v506 = vpack.c.b16 %v484, %v483
      %v507 = vpack.c.b16 %v486, %v485
      %v508 = vpack.c.b16 %v488, %v487
      %v509 = vpack.c.b16 %v490, %v489
      %v510 = vpack.c.b16 %v492, %v491
      %v511 = vpack.c.b16 %v494, %v493
      %v512 = vpack.c.b16 %v496, %v495
      %v529 = vunpack.c.l.b16 %v381
      %v530 = vunpack.c.l.b16 %v384
      %v531 = vunpack.c.l.b16 %v387
      %v532 = vunpack.c.l.b16 %v390
      %v533 = vunpack.c.l.b16 %v393
      %v534 = vunpack.c.l.b16 %v396
      %v535 = vunpack.c.l.b16 %v399
      %v536 = vunpack.c.l.b16 %v402
      %v537 = vunpack.c.l.b16 %v405
      %v538 = vunpack.c.l.b16 %v408
      %v539 = vunpack.c.l.b16 %v411
      %v540 = vunpack.c.l.b16 %v414
      %v541 = vunpack.c.l.b16 %v417
      %v542 = vunpack.c.l.b16 %v420
      %v543 = vunpack.c.l.b16 %v423
      %v544 = vunpack.c.l.b16 %v426
      %v545 = vpack.c.b16 %v529, %v529
      %v546 = vpack.c.b16 %v530, %v530
      %v547 = vpack.c.b16 %v531, %v531
      %v548 = vpack.c.b16 %v532, %v532
      %v549 = vpack.c.b16 %v533, %v533
      %v550 = vpack.c.b16 %v534, %v534
      %v551 = vpack.c.b16 %v535, %v535
      %v552 = vpack.c.b16 %v536, %v536
      %v553 = vpack.c.b16 %v537, %v537
      %v554 = vpack.c.b16 %v538, %v538
      %v555 = vpack.c.b16 %v539, %v539
      %v556 = vpack.c.b16 %v540, %v540
      %v557 = vpack.c.b16 %v541, %v541
      %v558 = vpack.c.b16 %v542, %v542
      %v559 = vpack.c.b16 %v543, %v543
      %v560 = vpack.c.b16 %v544, %v544
      %vm561 = vsmask.f32 7424
      %v563 = vshrl.u32 %v497, 16
      %v565 = vshll.u32 %v497, 16
      %v567 = vrot.slane %v565, 1
      %v568 = vor.u32 %v563, %v567
      %v570 = vshll.u32 %v545, 16
      %v572 = vrot.slane %v570, 1
      %v573 = vsel %vm561, %v568, %v572
      %v575 = vshrl.u32 %v498, 16
      %v577 = vshll.u32 %v498, 16
      %v579 = vrot.slane %v577, 1
      %v580 = vor.u32 %v575, %v579
      %v582 = vshll.u32 %v546, 16
      %v584 = vrot.slane %v582, 1
      %v585 = vsel %vm561, %v580, %v584
      %v587 = vshrl.u32 %v499, 16
      %v589 = vshll.u32 %v499, 16
      %v591 = vrot.slane %v589, 1
      %v592 = vor.u32 %v587, %v591
      %v594 = vshll.u32 %v547, 16
      %v596 = vrot.slane %v594, 1
      %v597 = vsel %vm561, %v592, %v596
      %v599 = vshrl.u32 %v500, 16
      %v601 = vshll.u32 %v500, 16
      %v603 = vrot.slane %v601, 1
      %v604 = vor.u32 %v599, %v603
      %v606 = vshll.u32 %v548, 16
      %v608 = vrot.slane %v606, 1
      %v609 = vsel %vm561, %v604, %v608
      %v611 = vshrl.u32 %v501, 16
      %v613 = vshll.u32 %v501, 16
      %v615 = vrot.slane %v613, 1
      %v616 = vor.u32 %v611, %v615
      %v618 = vshll.u32 %v549, 16
      %v620 = vrot.slane %v618, 1
      %v621 = vsel %vm561, %v616, %v620
      %v623 = vshrl.u32 %v502, 16
      %v625 = vshll.u32 %v502, 16
      %v627 = vrot.slane %v625, 1
      %v628 = vor.u32 %v623, %v627
      %v630 = vshll.u32 %v550, 16
      %v632 = vrot.slane %v630, 1
      %v633 = vsel %vm561, %v628, %v632
      %v635 = vshrl.u32 %v503, 16
      %v637 = vshll.u32 %v503, 16
      %v639 = vrot.slane %v637, 1
      %v640 = vor.u32 %v635, %v639
      %v642 = vshll.u32 %v551, 16
      %v644 = vrot.slane %v642, 1
      %v645 = vsel %vm561, %v640, %v644
      %v647 = vshrl.u32 %v504, 16
      %v649 = vshll.u32 %v504, 16
      %v651 = vrot.slane %v649, 1
      %v652 = vor.u32 %v647, %v651
      %v654 = vshll.u32 %v552, 16
      %v656 = vrot.slane %v654, 1
      %v657 = vsel %vm561, %v652, %v656
      %v659 = vshrl.u32 %v505, 16
      %v661 = vshll.u32 %v505, 16
      %v663 = vrot.slane %v661, 1
      %v664 = vor.u32 %v659, %v663
      %v666 = vshll.u32 %v553, 16
      %v668 = vrot.slane %v666, 1
      %v669 = vsel %vm561, %v664, %v668
      %v671 = vshrl.u32 %v506, 16
      %v673 = vshll.u32 %v506, 16
      %v675 = vrot.slane %v673, 1
      %v676 = vor.u32 %v671, %v675
      %v678 = vshll.u32 %v554, 16
      %v680 = vrot.slane %v678, 1
      %v681 = vsel %vm561, %v676, %v680
      %v683 = vshrl.u32 %v507, 16
      %v685 = vshll.u32 %v507, 16
      %v687 = vrot.slane %v685, 1
      %v688 = vor.u32 %v683, %v687
      %v690 = vshll.u32 %v555, 16
      %v692 = vrot.slane %v690, 1
      %v693 = vsel %vm561, %v688, %v692
      %v695 = vshrl.u32 %v508, 16
      %v697 = vshll.u32 %v508, 16
      %v699 = vrot.slane %v697, 1
      %v700 = vor.u32 %v695, %v699
      %v702 = vshll.u32 %v556, 16
      %v704 = vrot.slane %v702, 1
      %v705 = vsel %vm561, %v700, %v704
      %v707 = vshrl.u32 %v509, 16
      %v709 = vshll.u32 %v509, 16
      %v711 = vrot.slane %v709, 1
      %v712 = vor.u32 %v707, %v711
      %v714 = vshll.u32 %v557, 16
      %v716 = vrot.slane %v714, 1
      %v717 = vsel %vm561, %v712, %v716
      %v719 = vshrl.u32 %v510, 16
      %v721 = vshll.u32 %v510, 16
      %v723 = vrot.slane %v721, 1
      %v724 = vor.u32 %v719, %v723
      %v726 = vshll.u32 %v558, 16
      %v728 = vrot.slane %v726, 1
      %v729 = vsel %vm561, %v724, %v728
      %v731 = vshrl.u32 %v511, 16
      %v733 = vshll.u32 %v511, 16
      %v735 = vrot.slane %v733, 1
      %v736 = vor.u32 %v731, %v735
      %v738 = vshll.u32 %v559, 16
      %v740 = vrot.slane %v738, 1
      %v741 = vsel %vm561, %v736, %v740
      %v743 = vshrl.u32 %v512, 16
      %v745 = vshll.u32 %v512, 16
      %v747 = vrot.slane %v745, 1
      %v748 = vor.u32 %v743, %v747
      %v750 = vshll.u32 %v560, 16
      %v752 = vrot.slane %v750, 1
      %v753 = vsel %vm561, %v748, %v752
      %754 = vrot.lane.b32.xlu0 %v573, 8
      %v755 = vpop.permute.xlu0 %754
      %756 = vrot.lane.b32.xlu0 %v585, 8
      %v757 = vpop.permute.xlu0 %756
      %758 = vrot.lane.b32.xlu0 %v597, 8
      %v759 = vpop.permute.xlu0 %758
      %760 = vrot.lane.b32.xlu0 %v609, 8
      %v761 = vpop.permute.xlu0 %760
      %762 = vrot.lane.b32.xlu0 %v621, 8
      %v763 = vpop.permute.xlu0 %762
      %764 = vrot.lane.b32.xlu0 %v633, 8
      %v765 = vpop.permute.xlu0 %764
      %766 = vrot.lane.b32.xlu0 %v645, 8
      %v767 = vpop.permute.xlu0 %766
      %768 = vrot.lane.b32.xlu0 %v657, 8
      %v769 = vpop.permute.xlu0 %768
      %770 = vrot.lane.b32.xlu0 %v669, 8
      %v771 = vpop.permute.xlu0 %770
      %772 = vrot.lane.b32.xlu0 %v681, 8
      %v773 = vpop.permute.xlu0 %772
      %774 = vrot.lane.b32.xlu0 %v693, 8
      %v775 = vpop.permute.xlu0 %774
      %776 = vrot.lane.b32.xlu0 %v705, 8
      %v777 = vpop.permute.xlu0 %776
      %778 = vrot.lane.b32.xlu0 %v717, 8
      %v779 = vpop.permute.xlu0 %778
      %780 = vrot.lane.b32.xlu0 %v729, 8
      %v781 = vpop.permute.xlu0 %780
      %782 = vrot.lane.b32.xlu0 %v741, 8
      %v783 = vpop.permute.xlu0 %782
      %784 = vrot.lane.b32.xlu0 %v753, 8
      %v785 = vpop.permute.xlu0 %784
      %vm786 = vcmask 1046528
      %v787 = vrot.slane %v497, 1
      %v788 = vrot.slane %v545, 1
      %v789 = vsel %vm786, %v787, %v788
      %v790 = vrot.slane %v498, 1
      %v791 = vrot.slane %v546, 1
      %v792 = vsel %vm786, %v790, %v791
      %v793 = vrot.slane %v499, 1
      %v794 = vrot.slane %v547, 1
      %v795 = vsel %vm786, %v793, %v794
      %v796 = vrot.slane %v500, 1
      %v797 = vrot.slane %v548, 1
      %v798 = vsel %vm786, %v796, %v797
      %v799 = vrot.slane %v501, 1
      %v800 = vrot.slane %v549, 1
      %v801 = vsel %vm786, %v799, %v800
      %v802 = vrot.slane %v502, 1
      %v803 = vrot.slane %v550, 1
      %v804 = vsel %vm786, %v802, %v803
      %v805 = vrot.slane %v503, 1
      %v806 = vrot.slane %v551, 1
      %v807 = vsel %vm786, %v805, %v806
      %v808 = vrot.slane %v504, 1
      %v809 = vrot.slane %v552, 1
      %v810 = vsel %vm786, %v808, %v809
      %v811 = vrot.slane %v505, 1
      %v812 = vrot.slane %v553, 1
      %v813 = vsel %vm786, %v811, %v812
      %v814 = vrot.slane %v506, 1
      %v815 = vrot.slane %v554, 1
      %v816 = vsel %vm786, %v814, %v815
      %v817 = vrot.slane %v507, 1
      %v818 = vrot.slane %v555, 1
      %v819 = vsel %vm786, %v817, %v818
      %v820 = vrot.slane %v508, 1
      %v821 = vrot.slane %v556, 1
      %v822 = vsel %vm786, %v820, %v821
      %v823 = vrot.slane %v509, 1
      %v824 = vrot.slane %v557, 1
      %v825 = vsel %vm786, %v823, %v824
      %v826 = vrot.slane %v510, 1
      %v827 = vrot.slane %v558, 1
      %v828 = vsel %vm786, %v826, %v827
      %v829 = vrot.slane %v511, 1
      %v830 = vrot.slane %v559, 1
      %v831 = vsel %vm786, %v829, %v830
      %v832 = vrot.slane %v512, 1
      %v833 = vrot.slane %v560, 1
      %v834 = vsel %vm786, %v832, %v833
      %835 = vrot.lane.b32.xlu0 %v789, 16
      %v836 = vpop.permute.xlu0 %835
      %837 = vrot.lane.b32.xlu0 %v792, 16
      %v838 = vpop.permute.xlu0 %837
      %839 = vrot.lane.b32.xlu0 %v795, 16
      %v840 = vpop.permute.xlu0 %839
      %841 = vrot.lane.b32.xlu0 %v798, 16
      %v842 = vpop.permute.xlu0 %841
      %843 = vrot.lane.b32.xlu0 %v801, 16
      %v844 = vpop.permute.xlu0 %843
      %845 = vrot.lane.b32.xlu0 %v804, 16
      %v846 = vpop.permute.xlu0 %845
      %847 = vrot.lane.b32.xlu0 %v807, 16
      %v848 = vpop.permute.xlu0 %847
      %849 = vrot.lane.b32.xlu0 %v810, 16
      %v850 = vpop.permute.xlu0 %849
      %851 = vrot.lane.b32.xlu0 %v813, 16
      %v852 = vpop.permute.xlu0 %851
      %853 = vrot.lane.b32.xlu0 %v816, 16
      %v854 = vpop.permute.xlu0 %853
      %855 = vrot.lane.b32.xlu0 %v819, 16
      %v856 = vpop.permute.xlu0 %855
      %857 = vrot.lane.b32.xlu0 %v822, 16
      %v858 = vpop.permute.xlu0 %857
      %859 = vrot.lane.b32.xlu0 %v825, 16
      %v860 = vpop.permute.xlu0 %859
      %861 = vrot.lane.b32.xlu0 %v828, 16
      %v862 = vpop.permute.xlu0 %861
      %863 = vrot.lane.b32.xlu0 %v831, 16
      %v864 = vpop.permute.xlu0 %863
      %865 = vrot.lane.b32.xlu0 %v834, 16
      %v866 = vpop.permute.xlu0 %865
      %v869 = vunpack.c.l.b16 %v427
      %v870 = vunpack.c.l.b16 %v428
      %v871 = vpack.c.b16 %v870, %v869
      %872 = vrot.lane.b32.xlu0 %v498, 24
      %v873 = vpop.permute.xlu0 %872
      %874 = vrot.lane.b32.xlu0 %v499, 24
      %v875 = vpop.permute.xlu0 %874
      %876 = vrot.lane.b32.xlu0 %v500, 24
      %v877 = vpop.permute.xlu0 %876
      %878 = vrot.lane.b32.xlu0 %v501, 24
      %v879 = vpop.permute.xlu0 %878
      %880 = vrot.lane.b32.xlu0 %v502, 24
      %v881 = vpop.permute.xlu0 %880
      %882 = vrot.lane.b32.xlu0 %v503, 24
      %v883 = vpop.permute.xlu0 %882
      %884 = vrot.lane.b32.xlu0 %v504, 24
      %v885 = vpop.permute.xlu0 %884
      %886 = vrot.lane.b32.xlu0 %v505, 24
      %v887 = vpop.permute.xlu0 %886
      %888 = vrot.lane.b32.xlu0 %v506, 24
      %v889 = vpop.permute.xlu0 %888
      %890 = vrot.lane.b32.xlu0 %v507, 24
      %v891 = vpop.permute.xlu0 %890
      %892 = vrot.lane.b32.xlu0 %v508, 24
      %v893 = vpop.permute.xlu0 %892
      %894 = vrot.lane.b32.xlu0 %v509, 24
      %v895 = vpop.permute.xlu0 %894
      %896 = vrot.lane.b32.xlu0 %v510, 24
      %v897 = vpop.permute.xlu0 %896
      %898 = vrot.lane.b32.xlu0 %v511, 24
      %v899 = vpop.permute.xlu0 %898
      %900 = vrot.lane.b32.xlu0 %v512, 24
      %v901 = vpop.permute.xlu0 %900
      %902 = vrot.lane.b32.xlu0 %v871, 24
      %v903 = vpop.permute.xlu0 %902
      %v905 = vunpack.c.l.b16 %v429
      %v906 = vpack.c.b16 %v905, %v905
      %v908 = vshrl.u32 %v871, 16
      %v910 = vshll.u32 %v871, 16
      %v912 = vrot.slane %v910, 1
      %v913 = vor.u32 %v908, %v912
      %v915 = vshll.u32 %v906, 16
      %v917 = vrot.slane %v915, 1
      %v918 = vsel %vm561, %v913, %v917
      %919 = vrot.lane.b32.xlu0 %v585, 32
      %v920 = vpop.permute.xlu0 %919
      %921 = vrot.lane.b32.xlu0 %v597, 32
      %v922 = vpop.permute.xlu0 %921
      %923 = vrot.lane.b32.xlu0 %v609, 32
      %v924 = vpop.permute.xlu0 %923
      %925 = vrot.lane.b32.xlu0 %v621, 32
      %v926 = vpop.permute.xlu0 %925
      %927 = vrot.lane.b32.xlu0 %v633, 32
      %v928 = vpop.permute.xlu0 %927
      %929 = vrot.lane.b32.xlu0 %v645, 32
      %v930 = vpop.permute.xlu0 %929
      %931 = vrot.lane.b32.xlu0 %v657, 32
      %v932 = vpop.permute.xlu0 %931
      %933 = vrot.lane.b32.xlu0 %v669, 32
      %v934 = vpop.permute.xlu0 %933
      %935 = vrot.lane.b32.xlu0 %v681, 32
      %v936 = vpop.permute.xlu0 %935
      %937 = vrot.lane.b32.xlu0 %v693, 32
      %v938 = vpop.permute.xlu0 %937
      %939 = vrot.lane.b32.xlu0 %v705, 32
      %v940 = vpop.permute.xlu0 %939
      %941 = vrot.lane.b32.xlu0 %v717, 32
      %v942 = vpop.permute.xlu0 %941
      %943 = vrot.lane.b32.xlu0 %v729, 32
      %v944 = vpop.permute.xlu0 %943
      %945 = vrot.lane.b32.xlu0 %v741, 32
      %v946 = vpop.permute.xlu0 %945
      %947 = vrot.lane.b32.xlu0 %v753, 32
      %v948 = vpop.permute.xlu0 %947
      %949 = vrot.lane.b32.xlu0 %v918, 32
      %v950 = vpop.permute.xlu0 %949
      %v951 = vrot.slane %v871, 1
      %v952 = vrot.slane %v906, 1
      %v953 = vsel %vm786, %v951, %v952
      %954 = vrot.lane.b32.xlu0 %v792, 40
      %v955 = vpop.permute.xlu0 %954
      %956 = vrot.lane.b32.xlu0 %v795, 40
      %v957 = vpop.permute.xlu0 %956
      %958 = vrot.lane.b32.xlu0 %v798, 40
      %v959 = vpop.permute.xlu0 %958
      %960 = vrot.lane.b32.xlu0 %v801, 40
      %v961 = vpop.permute.xlu0 %960
      %962 = vrot.lane.b32.xlu0 %v804, 40
      %v963 = vpop.permute.xlu0 %962
      %964 = vrot.lane.b32.xlu0 %v807, 40
      %v965 = vpop.permute.xlu0 %964
      %966 = vrot.lane.b32.xlu0 %v810, 40
      %v967 = vpop.permute.xlu0 %966
      %968 = vrot.lane.b32.xlu0 %v813, 40
      %v969 = vpop.permute.xlu0 %968
      %970 = vrot.lane.b32.xlu0 %v816, 40
      %v971 = vpop.permute.xlu0 %970
      %972 = vrot.lane.b32.xlu0 %v819, 40
      %v973 = vpop.permute.xlu0 %972
      %974 = vrot.lane.b32.xlu0 %v822, 40
      %v975 = vpop.permute.xlu0 %974
      %976 = vrot.lane.b32.xlu0 %v825, 40
      %v977 = vpop.permute.xlu0 %976
      %978 = vrot.lane.b32.xlu0 %v828, 40
      %v979 = vpop.permute.xlu0 %978
      %980 = vrot.lane.b32.xlu0 %v831, 40
      %v981 = vpop.permute.xlu0 %980
      %982 = vrot.lane.b32.xlu0 %v834, 40
      %v983 = vpop.permute.xlu0 %982
      %984 = vrot.lane.b32.xlu0 %v953, 40
      %v985 = vpop.permute.xlu0 %984
      %v988 = vunpack.c.l.b16 %v430
      %v989 = vunpack.c.l.b16 %v431
      %v990 = vpack.c.b16 %v989, %v988
      %991 = vrot.lane.b32.xlu0 %v499, 48
      %v992 = vpop.permute.xlu0 %991
      %993 = vrot.lane.b32.xlu0 %v500, 48
      %v994 = vpop.permute.xlu0 %993
      %995 = vrot.lane.b32.xlu0 %v501, 48
      %v996 = vpop.permute.xlu0 %995
      %997 = vrot.lane.b32.xlu0 %v502, 48
      %v998 = vpop.permute.xlu0 %997
      %999 = vrot.lane.b32.xlu0 %v503, 48
      %v1000 = vpop.permute.xlu0 %999
      %1001 = vrot.lane.b32.xlu0 %v504, 48
      %v1002 = vpop.permute.xlu0 %1001
      %1003 = vrot.lane.b32.xlu0 %v505, 48
      %v1004 = vpop.permute.xlu0 %1003
      %1005 = vrot.lane.b32.xlu0 %v506, 48
      %v1006 = vpop.permute.xlu0 %1005
      %1007 = vrot.lane.b32.xlu0 %v507, 48
      %v1008 = vpop.permute.xlu0 %1007
      %1009 = vrot.lane.b32.xlu0 %v508, 48
      %v1010 = vpop.permute.xlu0 %1009
      %1011 = vrot.lane.b32.xlu0 %v509, 48
      %v1012 = vpop.permute.xlu0 %1011
      %1013 = vrot.lane.b32.xlu0 %v510, 48
      %v1014 = vpop.permute.xlu0 %1013
      %1015 = vrot.lane.b32.xlu0 %v511, 48
      %v1016 = vpop.permute.xlu0 %1015
      %1017 = vrot.lane.b32.xlu0 %v512, 48
      %v1018 = vpop.permute.xlu0 %1017
      %1019 = vrot.lane.b32.xlu0 %v871, 48
      %v1020 = vpop.permute.xlu0 %1019
      %1021 = vrot.lane.b32.xlu0 %v990, 48
      %v1022 = vpop.permute.xlu0 %1021
      %v1024 = vunpack.c.l.b16 %v432
      %v1025 = vpack.c.b16 %v1024, %v1024
      %v1027 = vshrl.u32 %v990, 16
      %v1029 = vshll.u32 %v990, 16
      %v1031 = vrot.slane %v1029, 1
      %v1032 = vor.u32 %v1027, %v1031
      %v1034 = vshll.u32 %v1025, 16
      %v1036 = vrot.slane %v1034, 1
      %v1037 = vsel %vm561, %v1032, %v1036
      %1038 = vrot.lane.b32.xlu0 %v597, 56
      %v1039 = vpop.permute.xlu0 %1038
      %1040 = vrot.lane.b32.xlu0 %v609, 56
      %v1041 = vpop.permute.xlu0 %1040
      %1042 = vrot.lane.b32.xlu0 %v621, 56
      %v1043 = vpop.permute.xlu0 %1042
      %1044 = vrot.lane.b32.xlu0 %v633, 56
      %v1045 = vpop.permute.xlu0 %1044
      %1046 = vrot.lane.b32.xlu0 %v645, 56
      %v1047 = vpop.permute.xlu0 %1046
      %1048 = vrot.lane.b32.xlu0 %v657, 56
      %v1049 = vpop.permute.xlu0 %1048
      %1050 = vrot.lane.b32.xlu0 %v669, 56
      %v1051 = vpop.permute.xlu0 %1050
      %1052 = vrot.lane.b32.xlu0 %v681, 56
      %v1053 = vpop.permute.xlu0 %1052
      %1054 = vrot.lane.b32.xlu0 %v693, 56
      %v1055 = vpop.permute.xlu0 %1054
      %1056 = vrot.lane.b32.xlu0 %v705, 56
      %v1057 = vpop.permute.xlu0 %1056
      %1058 = vrot.lane.b32.xlu0 %v717, 56
      %v1059 = vpop.permute.xlu0 %1058
      %1060 = vrot.lane.b32.xlu0 %v729, 56
      %v1061 = vpop.permute.xlu0 %1060
      %1062 = vrot.lane.b32.xlu0 %v741, 56
      %v1063 = vpop.permute.xlu0 %1062
      %1064 = vrot.lane.b32.xlu0 %v753, 56
      %v1065 = vpop.permute.xlu0 %1064
      %1066 = vrot.lane.b32.xlu0 %v918, 56
      %v1067 = vpop.permute.xlu0 %1066
      %1068 = vrot.lane.b32.xlu0 %v1037, 56
      %v1069 = vpop.permute.xlu0 %1068
      %v1070 = vrot.slane %v990, 1
      %v1071 = vrot.slane %v1025, 1
      %v1072 = vsel %vm786, %v1070, %v1071
      %1073 = vrot.lane.b32.xlu0 %v795, 64
      %v1074 = vpop.permute.xlu0 %1073
      %1075 = vrot.lane.b32.xlu0 %v798, 64
      %v1076 = vpop.permute.xlu0 %1075
      %1077 = vrot.lane.b32.xlu0 %v801, 64
      %v1078 = vpop.permute.xlu0 %1077
      %1079 = vrot.lane.b32.xlu0 %v804, 64
      %v1080 = vpop.permute.xlu0 %1079
      %1081 = vrot.lane.b32.xlu0 %v807, 64
      %v1082 = vpop.permute.xlu0 %1081
      %1083 = vrot.lane.b32.xlu0 %v810, 64
      %v1084 = vpop.permute.xlu0 %1083
      %1085 = vrot.lane.b32.xlu0 %v813, 64
      %v1086 = vpop.permute.xlu0 %1085
      %1087 = vrot.lane.b32.xlu0 %v816, 64
      %v1088 = vpop.permute.xlu0 %1087
      %1089 = vrot.lane.b32.xlu0 %v819, 64
      %v1090 = vpop.permute.xlu0 %1089
      %1091 = vrot.lane.b32.xlu0 %v822, 64
      %v1092 = vpop.permute.xlu0 %1091
      %1093 = vrot.lane.b32.xlu0 %v825, 64
      %v1094 = vpop.permute.xlu0 %1093
      %1095 = vrot.lane.b32.xlu0 %v828, 64
      %v1096 = vpop.permute.xlu0 %1095
      %1097 = vrot.lane.b32.xlu0 %v831, 64
      %v1098 = vpop.permute.xlu0 %1097
      %1099 = vrot.lane.b32.xlu0 %v834, 64
      %v1100 = vpop.permute.xlu0 %1099
      %1101 = vrot.lane.b32.xlu0 %v953, 64
      %v1102 = vpop.permute.xlu0 %1101
      %1103 = vrot.lane.b32.xlu0 %v1072, 64
      %v1104 = vpop.permute.xlu0 %1103
      %vm1105 = vcmask 64512
      %v1107 = vsel %vm1105, %v497, %v755
      %v1109 = vsel %vm1105, %v498, %v757
      %v1111 = vsel %vm1105, %v499, %v759
      %v1113 = vsel %vm1105, %v500, %v761
      %v1115 = vsel %vm1105, %v501, %v763
      %v1117 = vsel %vm1105, %v502, %v765
      %v1119 = vsel %vm1105, %v503, %v767
      %v1121 = vsel %vm1105, %v504, %v769
      %v1123 = vsel %vm1105, %v505, %v771
      %v1125 = vsel %vm1105, %v506, %v773
      %v1127 = vsel %vm1105, %v507, %v775
      %v1129 = vsel %vm1105, %v508, %v777
      %v1131 = vsel %vm1105, %v509, %v779
      %v1133 = vsel %vm1105, %v510, %v781
      %v1135 = vsel %vm1105, %v511, %v783
      %v1137 = vsel %vm1105, %v512, %v785
      %vm1138 = vcmask 130048
      %v1140 = vsel %vm1138, %v1107, %v836
      %v1142 = vsel %vm1138, %v1109, %v838
      %v1144 = vsel %vm1138, %v1111, %v840
      %v1146 = vsel %vm1138, %v1113, %v842
      %v1148 = vsel %vm1138, %v1115, %v844
      %v1150 = vsel %vm1138, %v1117, %v846
      %v1152 = vsel %vm1138, %v1119, %v848
      %v1154 = vsel %vm1138, %v1121, %v850
      %v1156 = vsel %vm1138, %v1123, %v852
      %v1158 = vsel %vm1138, %v1125, %v854
      %v1160 = vsel %vm1138, %v1127, %v856
      %v1162 = vsel %vm1138, %v1129, %v858
      %v1164 = vsel %vm1138, %v1131, %v860
      %v1166 = vsel %vm1138, %v1133, %v862
      %v1168 = vsel %vm1138, %v1135, %v864
      %v1170 = vsel %vm1138, %v1137, %v866
      %vm1171 = vcmask 195584
      %v1173 = vsel %vm1171, %v1140, %v873
      %v1175 = vsel %vm1171, %v1142, %v875
      %v1177 = vsel %vm1171, %v1144, %v877
      %v1179 = vsel %vm1171, %v1146, %v879
      %v1181 = vsel %vm1171, %v1148, %v881
      %v1183 = vsel %vm1171, %v1150, %v883
      %v1185 = vsel %vm1171, %v1152, %v885
      %v1187 = vsel %vm1171, %v1154, %v887
      %v1189 = vsel %vm1171, %v1156, %v889
      %v1191 = vsel %vm1171, %v1158, %v891
      %v1193 = vsel %vm1171, %v1160, %v893
      %v1195 = vsel %vm1171, %v1162, %v895
      %v1197 = vsel %vm1171, %v1164, %v897
      %v1199 = vsel %vm1171, %v1166, %v899
      %v1201 = vsel %vm1171, %v1168, %v901
      %v1203 = vsel %vm1171, %v1170, %v903
      %vm1204 = vcmask 261120
      %v1206 = vsel %vm1204, %v1173, %v920
      %v1208 = vsel %vm1204, %v1175, %v922
      %v1210 = vsel %vm1204, %v1177, %v924
      %v1212 = vsel %vm1204, %v1179, %v926
      %v1214 = vsel %vm1204, %v1181, %v928
      %v1216 = vsel %vm1204, %v1183, %v930
      %v1218 = vsel %vm1204, %v1185, %v932
      %v1220 = vsel %vm1204, %v1187, %v934
      %v1222 = vsel %vm1204, %v1189, %v936
      %v1224 = vsel %vm1204, %v1191, %v938
      %v1226 = vsel %vm1204, %v1193, %v940
      %v1228 = vsel %vm1204, %v1195, %v942
      %v1230 = vsel %vm1204, %v1197, %v944
      %v1232 = vsel %vm1204, %v1199, %v946
      %v1234 = vsel %vm1204, %v1201, %v948
      %v1236 = vsel %vm1204, %v1203, %v950
      %vm1237 = vcmask 326656
      %v1239 = vsel %vm1237, %v1206, %v955
      %v1241 = vsel %vm1237, %v1208, %v957
      %v1243 = vsel %vm1237, %v1210, %v959
      %v1245 = vsel %vm1237, %v1212, %v961
      %v1247 = vsel %vm1237, %v1214, %v963
      %v1249 = vsel %vm1237, %v1216, %v965
      %v1251 = vsel %vm1237, %v1218, %v967
      %v1253 = vsel %vm1237, %v1220, %v969
      %v1255 = vsel %vm1237, %v1222, %v971
      %v1257 = vsel %vm1237, %v1224, %v973
      %v1259 = vsel %vm1237, %v1226, %v975
      %v1261 = vsel %vm1237, %v1228, %v977
      %v1263 = vsel %vm1237, %v1230, %v979
      %v1265 = vsel %vm1237, %v1232, %v981
      %v1267 = vsel %vm1237, %v1234, %v983
      %v1269 = vsel %vm1237, %v1236, %v985
      %vm1270 = vcmask 392192
      %v1272 = vsel %vm1270, %v1239, %v992
      %v1274 = vsel %vm1270, %v1241, %v994
      %v1276 = vsel %vm1270, %v1243, %v996
      %v1278 = vsel %vm1270, %v1245, %v998
      %v1280 = vsel %vm1270, %v1247, %v1000
      %v1282 = vsel %vm1270, %v1249, %v1002
      %v1284 = vsel %vm1270, %v1251, %v1004
      %v1286 = vsel %vm1270, %v1253, %v1006
      %v1288 = vsel %vm1270, %v1255, %v1008
      %v1290 = vsel %vm1270, %v1257, %v1010
      %v1292 = vsel %vm1270, %v1259, %v1012
      %v1294 = vsel %vm1270, %v1261, %v1014
      %v1296 = vsel %vm1270, %v1263, %v1016
      %v1298 = vsel %vm1270, %v1265, %v1018
      %v1300 = vsel %vm1270, %v1267, %v1020
      %v1302 = vsel %vm1270, %v1269, %v1022
      %vm1303 = vcmask 457728
      %v1305 = vsel %vm1303, %v1272, %v1039
      %v1307 = vsel %vm1303, %v1274, %v1041
      %v1309 = vsel %vm1303, %v1276, %v1043
      %v1311 = vsel %vm1303, %v1278, %v1045
      %v1313 = vsel %vm1303, %v1280, %v1047
      %v1315 = vsel %vm1303, %v1282, %v1049
      %v1317 = vsel %vm1303, %v1284, %v1051
      %v1319 = vsel %vm1303, %v1286, %v1053
      %v1321 = vsel %vm1303, %v1288, %v1055
      %v1323 = vsel %vm1303, %v1290, %v1057
      %v1325 = vsel %vm1303, %v1292, %v1059
      %v1327 = vsel %vm1303, %v1294, %v1061
      %v1329 = vsel %vm1303, %v1296, %v1063
      %v1331 = vsel %vm1303, %v1298, %v1065
      %v1333 = vsel %vm1303, %v1300, %v1067
      %v1335 = vsel %vm1303, %v1302, %v1069
      %vm1336 = vcmask 523264
      %v1338 = vsel %vm1336, %v1305, %v1074
      %v1340 = vsel %vm1336, %v1307, %v1076
      %v1342 = vsel %vm1336, %v1309, %v1078
      %v1344 = vsel %vm1336, %v1311, %v1080
      %v1346 = vsel %vm1336, %v1313, %v1082
      %v1348 = vsel %vm1336, %v1315, %v1084
      %v1350 = vsel %vm1336, %v1317, %v1086
      %v1352 = vsel %vm1336, %v1319, %v1088
      %v1354 = vsel %vm1336, %v1321, %v1090
      %v1356 = vsel %vm1336, %v1323, %v1092
      %v1358 = vsel %vm1336, %v1325, %v1094
      %v1360 = vsel %vm1336, %v1327, %v1096
      %v1362 = vsel %vm1336, %v1329, %v1098
      %v1364 = vsel %vm1336, %v1331, %v1100
      %v1366 = vsel %vm1336, %v1333, %v1102
      %v1368 = vsel %vm1336, %v1335, %v1104
      %v1369 = vld [vmem:[%s3] sm:$0xf]
      %v1370 = vld [vmem:[%s3 + $0x4] sm:$0xf]
      %v1371 = vld [vmem:[%s3 + $0x8] sm:$0xf]
      %v1372 = vld [vmem:[%s3 + $0xc] sm:$0xf]
      %v1373 = vld [vmem:[%s3 + $0x10] sm:$0xf]
      %v1374 = vld [vmem:[%s3 + $0x14] sm:$0xf]
      %v1375 = vld [vmem:[%s3 + $0x18] sm:$0xf]
      %v1376 = vld [vmem:[%s3 + $0x1c] sm:$0xf]
      %v1377 = vld [vmem:[%s3 + $0x20] sm:$0xf]
      %v1387 = vunpack.c.l.b16 %v1369
      %v1388 = vunpack.c.l.b16 %v1370
      %v1389 = vunpack.c.l.b16 %v1371
      %v1390 = vunpack.c.l.b16 %v1372
      %v1391 = vunpack.c.l.b16 %v1373
      %v1392 = vunpack.c.l.b16 %v1374
      %v1393 = vunpack.c.l.b16 %v1375
      %v1394 = vunpack.c.l.b16 %v1376
      %v1395 = vunpack.c.l.b16 %v1377
      %v1396 = vpack.c.b16 %v1388, %v1387
      %v1397 = vpack.c.b16 %v1390, %v1389
      %v1398 = vpack.c.b16 %v1392, %v1391
      %v1399 = vpack.c.b16 %v1394, %v1393
      %v1400 = vpack.c.b16 %v1395, %v1395
      %vm1405 = vcmask 588800
      %v1406 = vsel %vm1405, %v1338, 0
      %v1408 = vsel %vm1405, %v1340, 0
      %v1410 = vsel %vm1405, %v1342, 0
      %v1412 = vsel %vm1405, %v1344, 0
      %v1414 = vsel %vm1405, %v1346, 0
      %v1416 = vsel %vm1405, %v1348, 0
      %v1418 = vsel %vm1405, %v1350, 0
      %v1420 = vsel %vm1405, %v1352, 0
      %v1422 = vsel %vm1405, %v1354, 0
      %v1424 = vsel %vm1405, %v1356, 0
      %v1426 = vsel %vm1405, %v1358, 0
      %v1428 = vsel %vm1405, %v1360, 0
      %v1430 = vsel %vm1405, %v1362, 0
      %v1432 = vsel %vm1405, %v1364, 0
      %v1434 = vsel %vm1405, %v1366, 0
      %v1436 = vsel %vm1405, %v1368, 0
      %vm1438 = vcmask 1043456
      %v1440 = vsel %vm1438, %v1400, 0
      %1442 = vmatprep.subr.bf16.mxu0 0
      %1443 = vmatpush1.bf16.msra.mxu0 0
      %1444 = vmatprep.subr.bf16.mxu0 0
      %1445 = vmatpush1.bf16.msra.mxu0 0
      %1446 = vmatprep.subr.bf16.mxu0 0
      %1447 = vmatpush1.bf16.msra.mxu0 0
      %1448 = vmatprep.subr.bf16.mxu0 0
      %1449 = vmatpush1.bf16.msra.mxu0 %v1440
      %1450 = vmatprep.subr.bf16.mxu0 0
      %1451 = vmatpush1.bf16.msra.mxu0 %v1399
      %1452 = vmatprep.subr.bf16.mxu0 0
      %1453 = vmatpush1.bf16.msra.mxu0 %v1398
      %1454 = vmatprep.subr.bf16.mxu0 0
      %1455 = vmatpush1.bf16.msra.mxu0 %v1397
      %1456 = vmatprep.subr.bf16.mxu0 0
      %1457 = vmatpush1.bf16.msra.mxu0 %v1396
      %1458 = vmatprep.subr.bf16.mxu0 0
      %1459 = vmatpush2.bf16.msra.mxu0 0
      %1460 = vmatprep.subr.bf16.mxu0 0
      %1461 = vmatpush2.bf16.msra.mxu0 0
      %1462 = vmatprep.subr.bf16.mxu0 0
      %1463 = vmatpush2.bf16.msra.mxu0 0
      %1464 = vmatprep.subr.bf16.mxu0 0
      %1465 = vmatpush2.bf16.msra.mxu0 0
      %1466 = vmatprep.subr.bf16.mxu0 0
      %1467 = vmatpush2.bf16.msra.mxu0 0
      %1468 = vmatprep.subr.bf16.mxu0 0
      %1469 = vmatpush2.bf16.msra.mxu0 0
      %1470 = vmatprep.subr.bf16.mxu0 0
      %1471 = vmatpush2.bf16.msra.mxu0 0
      %1472 = vmatprep.subr.bf16.mxu0 0
      %1473 = vmatpush2.bf16.msra.mxu0 0
      %1474 = vmatprep.mubr.bf16.mxu0 0
      %1475 = vmatmul.mubr.bf16.gmra.mxu0 %v1406
      %v1476 = vpop.f32.mrf.mxu0
      %v1477 = vadd.f32 0.0, %v1476
      %v1478 = vpop.f32.mrf.mxu0
      %v1479 = vpop.f32.mrf.mxu0
      %v1480 = vadd.f32 0.0, %v1479
      %v1481 = vpop.f32.mrf.mxu0
      %1482 = vmatprep.mubr.bf16.mxu0 0
      %1483 = vmatmul.mubr.bf16.gmra.mxu0 %v1408
      %v1484 = vpop.f32.mrf.mxu0
      %v1485 = vadd.f32 0.0, %v1484
      %v1486 = vpop.f32.mrf.mxu0
      %v1487 = vpop.f32.mrf.mxu0
      %v1488 = vadd.f32 0.0, %v1487
      %v1489 = vpop.f32.mrf.mxu0
      %1490 = vmatprep.mubr.bf16.mxu0 0
      %1491 = vmatmul.mubr.bf16.gmra.mxu0 %v1410
      %v1492 = vpop.f32.mrf.mxu0
      %v1493 = vadd.f32 0.0, %v1492
      %v1494 = vpop.f32.mrf.mxu0
      %v1495 = vpop.f32.mrf.mxu0
      %v1496 = vadd.f32 0.0, %v1495
      %v1497 = vpop.f32.mrf.mxu0
      %1498 = vmatprep.mubr.bf16.mxu0 0
      %1499 = vmatmul.mubr.bf16.gmra.mxu0 %v1412
      %v1500 = vpop.f32.mrf.mxu0
      %v1501 = vadd.f32 0.0, %v1500
      %v1502 = vpop.f32.mrf.mxu0
      %v1503 = vpop.f32.mrf.mxu0
      %v1504 = vadd.f32 0.0, %v1503
      %v1505 = vpop.f32.mrf.mxu0
      %1506 = vmatprep.mubr.bf16.mxu0 0
      %1507 = vmatmul.mubr.bf16.gmra.mxu0 %v1414
      %v1508 = vpop.f32.mrf.mxu0
      %v1509 = vadd.f32 0.0, %v1508
      %v1510 = vpop.f32.mrf.mxu0
      %v1511 = vpop.f32.mrf.mxu0
      %v1512 = vadd.f32 0.0, %v1511
      %v1513 = vpop.f32.mrf.mxu0
      %1514 = vmatprep.mubr.bf16.mxu0 0
      %1515 = vmatmul.mubr.bf16.gmra.mxu0 %v1416
      %v1516 = vpop.f32.mrf.mxu0
      %v1517 = vadd.f32 0.0, %v1516
      %v1518 = vpop.f32.mrf.mxu0
      %v1519 = vpop.f32.mrf.mxu0
      %v1520 = vadd.f32 0.0, %v1519
      %v1521 = vpop.f32.mrf.mxu0
      %1522 = vmatprep.mubr.bf16.mxu0 0
      %1523 = vmatmul.mubr.bf16.gmra.mxu0 %v1418
      %v1524 = vpop.f32.mrf.mxu0
      %v1525 = vadd.f32 0.0, %v1524
      %v1526 = vpop.f32.mrf.mxu0
      %v1527 = vpop.f32.mrf.mxu0
      %v1528 = vadd.f32 0.0, %v1527
      %v1529 = vpop.f32.mrf.mxu0
      %1530 = vmatprep.mubr.bf16.mxu0 0
      %1531 = vmatmul.mubr.bf16.gmra.mxu0 %v1420
      %v1532 = vpop.f32.mrf.mxu0
      %v1533 = vadd.f32 0.0, %v1532
      %v1534 = vpop.f32.mrf.mxu0
      %v1535 = vpop.f32.mrf.mxu0
      %v1536 = vadd.f32 0.0, %v1535
      %v1537 = vpop.f32.mrf.mxu0
      %1538 = vmatprep.mubr.bf16.mxu0 0
      %1539 = vmatmul.mubr.bf16.gmra.mxu0 %v1422
      %v1540 = vpop.f32.mrf.mxu0
      %v1541 = vadd.f32 0.0, %v1540
      %v1542 = vpop.f32.mrf.mxu0
      %v1543 = vpop.f32.mrf.mxu0
      %v1544 = vadd.f32 0.0, %v1543
      %v1545 = vpop.f32.mrf.mxu0
      %1546 = vmatprep.mubr.bf16.mxu0 0
      %1547 = vmatmul.mubr.bf16.gmra.mxu0 %v1424
      %v1548 = vpop.f32.mrf.mxu0
      %v1549 = vadd.f32 0.0, %v1548
      %v1550 = vpop.f32.mrf.mxu0
      %v1551 = vpop.f32.mrf.mxu0
      %v1552 = vadd.f32 0.0, %v1551
      %v1553 = vpop.f32.mrf.mxu0
      %1554 = vmatprep.mubr.bf16.mxu0 0
      %1555 = vmatmul.mubr.bf16.gmra.mxu0 %v1426
      %v1556 = vpop.f32.mrf.mxu0
      %v1557 = vadd.f32 0.0, %v1556
      %v1558 = vpop.f32.mrf.mxu0
      %v1559 = vpop.f32.mrf.mxu0
      %v1560 = vadd.f32 0.0, %v1559
      %v1561 = vpop.f32.mrf.mxu0
      %1562 = vmatprep.mubr.bf16.mxu0 0
      %1563 = vmatmul.mubr.bf16.gmra.mxu0 %v1428
      %v1564 = vpop.f32.mrf.mxu0
      %v1565 = vadd.f32 0.0, %v1564
      %v1566 = vpop.f32.mrf.mxu0
      %v1567 = vpop.f32.mrf.mxu0
      %v1568 = vadd.f32 0.0, %v1567
      %v1569 = vpop.f32.mrf.mxu0
      %1570 = vmatprep.mubr.bf16.mxu0 0
      %1571 = vmatmul.mubr.bf16.gmra.mxu0 %v1430
      %v1572 = vpop.f32.mrf.mxu0
      %v1573 = vadd.f32 0.0, %v1572
      %v1574 = vpop.f32.mrf.mxu0
      %v1575 = vpop.f32.mrf.mxu0
      %v1576 = vadd.f32 0.0, %v1575
      %v1577 = vpop.f32.mrf.mxu0
      %1578 = vmatprep.mubr.bf16.mxu0 0
      %1579 = vmatmul.mubr.bf16.gmra.mxu0 %v1432
      %v1580 = vpop.f32.mrf.mxu0
      %v1581 = vadd.f32 0.0, %v1580
      %v1582 = vpop.f32.mrf.mxu0
      %v1583 = vpop.f32.mrf.mxu0
      %v1584 = vadd.f32 0.0, %v1583
      %v1585 = vpop.f32.mrf.mxu0
      %1586 = vmatprep.mubr.bf16.mxu0 0
      %1587 = vmatmul.mubr.bf16.gmra.mxu0 %v1434
      %v1588 = vpop.f32.mrf.mxu0
      %v1589 = vadd.f32 0.0, %v1588
      %v1590 = vpop.f32.mrf.mxu0
      %v1591 = vpop.f32.mrf.mxu0
      %v1592 = vadd.f32 0.0, %v1591
      %v1593 = vpop.f32.mrf.mxu0
      %1594 = vmatprep.mubr.bf16.mxu0 0
      %1595 = vmatmul.mubr.bf16.gmra.mxu0 %v1436
      %v1596 = vpop.f32.mrf.mxu0
      %v1597 = vadd.f32 0.0, %v1596
      %v1598 = vpop.f32.mrf.mxu0
      %v1599 = vpop.f32.mrf.mxu0
      %v1600 = vadd.f32 0.0, %v1599
      %v1601 = vpop.f32.mrf.mxu0
      %1602 = vdwg.mxu0
      %v1603 = vld [vmem:[%s361] sm:$0xff]
      %v1604 = vld [vmem:[%s361 + $0x8] sm:$0xff]
      %v1605 = vld [vmem:[%s361 + $0x10] sm:$0xff]
      %v1606 = vld [vmem:[%s361 + $0x18] sm:$0xff]
      %v1607 = vld [vmem:[%s361 + $0x20] sm:$0xff]
      %v1608 = vld [vmem:[%s361 + $0x28] sm:$0xff]
      %v1609 = vld [vmem:[%s361 + $0x30] sm:$0xff]
      %v1610 = vld [vmem:[%s361 + $0x38] sm:$0xff]
      %v1611 = vld [vmem:[%s361 + $0x40] sm:$0xff]
      %v1612 = vld [vmem:[%s361 + $0x48] sm:$0xff]
      %v1613 = vld [vmem:[%s361 + $0x50] sm:$0xff]
      %v1614 = vld [vmem:[%s361 + $0x58] sm:$0xff]
      %v1615 = vld [vmem:[%s361 + $0x60] sm:$0xff]
      %v1616 = vld [vmem:[%s361 + $0x68] sm:$0xff]
      %v1617 = vld [vmem:[%s361 + $0x70] sm:$0xff]
      %v1618 = vld [vmem:[%s361 + $0x78] sm:$0xff]
      %v1619 = vld [vmem:[%s361 + $0x80] sm:$0xff]
      %v1620 = vld [vmem:[%s361 + $0x88] sm:$0xff]
      %v1621 = vld [vmem:[%s361 + $0x90] sm:$0xff]
      %v1622 = vld [vmem:[%s361 + $0x98] sm:$0xff]
      %v1623 = vld [vmem:[%s361 + $0xa0] sm:$0xff]
      %v1624 = vld [vmem:[%s361 + $0xa8] sm:$0xff]
      %v1625 = vld [vmem:[%s361 + $0xb0] sm:$0xff]
      %v1626 = vld [vmem:[%s361 + $0xb8] sm:$0xff]
      %v1627 = vld [vmem:[%s361 + $0xc0] sm:$0xff]
      %v1628 = vld [vmem:[%s361 + $0xc8] sm:$0xff]
      %v1629 = vld [vmem:[%s361 + $0xd0] sm:$0xff]
      %v1630 = vld [vmem:[%s361 + $0xd8] sm:$0xff]
      %v1631 = vld [vmem:[%s361 + $0xe0] sm:$0xff]
      %v1632 = vld [vmem:[%s361 + $0xe8] sm:$0xff]
      %v1633 = vld [vmem:[%s361 + $0xf0] sm:$0xff]
      %v1634 = vld [vmem:[%s361 + $0xf8] sm:$0xff]
      %vm1635 = vcmp.eq.f32.partialorder %v1603, 0.0
      %vm1636 = vcmp.eq.f32.partialorder %v1604, 0.0
      %vm1637 = vcmp.eq.f32.partialorder %v1605, 0.0
      %vm1638 = vcmp.eq.f32.partialorder %v1606, 0.0
      %vm1639 = vcmp.eq.f32.partialorder %v1607, 0.0
      %vm1640 = vcmp.eq.f32.partialorder %v1608, 0.0
      %vm1641 = vcmp.eq.f32.partialorder %v1609, 0.0
      %vm1642 = vcmp.eq.f32.partialorder %v1610, 0.0
      %vm1643 = vcmp.eq.f32.partialorder %v1611, 0.0
      %vm1644 = vcmp.eq.f32.partialorder %v1612, 0.0
      %vm1645 = vcmp.eq.f32.partialorder %v1613, 0.0
      %vm1646 = vcmp.eq.f32.partialorder %v1614, 0.0
      %vm1647 = vcmp.eq.f32.partialorder %v1615, 0.0
      %vm1648 = vcmp.eq.f32.partialorder %v1616, 0.0
      %vm1649 = vcmp.eq.f32.partialorder %v1617, 0.0
      %vm1650 = vcmp.eq.f32.partialorder %v1618, 0.0
      %vm1651 = vcmp.eq.f32.partialorder %v1619, 0.0
      %vm1652 = vcmp.eq.f32.partialorder %v1620, 0.0
      %vm1653 = vcmp.eq.f32.partialorder %v1621, 0.0
      %vm1654 = vcmp.eq.f32.partialorder %v1622, 0.0
      %vm1655 = vcmp.eq.f32.partialorder %v1623, 0.0
      %vm1656 = vcmp.eq.f32.partialorder %v1624, 0.0
      %vm1657 = vcmp.eq.f32.partialorder %v1625, 0.0
      %vm1658 = vcmp.eq.f32.partialorder %v1626, 0.0
      %vm1659 = vcmp.eq.f32.partialorder %v1627, 0.0
      %vm1660 = vcmp.eq.f32.partialorder %v1628, 0.0
      %vm1661 = vcmp.eq.f32.partialorder %v1629, 0.0
      %vm1662 = vcmp.eq.f32.partialorder %v1630, 0.0
      %vm1663 = vcmp.eq.f32.partialorder %v1631, 0.0
      %vm1664 = vcmp.eq.f32.partialorder %v1632, 0.0
      %vm1665 = vcmp.eq.f32.partialorder %v1633, 0.0
      %vm1666 = vcmp.eq.f32.partialorder %v1634, 0.0
      %v1667 = vsel %vm1635, 1.0, %v1603
      %v1668 = vsel %vm1636, 1.0, %v1604
      %v1669 = vsel %vm1637, 1.0, %v1605
      %v1670 = vsel %vm1638, 1.0, %v1606
      %v1671 = vsel %vm1639, 1.0, %v1607
      %v1672 = vsel %vm1640, 1.0, %v1608
      %v1673 = vsel %vm1641, 1.0, %v1609
      %v1674 = vsel %vm1642, 1.0, %v1610
      %v1675 = vsel %vm1643, 1.0, %v1611
      %v1676 = vsel %vm1644, 1.0, %v1612
      %v1677 = vsel %vm1645, 1.0, %v1613
      %v1678 = vsel %vm1646, 1.0, %v1614
      %v1679 = vsel %vm1647, 1.0, %v1615
      %v1680 = vsel %vm1648, 1.0, %v1616
      %v1681 = vsel %vm1649, 1.0, %v1617
      %v1682 = vsel %vm1650, 1.0, %v1618
      %v1683 = vsel %vm1651, 1.0, %v1619
      %v1684 = vsel %vm1652, 1.0, %v1620
      %v1685 = vsel %vm1653, 1.0, %v1621
      %v1686 = vsel %vm1654, 1.0, %v1622
      %v1687 = vsel %vm1655, 1.0, %v1623
      %v1688 = vsel %vm1656, 1.0, %v1624
      %v1689 = vsel %vm1657, 1.0, %v1625
      %v1690 = vsel %vm1658, 1.0, %v1626
      %v1691 = vsel %vm1659, 1.0, %v1627
      %v1692 = vsel %vm1660, 1.0, %v1628
      %v1693 = vsel %vm1661, 1.0, %v1629
      %v1694 = vsel %vm1662, 1.0, %v1630
      %v1695 = vsel %vm1663, 1.0, %v1631
      %v1696 = vsel %vm1664, 1.0, %v1632
      %v1697 = vsel %vm1665, 1.0, %v1633
      %v1698 = vsel %vm1666, 1.0, %v1634
      %v1699 = vrcp.pop %v1667
      %v1700 = vrcp.pop %v1668
      %v1701 = vrcp.pop %v1669
      %v1702 = vrcp.pop %v1670
      %v1703 = vrcp.pop %v1671
      %v1704 = vrcp.pop %v1672
      %v1705 = vrcp.pop %v1673
      %v1706 = vrcp.pop %v1674
      %v1707 = vrcp.pop %v1675
      %v1708 = vrcp.pop %v1676
      %v1709 = vrcp.pop %v1677
      %v1710 = vrcp.pop %v1678
      %v1711 = vrcp.pop %v1679
      %v1712 = vrcp.pop %v1680
      %v1713 = vrcp.pop %v1681
      %v1714 = vrcp.pop %v1682
      %v1715 = vrcp.pop %v1683
      %v1716 = vrcp.pop %v1684
      %v1717 = vrcp.pop %v1685
      %v1718 = vrcp.pop %v1686
      %v1719 = vrcp.pop %v1687
      %v1720 = vrcp.pop %v1688
      %v1721 = vrcp.pop %v1689
      %v1722 = vrcp.pop %v1690
      %v1723 = vrcp.pop %v1691
      %v1724 = vrcp.pop %v1692
      %v1725 = vrcp.pop %v1693
      %v1726 = vrcp.pop %v1694
      %v1727 = vrcp.pop %v1695
      %v1728 = vrcp.pop %v1696
      %v1729 = vrcp.pop %v1697
      %v1730 = vrcp.pop %v1698
      %1732 = vset.pattern.permute.xlu0 0
      %1733 = vperm.xlu0 %1732, %v1699
      %v1734 = vpop.permute.xlu0 %1733
      %1737 = vset.pattern.permute.xlu0 0
      %1738 = vperm.xlu0 %1737, %v1700
      %v1739 = vpop.permute.xlu0 %1738
      %1742 = vset.pattern.permute.xlu0 0
      %1743 = vperm.xlu0 %1742, %v1701
      %v1744 = vpop.permute.xlu0 %1743
      %1747 = vset.pattern.permute.xlu0 0
      %1748 = vperm.xlu0 %1747, %v1702
      %v1749 = vpop.permute.xlu0 %1748
      %1752 = vset.pattern.permute.xlu0 0
      %1753 = vperm.xlu0 %1752, %v1703
      %v1754 = vpop.permute.xlu0 %1753
      %1757 = vset.pattern.permute.xlu0 0
      %1758 = vperm.xlu0 %1757, %v1704
      %v1759 = vpop.permute.xlu0 %1758
      %1762 = vset.pattern.permute.xlu0 0
      %1763 = vperm.xlu0 %1762, %v1705
      %v1764 = vpop.permute.xlu0 %1763
      %1767 = vset.pattern.permute.xlu0 0
      %1768 = vperm.xlu0 %1767, %v1706
      %v1769 = vpop.permute.xlu0 %1768
      %1772 = vset.pattern.permute.xlu0 0
      %1773 = vperm.xlu0 %1772, %v1707
      %v1774 = vpop.permute.xlu0 %1773
      %1777 = vset.pattern.permute.xlu0 0
      %1778 = vperm.xlu0 %1777, %v1708
      %v1779 = vpop.permute.xlu0 %1778
      %1782 = vset.pattern.permute.xlu0 0
      %1783 = vperm.xlu0 %1782, %v1709
      %v1784 = vpop.permute.xlu0 %1783
      %1787 = vset.pattern.permute.xlu0 0
      %1788 = vperm.xlu0 %1787, %v1710
      %v1789 = vpop.permute.xlu0 %1788
      %1792 = vset.pattern.permute.xlu0 0
      %1793 = vperm.xlu0 %1792, %v1711
      %v1794 = vpop.permute.xlu0 %1793
      %1797 = vset.pattern.permute.xlu0 0
      %1798 = vperm.xlu0 %1797, %v1712
      %v1799 = vpop.permute.xlu0 %1798
      %1802 = vset.pattern.permute.xlu0 0
      %1803 = vperm.xlu0 %1802, %v1713
      %v1804 = vpop.permute.xlu0 %1803
      %1807 = vset.pattern.permute.xlu0 0
      %1808 = vperm.xlu0 %1807, %v1714
      %v1809 = vpop.permute.xlu0 %1808
      %1812 = vset.pattern.permute.xlu0 0
      %1813 = vperm.xlu0 %1812, %v1715
      %v1814 = vpop.permute.xlu0 %1813
      %1817 = vset.pattern.permute.xlu0 0
      %1818 = vperm.xlu0 %1817, %v1716
      %v1819 = vpop.permute.xlu0 %1818
      %1822 = vset.pattern.permute.xlu0 0
      %1823 = vperm.xlu0 %1822, %v1717
      %v1824 = vpop.permute.xlu0 %1823
      %1827 = vset.pattern.permute.xlu0 0
      %1828 = vperm.xlu0 %1827, %v1718
      %v1829 = vpop.permute.xlu0 %1828
      %1832 = vset.pattern.permute.xlu0 0
      %1833 = vperm.xlu0 %1832, %v1719
      %v1834 = vpop.permute.xlu0 %1833
      %1837 = vset.pattern.permute.xlu0 0
      %1838 = vperm.xlu0 %1837, %v1720
      %v1839 = vpop.permute.xlu0 %1838
      %1842 = vset.pattern.permute.xlu0 0
      %1843 = vperm.xlu0 %1842, %v1721
      %v1844 = vpop.permute.xlu0 %1843
      %1847 = vset.pattern.permute.xlu0 0
      %1848 = vperm.xlu0 %1847, %v1722
      %v1849 = vpop.permute.xlu0 %1848
      %1852 = vset.pattern.permute.xlu0 0
      %1853 = vperm.xlu0 %1852, %v1723
      %v1854 = vpop.permute.xlu0 %1853
      %1857 = vset.pattern.permute.xlu0 0
      %1858 = vperm.xlu0 %1857, %v1724
      %v1859 = vpop.permute.xlu0 %1858
      %1862 = vset.pattern.permute.xlu0 0
      %1863 = vperm.xlu0 %1862, %v1725
      %v1864 = vpop.permute.xlu0 %1863
      %1867 = vset.pattern.permute.xlu0 0
      %1868 = vperm.xlu0 %1867, %v1726
      %v1869 = vpop.permute.xlu0 %1868
      %1872 = vset.pattern.permute.xlu0 0
      %1873 = vperm.xlu0 %1872, %v1727
      %v1874 = vpop.permute.xlu0 %1873
      %1877 = vset.pattern.permute.xlu0 0
      %1878 = vperm.xlu0 %1877, %v1728
      %v1879 = vpop.permute.xlu0 %1878
      %1882 = vset.pattern.permute.xlu0 0
      %1883 = vperm.xlu0 %1882, %v1729
      %v1884 = vpop.permute.xlu0 %1883
      %1887 = vset.pattern.permute.xlu0 0
      %1888 = vperm.xlu0 %1887, %v1730
      %v1889 = vpop.permute.xlu0 %1888
      %v1891 = vmul.f32 %v1477, %v1734
      %v1892 = vmul.f32 %v1480, %v1739
      %v1893 = vmul.f32 %v1485, %v1744
      %v1894 = vmul.f32 %v1488, %v1749
      %v1895 = vmul.f32 %v1493, %v1754
      %v1896 = vmul.f32 %v1496, %v1759
      %v1897 = vmul.f32 %v1501, %v1764
      %v1898 = vmul.f32 %v1504, %v1769
      %v1899 = vmul.f32 %v1509, %v1774
      %v1900 = vmul.f32 %v1512, %v1779
      %v1901 = vmul.f32 %v1517, %v1784
      %v1902 = vmul.f32 %v1520, %v1789
      %v1903 = vmul.f32 %v1525, %v1794
      %v1904 = vmul.f32 %v1528, %v1799
      %v1905 = vmul.f32 %v1533, %v1804
      %v1906 = vmul.f32 %v1536, %v1809
      %v1907 = vmul.f32 %v1541, %v1814
      %v1908 = vmul.f32 %v1544, %v1819
      %v1909 = vmul.f32 %v1549, %v1824
      %v1910 = vmul.f32 %v1552, %v1829
      %v1911 = vmul.f32 %v1557, %v1834
      %v1912 = vmul.f32 %v1560, %v1839
      %v1913 = vmul.f32 %v1565, %v1844
      %v1914 = vmul.f32 %v1568, %v1849
      %v1915 = vmul.f32 %v1573, %v1854
      %v1916 = vmul.f32 %v1576, %v1859
      %v1917 = vmul.f32 %v1581, %v1864
      %v1918 = vmul.f32 %v1584, %v1869
      %v1919 = vmul.f32 %v1589, %v1874
      %v1920 = vmul.f32 %v1592, %v1879
      %v1921 = vmul.f32 %v1597, %v1884
      %v1922 = vmul.f32 %v1600, %v1889
      %v1923 = vsel %vm1635, 1, 0
      %v1924 = vsel %vm1636, 1, 0
      %v1925 = vsel %vm1637, 1, 0
      %v1926 = vsel %vm1638, 1, 0
      %v1927 = vsel %vm1639, 1, 0
      %v1928 = vsel %vm1640, 1, 0
      %v1929 = vsel %vm1641, 1, 0
      %v1930 = vsel %vm1642, 1, 0
      %v1931 = vsel %vm1643, 1, 0
      %v1932 = vsel %vm1644, 1, 0
      %v1933 = vsel %vm1645, 1, 0
      %v1934 = vsel %vm1646, 1, 0
      %v1935 = vsel %vm1647, 1, 0
      %v1936 = vsel %vm1648, 1, 0
      %v1937 = vsel %vm1649, 1, 0
      %v1938 = vsel %vm1650, 1, 0
      %v1939 = vsel %vm1651, 1, 0
      %v1940 = vsel %vm1652, 1, 0
      %v1941 = vsel %vm1653, 1, 0
      %v1942 = vsel %vm1654, 1, 0
      %v1943 = vsel %vm1655, 1, 0
      %v1944 = vsel %vm1656, 1, 0
      %v1945 = vsel %vm1657, 1, 0
      %v1946 = vsel %vm1658, 1, 0
      %v1947 = vsel %vm1659, 1, 0
      %v1948 = vsel %vm1660, 1, 0
      %v1949 = vsel %vm1661, 1, 0
      %v1950 = vsel %vm1662, 1, 0
      %v1951 = vsel %vm1663, 1, 0
      %v1952 = vsel %vm1664, 1, 0
      %v1953 = vsel %vm1665, 1, 0
      %v1954 = vsel %vm1666, 1, 0
      %1955 = vset.pattern.permute.xlu0 0
      %1956 = vperm.xlu0 %1955, %v1923
      %v1957 = vpop.permute.xlu0 %1956
      %1958 = vset.pattern.permute.xlu0 0
      %1959 = vperm.xlu0 %1958, %v1924
      %v1960 = vpop.permute.xlu0 %1959
      %1961 = vset.pattern.permute.xlu0 0
      %1962 = vperm.xlu0 %1961, %v1925
      %v1963 = vpop.permute.xlu0 %1962
      %1964 = vset.pattern.permute.xlu0 0
      %1965 = vperm.xlu0 %1964, %v1926
      %v1966 = vpop.permute.xlu0 %1965
      %1967 = vset.pattern.permute.xlu0 0
      %1968 = vperm.xlu0 %1967, %v1927
      %v1969 = vpop.permute.xlu0 %1968
      %1970 = vset.pattern.permute.xlu0 0
      %1971 = vperm.xlu0 %1970, %v1928
      %v1972 = vpop.permute.xlu0 %1971
      %1973 = vset.pattern.permute.xlu0 0
      %1974 = vperm.xlu0 %1973, %v1929
      %v1975 = vpop.permute.xlu0 %1974
      %1976 = vset.pattern.permute.xlu0 0
      %1977 = vperm.xlu0 %1976, %v1930
      %v1978 = vpop.permute.xlu0 %1977
      %1979 = vset.pattern.permute.xlu0 0
      %1980 = vperm.xlu0 %1979, %v1931
      %v1981 = vpop.permute.xlu0 %1980
      %1982 = vset.pattern.permute.xlu0 0
      %1983 = vperm.xlu0 %1982, %v1932
      %v1984 = vpop.permute.xlu0 %1983
      %1985 = vset.pattern.permute.xlu0 0
      %1986 = vperm.xlu0 %1985, %v1933
      %v1987 = vpop.permute.xlu0 %1986
      %1988 = vset.pattern.permute.xlu0 0
      %1989 = vperm.xlu0 %1988, %v1934
      %v1990 = vpop.permute.xlu0 %1989
      %1991 = vset.pattern.permute.xlu0 0
      %1992 = vperm.xlu0 %1991, %v1935
      %v1993 = vpop.permute.xlu0 %1992
      %1994 = vset.pattern.permute.xlu0 0
      %1995 = vperm.xlu0 %1994, %v1936
      %v1996 = vpop.permute.xlu0 %1995
      %1997 = vset.pattern.permute.xlu0 0
      %1998 = vperm.xlu0 %1997, %v1937
      %v1999 = vpop.permute.xlu0 %1998
      %2000 = vset.pattern.permute.xlu0 0
      %2001 = vperm.xlu0 %2000, %v1938
      %v2002 = vpop.permute.xlu0 %2001
      %2003 = vset.pattern.permute.xlu0 0
      %2004 = vperm.xlu0 %2003, %v1939
      %v2005 = vpop.permute.xlu0 %2004
      %2006 = vset.pattern.permute.xlu0 0
      %2007 = vperm.xlu0 %2006, %v1940
      %v2008 = vpop.permute.xlu0 %2007
      %2009 = vset.pattern.permute.xlu0 0
      %2010 = vperm.xlu0 %2009, %v1941
      %v2011 = vpop.permute.xlu0 %2010
      %2012 = vset.pattern.permute.xlu0 0
      %2013 = vperm.xlu0 %2012, %v1942
      %v2014 = vpop.permute.xlu0 %2013
      %2015 = vset.pattern.permute.xlu0 0
      %2016 = vperm.xlu0 %2015, %v1943
      %v2017 = vpop.permute.xlu0 %2016
      %2018 = vset.pattern.permute.xlu0 0
      %2019 = vperm.xlu0 %2018, %v1944
      %v2020 = vpop.permute.xlu0 %2019
      %2021 = vset.pattern.permute.xlu0 0
      %2022 = vperm.xlu0 %2021, %v1945
      %v2023 = vpop.permute.xlu0 %2022
      %2024 = vset.pattern.permute.xlu0 0
      %2025 = vperm.xlu0 %2024, %v1946
      %v2026 = vpop.permute.xlu0 %2025
      %2027 = vset.pattern.permute.xlu0 0
      %2028 = vperm.xlu0 %2027, %v1947
      %v2029 = vpop.permute.xlu0 %2028
      %2030 = vset.pattern.permute.xlu0 0
      %2031 = vperm.xlu0 %2030, %v1948
      %v2032 = vpop.permute.xlu0 %2031
      %2033 = vset.pattern.permute.xlu0 0
      %2034 = vperm.xlu0 %2033, %v1949
      %v2035 = vpop.permute.xlu0 %2034
      %2036 = vset.pattern.permute.xlu0 0
      %2037 = vperm.xlu0 %2036, %v1950
      %v2038 = vpop.permute.xlu0 %2037
      %2039 = vset.pattern.permute.xlu0 0
      %2040 = vperm.xlu0 %2039, %v1951
      %v2041 = vpop.permute.xlu0 %2040
      %2042 = vset.pattern.permute.xlu0 0
      %2043 = vperm.xlu0 %2042, %v1952
      %v2044 = vpop.permute.xlu0 %2043
      %2045 = vset.pattern.permute.xlu0 0
      %2046 = vperm.xlu0 %2045, %v1953
      %v2047 = vpop.permute.xlu0 %2046
      %2048 = vset.pattern.permute.xlu0 0
      %2049 = vperm.xlu0 %2048, %v1954
      %v2050 = vpop.permute.xlu0 %2049
      %vm2051 = vcmp.eq.s32.totalorder %v1957, 1
      %vm2052 = vcmp.eq.s32.totalorder %v1960, 1
      %vm2053 = vcmp.eq.s32.totalorder %v1963, 1
      %vm2054 = vcmp.eq.s32.totalorder %v1966, 1
      %vm2055 = vcmp.eq.s32.totalorder %v1969, 1
      %vm2056 = vcmp.eq.s32.totalorder %v1972, 1
      %vm2057 = vcmp.eq.s32.totalorder %v1975, 1
      %vm2058 = vcmp.eq.s32.totalorder %v1978, 1
      %vm2059 = vcmp.eq.s32.totalorder %v1981, 1
      %vm2060 = vcmp.eq.s32.totalorder %v1984, 1
      %vm2061 = vcmp.eq.s32.totalorder %v1987, 1
      %vm2062 = vcmp.eq.s32.totalorder %v1990, 1
      %vm2063 = vcmp.eq.s32.totalorder %v1993, 1
      %vm2064 = vcmp.eq.s32.totalorder %v1996, 1
      %vm2065 = vcmp.eq.s32.totalorder %v1999, 1
      %vm2066 = vcmp.eq.s32.totalorder %v2002, 1
      %vm2067 = vcmp.eq.s32.totalorder %v2005, 1
      %vm2068 = vcmp.eq.s32.totalorder %v2008, 1
      %vm2069 = vcmp.eq.s32.totalorder %v2011, 1
      %vm2070 = vcmp.eq.s32.totalorder %v2014, 1
      %vm2071 = vcmp.eq.s32.totalorder %v2017, 1
      %vm2072 = vcmp.eq.s32.totalorder %v2020, 1
      %vm2073 = vcmp.eq.s32.totalorder %v2023, 1
      %vm2074 = vcmp.eq.s32.totalorder %v2026, 1
      %vm2075 = vcmp.eq.s32.totalorder %v2029, 1
      %vm2076 = vcmp.eq.s32.totalorder %v2032, 1
      %vm2077 = vcmp.eq.s32.totalorder %v2035, 1
      %vm2078 = vcmp.eq.s32.totalorder %v2038, 1
      %vm2079 = vcmp.eq.s32.totalorder %v2041, 1
      %vm2080 = vcmp.eq.s32.totalorder %v2044, 1
      %vm2081 = vcmp.eq.s32.totalorder %v2047, 1
      %vm2082 = vcmp.eq.s32.totalorder %v2050, 1
      %v2083 = vsel %vm2051, 0.0, %v1891
      %v2084 = vsel %vm2052, 0.0, %v1892
      %v2085 = vsel %vm2053, 0.0, %v1893
      %v2086 = vsel %vm2054, 0.0, %v1894
      %v2087 = vsel %vm2055, 0.0, %v1895
      %v2088 = vsel %vm2056, 0.0, %v1896
      %v2089 = vsel %vm2057, 0.0, %v1897
      %v2090 = vsel %vm2058, 0.0, %v1898
      %v2091 = vsel %vm2059, 0.0, %v1899
      %v2092 = vsel %vm2060, 0.0, %v1900
      %v2093 = vsel %vm2061, 0.0, %v1901
      %v2094 = vsel %vm2062, 0.0, %v1902
      %v2095 = vsel %vm2063, 0.0, %v1903
      %v2096 = vsel %vm2064, 0.0, %v1904
      %v2097 = vsel %vm2065, 0.0, %v1905
      %v2098 = vsel %vm2066, 0.0, %v1906
      %v2099 = vsel %vm2067, 0.0, %v1907
      %v2100 = vsel %vm2068, 0.0, %v1908
      %v2101 = vsel %vm2069, 0.0, %v1909
      %v2102 = vsel %vm2070, 0.0, %v1910
      %v2103 = vsel %vm2071, 0.0, %v1911
      %v2104 = vsel %vm2072, 0.0, %v1912
      %v2105 = vsel %vm2073, 0.0, %v1913
      %v2106 = vsel %vm2074, 0.0, %v1914
      %v2107 = vsel %vm2075, 0.0, %v1915
      %v2108 = vsel %vm2076, 0.0, %v1916
      %v2109 = vsel %vm2077, 0.0, %v1917
      %v2110 = vsel %vm2078, 0.0, %v1918
      %v2111 = vsel %vm2079, 0.0, %v1919
      %v2112 = vsel %vm2080, 0.0, %v1920
      %v2113 = vsel %vm2081, 0.0, %v1921
      %v2114 = vsel %vm2082, 0.0, %v1922
      %v2115 = vpack.c.bf16 %v2084, %v2083
      %v2116 = vpack.c.bf16 %v2086, %v2085
      %v2117 = vpack.c.bf16 %v2088, %v2087
      %v2118 = vpack.c.bf16 %v2090, %v2089
      %v2119 = vpack.c.bf16 %v2092, %v2091
      %v2120 = vpack.c.bf16 %v2094, %v2093
      %v2121 = vpack.c.bf16 %v2096, %v2095
      %v2122 = vpack.c.bf16 %v2098, %v2097
      %v2123 = vpack.c.bf16 %v2100, %v2099
      %v2124 = vpack.c.bf16 %v2102, %v2101
      %v2125 = vpack.c.bf16 %v2104, %v2103
      %v2126 = vpack.c.bf16 %v2106, %v2105
      %v2127 = vpack.c.bf16 %v2108, %v2107
      %v2128 = vpack.c.bf16 %v2110, %v2109
      %v2129 = vpack.c.bf16 %v2112, %v2111
      %v2130 = vpack.c.bf16 %v2114, %v2113
      %v2132 = vshrl.u32 %v2115, 16
      %v2134 = vrot.slane %v2132, 7
      %v2135 = vshll.u32 %v2115, 16
      %v2137 = vor.u32 %v2134, %v2135
      %v2139 = vshrl.u32 %v2116, 16
      %v2141 = vrot.slane %v2139, 7
      %v2142 = vshll.u32 %v2116, 16
      %v2144 = vor.u32 %v2141, %v2142
      %v2146 = vshrl.u32 %v2117, 16
      %v2148 = vrot.slane %v2146, 7
      %v2149 = vshll.u32 %v2117, 16
      %v2151 = vor.u32 %v2148, %v2149
      %v2153 = vshrl.u32 %v2118, 16
      %v2155 = vrot.slane %v2153, 7
      %v2156 = vshll.u32 %v2118, 16
      %v2158 = vor.u32 %v2155, %v2156
      %v2160 = vshrl.u32 %v2119, 16
      %v2162 = vrot.slane %v2160, 7
      %v2163 = vshll.u32 %v2119, 16
      %v2165 = vor.u32 %v2162, %v2163
      %v2167 = vshrl.u32 %v2120, 16
      %v2169 = vrot.slane %v2167, 7
      %v2170 = vshll.u32 %v2120, 16
      %v2172 = vor.u32 %v2169, %v2170
      %v2174 = vshrl.u32 %v2121, 16
      %v2176 = vrot.slane %v2174, 7
      %v2177 = vshll.u32 %v2121, 16
      %v2179 = vor.u32 %v2176, %v2177
      %v2181 = vshrl.u32 %v2122, 16
      %v2183 = vrot.slane %v2181, 7
      %v2184 = vshll.u32 %v2122, 16
      %v2186 = vor.u32 %v2183, %v2184
      %v2188 = vshrl.u32 %v2123, 16
      %v2190 = vrot.slane %v2188, 7
      %v2191 = vshll.u32 %v2123, 16
      %v2193 = vor.u32 %v2190, %v2191
      %v2195 = vshrl.u32 %v2124, 16
      %v2197 = vrot.slane %v2195, 7
      %v2198 = vshll.u32 %v2124, 16
      %v2200 = vor.u32 %v2197, %v2198
      %v2202 = vshrl.u32 %v2125, 16
      %v2204 = vrot.slane %v2202, 7
      %v2205 = vshll.u32 %v2125, 16
      %v2207 = vor.u32 %v2204, %v2205
      %v2209 = vshrl.u32 %v2126, 16
      %v2211 = vrot.slane %v2209, 7
      %v2212 = vshll.u32 %v2126, 16
      %v2214 = vor.u32 %v2211, %v2212
      %v2216 = vshrl.u32 %v2127, 16
      %v2218 = vrot.slane %v2216, 7
      %v2219 = vshll.u32 %v2127, 16
      %v2221 = vor.u32 %v2218, %v2219
      %v2223 = vshrl.u32 %v2128, 16
      %v2225 = vrot.slane %v2223, 7
      %v2226 = vshll.u32 %v2128, 16
      %v2228 = vor.u32 %v2225, %v2226
      %v2230 = vshrl.u32 %v2129, 16
      %v2232 = vrot.slane %v2230, 7
      %v2233 = vshll.u32 %v2129, 16
      %v2235 = vor.u32 %v2232, %v2233
      %v2237 = vshrl.u32 %v2130, 16
      %v2239 = vrot.slane %v2237, 7
      %v2240 = vshll.u32 %v2130, 16
      %v2242 = vor.u32 %v2239, %v2240
      %vm2275 = vcmask 1040384
      %vm2276 = vsmask.f32 256
      %vm2277 = vmand %vm2275, %vm2276
      %v2278 = vsel %vm2277, 0, %v2137
      %v2279 = vsel %vm2277, 0, %v2144
      %v2280 = vsel %vm2277, 0, %v2151
      %v2281 = vsel %vm2277, 0, %v2158
      %v2282 = vsel %vm2277, 0, %v2165
      %v2283 = vsel %vm2277, 0, %v2172
      %v2284 = vsel %vm2277, 0, %v2179
      %v2285 = vsel %vm2277, 0, %v2186
      %v2286 = vsel %vm2277, 0, %v2193
      %v2287 = vsel %vm2277, 0, %v2200
      %v2288 = vsel %vm2277, 0, %v2207
      %v2289 = vsel %vm2277, 0, %v2214
      %v2290 = vsel %vm2277, 0, %v2221
      %v2291 = vsel %vm2277, 0, %v2228
      %v2292 = vsel %vm2277, 0, %v2235
      %v2293 = vsel %vm2277, 0, %v2242
      %v2294 = vsel %vm2277, %v2134, 0
      %v2295 = vsel %vm2277, %v2141, 0
      %v2296 = vsel %vm2277, %v2148, 0
      %v2297 = vsel %vm2277, %v2155, 0
      %v2298 = vsel %vm2277, %v2162, 0
      %v2299 = vsel %vm2277, %v2169, 0
      %v2300 = vsel %vm2277, %v2176, 0
      %v2301 = vsel %vm2277, %v2183, 0
      %v2302 = vsel %vm2277, %v2190, 0
      %v2303 = vsel %vm2277, %v2197, 0
      %v2304 = vsel %vm2277, %v2204, 0
      %v2305 = vsel %vm2277, %v2211, 0
      %v2306 = vsel %vm2277, %v2218, 0
      %v2307 = vsel %vm2277, %v2225, 0
      %v2308 = vsel %vm2277, %v2232, 0
      %v2309 = vsel %vm2277, %v2239, 0
      %v2342 = vunpack.c.l.b16 %v2278
      %v2343 = vunpack.c.h.b16 %v2278
      %v2344 = vunpack.c.l.b16 %v2294
      %v2345 = vunpack.c.l.b16 %v2279
      %v2346 = vunpack.c.h.b16 %v2279
      %v2347 = vunpack.c.l.b16 %v2295
      %v2348 = vunpack.c.l.b16 %v2280
      %v2349 = vunpack.c.h.b16 %v2280
      %v2350 = vunpack.c.l.b16 %v2296
      %v2351 = vunpack.c.l.b16 %v2281
      %v2352 = vunpack.c.h.b16 %v2281
      %v2353 = vunpack.c.l.b16 %v2297
      %v2354 = vunpack.c.l.b16 %v2282
      %v2355 = vunpack.c.h.b16 %v2282
      %v2356 = vunpack.c.l.b16 %v2298
      %v2357 = vunpack.c.l.b16 %v2283
      %v2358 = vunpack.c.h.b16 %v2283
      %v2359 = vunpack.c.l.b16 %v2299
      %v2360 = vunpack.c.l.b16 %v2284
      %v2361 = vunpack.c.h.b16 %v2284
      %v2362 = vunpack.c.l.b16 %v2300
      %v2363 = vunpack.c.l.b16 %v2285
      %v2364 = vunpack.c.h.b16 %v2285
      %v2365 = vunpack.c.l.b16 %v2301
      %v2366 = vunpack.c.l.b16 %v2286
      %v2367 = vunpack.c.h.b16 %v2286
      %v2368 = vunpack.c.l.b16 %v2302
      %v2369 = vunpack.c.l.b16 %v2287
      %v2370 = vunpack.c.h.b16 %v2287
      %v2371 = vunpack.c.l.b16 %v2303
      %v2372 = vunpack.c.l.b16 %v2288
      %v2373 = vunpack.c.h.b16 %v2288
      %v2374 = vunpack.c.l.b16 %v2304
      %v2375 = vunpack.c.l.b16 %v2289
      %v2376 = vunpack.c.h.b16 %v2289
      %v2377 = vunpack.c.l.b16 %v2305
      %v2378 = vunpack.c.l.b16 %v2290
      %v2379 = vunpack.c.h.b16 %v2290
      %v2380 = vunpack.c.l.b16 %v2306
      %v2381 = vunpack.c.l.b16 %v2291
      %v2382 = vunpack.c.h.b16 %v2291
      %v2383 = vunpack.c.l.b16 %v2307
      %v2384 = vunpack.c.l.b16 %v2292
      %v2385 = vunpack.c.h.b16 %v2292
      %v2386 = vunpack.c.l.b16 %v2308
      %v2387 = vunpack.c.l.b16 %v2293
      %v2388 = vunpack.c.h.b16 %v2293
      %v2389 = vunpack.c.l.b16 %v2309
      %v2390 = vpack.c.b16 %v2342, %v2342
      %v2391 = vpack.c.b16 %v2343, %v2343
      %v2392 = vpack.c.b16 %v2344, %v2344
      %v2393 = vpack.c.b16 %v2345, %v2345
      %v2394 = vpack.c.b16 %v2346, %v2346
      %v2395 = vpack.c.b16 %v2347, %v2347
      %v2396 = vpack.c.b16 %v2348, %v2348
      %v2397 = vpack.c.b16 %v2349, %v2349
      %v2398 = vpack.c.b16 %v2350, %v2350
      %v2399 = vpack.c.b16 %v2351, %v2351
      %v2400 = vpack.c.b16 %v2352, %v2352
      %v2401 = vpack.c.b16 %v2353, %v2353
      %v2402 = vpack.c.b16 %v2354, %v2354
      %v2403 = vpack.c.b16 %v2355, %v2355
      %v2404 = vpack.c.b16 %v2356, %v2356
      %v2405 = vpack.c.b16 %v2357, %v2357
      %v2406 = vpack.c.b16 %v2358, %v2358
      %v2407 = vpack.c.b16 %v2359, %v2359
      %v2408 = vpack.c.b16 %v2360, %v2360
      %v2409 = vpack.c.b16 %v2361, %v2361
      %v2410 = vpack.c.b16 %v2362, %v2362
      %v2411 = vpack.c.b16 %v2363, %v2363
      %v2412 = vpack.c.b16 %v2364, %v2364
      %v2413 = vpack.c.b16 %v2365, %v2365
      %v2414 = vpack.c.b16 %v2366, %v2366
      %v2415 = vpack.c.b16 %v2367, %v2367
      %v2416 = vpack.c.b16 %v2368, %v2368
      %v2417 = vpack.c.b16 %v2369, %v2369
      %v2418 = vpack.c.b16 %v2370, %v2370
      %v2419 = vpack.c.b16 %v2371, %v2371
      %v2420 = vpack.c.b16 %v2372, %v2372
      %v2421 = vpack.c.b16 %v2373, %v2373
      %v2422 = vpack.c.b16 %v2374, %v2374
      %v2423 = vpack.c.b16 %v2375, %v2375
      %v2424 = vpack.c.b16 %v2376, %v2376
      %v2425 = vpack.c.b16 %v2377, %v2377
      %v2426 = vpack.c.b16 %v2378, %v2378
      %v2427 = vpack.c.b16 %v2379, %v2379
      %v2428 = vpack.c.b16 %v2380, %v2380
      %v2429 = vpack.c.b16 %v2381, %v2381
      %v2430 = vpack.c.b16 %v2382, %v2382
      %v2431 = vpack.c.b16 %v2383, %v2383
      %v2432 = vpack.c.b16 %v2384, %v2384
      %v2433 = vpack.c.b16 %v2385, %v2385
      %v2434 = vpack.c.b16 %v2386, %v2386
      %v2435 = vpack.c.b16 %v2387, %v2387
      %v2436 = vpack.c.b16 %v2388, %v2388
      %v2437 = vpack.c.b16 %v2389, %v2389
      %2486 = vst [vmem:[%s372] sm:$0xf] %v2390
      %2487 = vst [vmem:[%s372 + $0x4] sm:$0xf] %v2391
      %2488 = vst [vmem:[%s372 + $0x8] sm:$0x1] %v2392
      %2489 = vst [vmem:[%s372 + $0xc] sm:$0xf] %v2393
      %2490 = vst [vmem:[%s372 + $0x10] sm:$0xf] %v2394
      %2491 = vst [vmem:[%s372 + $0x14] sm:$0x1] %v2395
      %2492 = vst [vmem:[%s372 + $0x18] sm:$0xf] %v2396
      %2493 = vst [vmem:[%s372 + $0x1c] sm:$0xf] %v2397
      %2494 = vst [vmem:[%s372 + $0x20] sm:$0x1] %v2398
      %2495 = vst [vmem:[%s372 + $0x24] sm:$0xf] %v2399
      %2496 = vst [vmem:[%s372 + $0x28] sm:$0xf] %v2400
      %2497 = vst [vmem:[%s372 + $0x2c] sm:$0x1] %v2401
      %2498 = vst [vmem:[%s372 + $0x30] sm:$0xf] %v2402
      %2499 = vst [vmem:[%s372 + $0x34] sm:$0xf] %v2403
      %2500 = vst [vmem:[%s372 + $0x38] sm:$0x1] %v2404
      %2501 = vst [vmem:[%s372 + $0x3c] sm:$0xf] %v2405
      %2502 = vst [vmem:[%s372 + $0x40] sm:$0xf] %v2406
      %2503 = vst [vmem:[%s372 + $0x44] sm:$0x1] %v2407
      %2504 = vst [vmem:[%s372 + $0x48] sm:$0xf] %v2408
      %2505 = vst [vmem:[%s372 + $0x4c] sm:$0xf] %v2409
      %2506 = vst [vmem:[%s372 + $0x50] sm:$0x1] %v2410
      %2507 = vst [vmem:[%s372 + $0x54] sm:$0xf] %v2411
      %2508 = vst [vmem:[%s372 + $0x58] sm:$0xf] %v2412
      %2509 = vst [vmem:[%s372 + $0x5c] sm:$0x1] %v2413
      %2510 = vst [vmem:[%s372 + $0x60] sm:$0xf] %v2414
      %2511 = vst [vmem:[%s372 + $0x64] sm:$0xf] %v2415
      %2512 = vst [vmem:[%s372 + $0x68] sm:$0x1] %v2416
      %2513 = vst [vmem:[%s372 + $0x6c] sm:$0xf] %v2417
      %2514 = vst [vmem:[%s372 + $0x70] sm:$0xf] %v2418
      %2515 = vst [vmem:[%s372 + $0x74] sm:$0x1] %v2419
      %2516 = vst [vmem:[%s372 + $0x78] sm:$0xf] %v2420
      %2517 = vst [vmem:[%s372 + $0x7c] sm:$0xf] %v2421
      %2518 = vst [vmem:[%s372 + $0x80] sm:$0x1] %v2422
      %2519 = vst [vmem:[%s372 + $0x84] sm:$0xf] %v2423
      %2520 = vst [vmem:[%s372 + $0x88] sm:$0xf] %v2424
      %2521 = vst [vmem:[%s372 + $0x8c] sm:$0x1] %v2425
      %2522 = vst [vmem:[%s372 + $0x90] sm:$0xf] %v2426
      %2523 = vst [vmem:[%s372 + $0x94] sm:$0xf] %v2427
      %2524 = vst [vmem:[%s372 + $0x98] sm:$0x1] %v2428
      %2525 = vst [vmem:[%s372 + $0x9c] sm:$0xf] %v2429
      %2526 = vst [vmem:[%s372 + $0xa0] sm:$0xf] %v2430
      %2527 = vst [vmem:[%s372 + $0xa4] sm:$0x1] %v2431
      %2528 = vst [vmem:[%s372 + $0xa8] sm:$0xf] %v2432
      %2529 = vst [vmem:[%s372 + $0xac] sm:$0xf] %v2433
      %2530 = vst [vmem:[%s372 + $0xb0] sm:$0x1] %v2434
      %2531 = vst [vmem:[%s372 + $0xb4] sm:$0xf] %v2435
      %2532 = vst [vmem:[%s372 + $0xb8] sm:$0xf] %v2436
      %2533 = vst [vmem:[%s372 + $0xbc] sm:$0x1] %v2437
      %v2534 = vadd.f32 %v2083, %v2084
      %v2535 = vadd.f32 %v2534, %v2085
      %v2536 = vadd.f32 %v2535, %v2086
      %v2537 = vadd.f32 %v2536, %v2087
      %v2538 = vadd.f32 %v2537, %v2088
      %v2539 = vadd.f32 %v2538, %v2089
      %v2540 = vadd.f32 %v2539, %v2090
      %v2541 = vadd.f32 %v2540, %v2091
      %v2542 = vadd.f32 %v2541, %v2092
      %v2543 = vadd.f32 %v2542, %v2093
      %v2544 = vadd.f32 %v2543, %v2094
      %v2545 = vadd.f32 %v2544, %v2095
      %v2546 = vadd.f32 %v2545, %v2096
      %v2547 = vadd.f32 %v2546, %v2097
      %v2548 = vadd.f32 %v2547, %v2098
      %v2549 = vadd.f32 %v2548, %v2099
      %v2550 = vadd.f32 %v2549, %v2100
      %v2551 = vadd.f32 %v2550, %v2101
      %v2552 = vadd.f32 %v2551, %v2102
      %v2553 = vadd.f32 %v2552, %v2103
      %v2554 = vadd.f32 %v2553, %v2104
      %v2555 = vadd.f32 %v2554, %v2105
      %v2556 = vadd.f32 %v2555, %v2106
      %v2557 = vadd.f32 %v2556, %v2107
      %v2558 = vadd.f32 %v2557, %v2108
      %v2559 = vadd.f32 %v2558, %v2109
      %v2560 = vadd.f32 %v2559, %v2110
      %v2561 = vadd.f32 %v2560, %v2111
      %v2562 = vadd.f32 %v2561, %v2112
      %v2563 = vadd.f32 %v2562, %v2113
      %v2564 = vadd.f32 %v2563, %v2114
      %v2565 = vrot.slane %v2564, 4
      %v2566 = vadd.f32 %v2564, %v2565
      %v2567 = vrot.slane %v2566, 2
      %v2568 = vadd.f32 %v2566, %v2567
      %v2569 = vrot.slane %v2568, 1
      %v2570 = vadd.f32 %v2568, %v2569
      %v2571 = vmul.f32 %v2083, %v2083
      %v2572 = vmul.f32 %v2084, %v2084
      %v2573 = vmul.f32 %v2085, %v2085
      %v2574 = vmul.f32 %v2086, %v2086
      %v2575 = vmul.f32 %v2087, %v2087
      %v2576 = vmul.f32 %v2088, %v2088
      %v2577 = vmul.f32 %v2089, %v2089
      %v2578 = vmul.f32 %v2090, %v2090
      %v2579 = vmul.f32 %v2091, %v2091
      %v2580 = vmul.f32 %v2092, %v2092
      %v2581 = vmul.f32 %v2093, %v2093
      %v2582 = vmul.f32 %v2094, %v2094
      %v2583 = vmul.f32 %v2095, %v2095
      %v2584 = vmul.f32 %v2096, %v2096
      %v2585 = vmul.f32 %v2097, %v2097
      %v2586 = vmul.f32 %v2098, %v2098
      %v2587 = vmul.f32 %v2099, %v2099
      %v2588 = vmul.f32 %v2100, %v2100
      %v2589 = vmul.f32 %v2101, %v2101
      %v2590 = vmul.f32 %v2102, %v2102
      %v2591 = vmul.f32 %v2103, %v2103
      %v2592 = vmul.f32 %v2104, %v2104
      %v2593 = vmul.f32 %v2105, %v2105
      %v2594 = vmul.f32 %v2106, %v2106
      %v2595 = vmul.f32 %v2107, %v2107
      %v2596 = vmul.f32 %v2108, %v2108
      %v2597 = vmul.f32 %v2109, %v2109
      %v2598 = vmul.f32 %v2110, %v2110
      %v2599 = vmul.f32 %v2111, %v2111
      %v2600 = vmul.f32 %v2112, %v2112
      %v2601 = vmul.f32 %v2113, %v2113
      %v2602 = vmul.f32 %v2114, %v2114
      %v2603 = vadd.f32 %v2571, %v2572
      %v2604 = vadd.f32 %v2603, %v2573
      %v2605 = vadd.f32 %v2604, %v2574
      %v2606 = vadd.f32 %v2605, %v2575
      %v2607 = vadd.f32 %v2606, %v2576
      %v2608 = vadd.f32 %v2607, %v2577
      %v2609 = vadd.f32 %v2608, %v2578
      %v2610 = vadd.f32 %v2609, %v2579
      %v2611 = vadd.f32 %v2610, %v2580
      %v2612 = vadd.f32 %v2611, %v2581
      %v2613 = vadd.f32 %v2612, %v2582
      %v2614 = vadd.f32 %v2613, %v2583
      %v2615 = vadd.f32 %v2614, %v2584
      %v2616 = vadd.f32 %v2615, %v2585
      %v2617 = vadd.f32 %v2616, %v2586
      %v2618 = vadd.f32 %v2617, %v2587
      %v2619 = vadd.f32 %v2618, %v2588
      %v2620 = vadd.f32 %v2619, %v2589
      %v2621 = vadd.f32 %v2620, %v2590
      %v2622 = vadd.f32 %v2621, %v2591
      %v2623 = vadd.f32 %v2622, %v2592
      %v2624 = vadd.f32 %v2623, %v2593
      %v2625 = vadd.f32 %v2624, %v2594
      %v2626 = vadd.f32 %v2625, %v2595
      %v2627 = vadd.f32 %v2626, %v2596
      %v2628 = vadd.f32 %v2627, %v2597
      %v2629 = vadd.f32 %v2628, %v2598
      %v2630 = vadd.f32 %v2629, %v2599
      %v2631 = vadd.f32 %v2630, %v2600
      %v2632 = vadd.f32 %v2631, %v2601
      %v2633 = vadd.f32 %v2632, %v2602
      %v2634 = vrot.slane %v2633, 4
      %v2635 = vadd.f32 %v2633, %v2634
      %v2636 = vrot.slane %v2635, 2
      %v2637 = vadd.f32 %v2635, %v2636
      %v2638 = vrot.slane %v2637, 1
      %v2639 = vadd.f32 %v2637, %v2638
      %vm2640 = vcmask 1040384
      %v2641 = vsel %vm2640, %v2570, %v2639
      %vm2642 = vcmask 1041408
      %v2643 = vsel %vm2642, %v2641, 0.0
      %p2644 = scmp.eq.s32.totalorder %s22, 0
      // Predicated region
      $region37: #{partial2d_block_forward.2} parent=35 // pred_check
        %p2645 = pneg %p2644
      $region38: #{partial2d_block_forward.2} parent=35 // pred_check_branch
        %2647 = sbr.rel (%p2645) target = $region40
      $region39: #{partial2d_block_forward.2} parent=35 // pred_region
        %2648 = vst [vmem:[%s377] sm:$0xff] %v2643
      $region40: #{partial2d_block_forward.2} parent=35 // pred_fallthru
        _
      %p2649 = scmp.gt.s32.totalorder %s22, 0
      // Predicated region
      $region41: #{partial2d_block_forward.2} parent=35 // pred_check
        %p2650 = pneg %p2649
      $region42: #{partial2d_block_forward.2} parent=35 // pred_check_branch
        %2652 = sbr.rel (%p2650) target = $region44
      $region43: #{partial2d_block_forward.2} parent=35 // pred_region
        %v2653 = vld [vmem:[%s377] sm:$0xff]
        %v2654 = vadd.f32 %v2653, %v2643
        %2655 = vst [vmem:[%s377] sm:$0xff] %v2654
      $region44: #{partial2d_block_forward.2} parent=35 // pred_fallthru
        _
      %s2656 = smul.u32 16, %s22
      %p2657 = scmp.lt.s32.totalorder %s21, 1
      %s2658 = scalar_select %p2657, %s21, 1
      %p2659 = scmp.lt.s32.totalorder %s2656, 15
      %s2660 = scalar_select %p2659, %s2656, 15
      %s2661 = smul.addr %s2660, 3
      %s2662 = smul.addr %s2658, 48
      %s2663 = sadd.s32 %s2661, %s2662
      %s2664 = smul.addr %s2663, 4
      %s2665 = scalar_lea.vmem %s4, %s2664
      %p2666 = scmp.lt.s32.totalorder %s21, 1
      %s2667 = scalar_select %p2666, %s21, 1
      %s2668 = smul.addr %s2667, 8
      %s2669 = scalar_lea.vmem %s5, %s2668
      // Predicated region
      $region45: #{partial2d_block_forward.2} parent=35 // pred_check
        %p2670 = pneg %p154
      $region46: #{partial2d_block_forward.2} parent=35 // pred_check_branch
        %2672 = sbr.rel (%p2670) target = $region48
      $region47: #{partial2d_block_forward.2} parent=35 // pred_region
        %s2673 = smul.u32 16, %s22
      $region48: #{partial2d_block_forward.2} parent=35 // pred_fallthru
        _
      // Predicated region
      $region49: #{partial2d_block_forward.2} parent=35 // pred_check
        %p2674 = pneg %p180
      $region50: #{partial2d_block_forward.2} parent=35 // pred_check_branch
        %2676 = sbr.rel (%p2674) target = $region52
      $region51: #{partial2d_block_forward.2} parent=35 // pred_region
        _
      $region52: #{partial2d_block_forward.2} parent=35 // pred_fallthru
        _
    $region36: #{partial2d_block_forward.2} parent=5 // pred_fallthru
      _
    %p2677 = scmp.le.s32.totalorder 2, %s12
    // Predicated region
    $region53: #{partial2d_block_forward.2} parent=5 // pred_check
      %p2678 = pneg %p2677
    $region54: #{partial2d_block_forward.2} parent=5 // pred_check_branch
      %2680 = sbr.rel (%p2678) target = $region56
    $region55: #{partial2d_block_forward.2} parent=5 // pred_region
      %s2681 = ssub.s32 %s12, 2
      // Predicated region
      $region57: #{partial2d_block_forward.2} parent=55 // pred_check
        %p2682 = pneg %p160
      $region58: #{partial2d_block_forward.2} parent=55 // pred_check_branch
        %2684 = sbr.rel (%p2682) target = $region60
      $region59: #{partial2d_block_forward.2} parent=55 // pred_region
        %s2685 = smul.u32 16, %s24
        %p2686 = scmp.lt.s32.totalorder %s23, 1
        %s2687 = scalar_select %p2686, %s23, 1
        %p2688 = scmp.lt.s32.totalorder %s2685, 15
        %s2689 = scalar_select %p2688, %s2685, 15
        %s2690 = smul.addr %s2689, 3
        %s2691 = smul.addr %s2687, 48
        %s2692 = sadd.s32 %s2690, %s2691
        %s2693 = smul.addr %s2692, 4
        %s2694 = scalar_lea.vmem %s4, %s2693
      $region60: #{partial2d_block_forward.2} parent=55 // pred_fallthru
        _
      // Predicated region
      $region61: #{partial2d_block_forward.2} parent=55 // pred_check
        %p2695 = pneg %p186
      $region62: #{partial2d_block_forward.2} parent=55 // pred_check_branch
        %2697 = sbr.rel (%p2695) target = $region64
      $region63: #{partial2d_block_forward.2} parent=55 // pred_region
        %p2698 = scmp.lt.s32.totalorder %s23, 1
        %s2699 = scalar_select %p2698, %s23, 1
        %s2700 = smul.addr %s2699, 8
        %s2701 = scalar_lea.vmem %s5, %s2700
      $region64: #{partial2d_block_forward.2} parent=55 // pred_fallthru
        _
    $region56: #{partial2d_block_forward.2} parent=5 // pred_fallthru
      _
  $region6: #{partial2d_block_forward.2} parent=0 // loop_footer
    %s16 = sadd.s32 1, %s12
  $region7: #{partial2d_block_forward.2} parent=0 // loop_footer_branch
    %11 = sbr.rel target = $region3
  $region8: #{partial2d_block_forward.2} parent=0 // loop_exit
    _

// kernel: partial2d_block_forward.3
$region0: #{partial2d_block_forward.3}
  #allocation0 [shape = 'u32[]', space=smem, size = 0x4, offset = 0x4, fixed_abs, tag = 'smem constant byte address 0x4 - core index']
  #allocation1 [shape = 'u32[144,128]{1,0:T(1,128)}', space=vmem, size = 0x12000, scoped, tag = 'internal scratch']
  %s0 = inlined_call_operand.vmem [shape: bf16[2,16,9,256], index: 0, kind: input, shape index: {}]
  %s1 = inlined_call_operand.vmem [shape: bf16[2,1,1,9,256], index: 1, kind: input, shape index: {}]
  %s2 = inlined_call_operand.vmem [shape: f32[2,256], index: 2, kind: input, shape index: {}]
  %s3 = inlined_call_operand.vmem [shape: f32[1,9,256], index: 3, kind: input, shape index: {}]
  %s4 = inlined_call_operand.vmem [shape: f32[1,18,9,1], index: 4, kind: input, shape index: {}]
  %s5 = inlined_call_operand.vmem [shape: f32[2,8,8,9], index: 5, kind: input, shape index: {}]
  %s6 = inlined_call_operand.vmem [shape: bf16[1152,128], index: 6, kind: input, shape index: {}]
  %s7 = inlined_call_operand.vmem [shape: f32[9,128], index: 7, kind: input, shape index: {}]
  %s8 = inlined_call_operand.vmem [shape: f32[2,8,8,128], index: 8, kind: output, shape index: {0}]
  %s9 = inlined_call_operand.vmem [shape: f32[2,8,8,128], index: 9, kind: output, shape index: {1}]
  %10 = xla_tuple %s8, %s9
  %s11 = sld [smem:[#allocation0]]
  $region73: #{partial2d_block_forward.3} parent=0
    _
  %s13 = ssub.s32 1, %s11
  %s14 = scalar_select 0, %s13, %s11
  loop: start=0, step=1, limit=4
  $region2: #{partial2d_block_forward.3} parent=0 // loop_pre_header
    _
  $region3: #{partial2d_block_forward.3} parent=0 // loop_header
    %s16 = sphi 0, %s20
    %p17 = scmp.ge.s32.totalorder %s16, 4
    %s23 = sphi 0, %s35
    %s24 = sphi 0, %s31
    %s25 = sphi 0, %s23
    %s26 = sphi 0, %s24
    %s27 = sphi 0, %s25
    %s28 = sphi 0, %s26
    %s40 = sphi 0, %s42
    %s43 = sphi 0, %s40
    %s44 = sphi 0, %s43
    %s60 = sphi 0, %s44
    %s68 = sphi 0, %s70
    %s71 = sphi 0, %s68
    %s72 = sphi 0, %s71
    %s88 = sphi 0, %s72
    %s92 = sphi 0, %s92
    %s94 = sphi 0, %s92
    %s95 = sphi 0, %s94
    %s109 = sphi 0, %s95
    %s113 = sphi 0, %s113
    %s115 = sphi 0, %s113
    %s116 = sphi 0, %s115
    %s130 = sphi 0, %s116
    %s136 = sphi 0, %s138
    %s139 = sphi 0, %s136
    %s140 = sphi 0, %s139
    %s156 = sphi 0, %s140
    %s164 = sphi 0, %s166
    %s167 = sphi 0, %s164
    %s168 = sphi 0, %s167
    %s184 = sphi 0, %s168
    %s188 = sphi 0, %s188
    %s190 = sphi 0, %s188
    %s191 = sphi 0, %s190
    %s205 = sphi 0, %s191
    %s209 = sphi 0, %s209
    %s211 = sphi 0, %s209
    %s212 = sphi 0, %s211
    %s226 = sphi 0, %s212
    %s234 = sphi 0, %s236
    %s237 = sphi 0, %s234
    %s238 = sphi 0, %s237
    %s254 = sphi 0, %s238
    %s262 = sphi 0, %s264
    %s265 = sphi 0, %s262
    %s266 = sphi 0, %s265
    %s282 = sphi 0, %s266
  $region4: #{partial2d_block_forward.3} parent=0 // loop_header_branch
    %19 = sbr.rel (%p17) target = $region8
  $region5: #{partial2d_block_forward.3} parent=0 // loop_body
    %s21 = ssub.s32 %s16, 1
    %s22 = ssub.s32 %s16, 2
    %s29 = sadd.s32 1, %s24
    %p30 = scmp.ge.s32.totalorder %s29, 1
    %s31 = scalar_select %p30, 0, %s29
    %s32 = sadd.s32 1, %s23
    %s33 = scalar_select %p30, %s32, %s23
    %p34 = scmp.ge.s32.totalorder %s33, 2
    %s35 = scalar_select %p34, 0, %s33
    %s36 = ssub.s32 %s23, %s35
    %s37 = ssub.s32 %s24, %s31
    %s38 = sor.u32 %s36, %s37
    %p39 = scmp.eq.s32.totalorder %s38, 0
    %s41 = sadd.s32 %s40, 1
    %s42 = scalar_select %p39, %s40, %s41
    %p45 = pneg %p39
    %p46 = scmp.eq.s32.totalorder %s16, 1
    %p47 = por %p45, %p46
    %p48 = scmp.ne.s32.totalorder %s40, %s43
    %p49 = scmp.eq.s32.totalorder %s16, 0
    %p50 = por %p48, %p49
    %p51 = scmp.ne.s32.totalorder %s40, %s43
    %p52 = scmp.eq.s32.totalorder %s21, 1
    %p53 = por %p51, %p52
    %p54 = scmp.ne.s32.totalorder %s43, %s44
    %p55 = scmp.eq.s32.totalorder %s21, 0
    %p56 = por %p54, %p55
    %p57 = scmp.ne.s32.totalorder %s43, %s44
    %p58 = scmp.eq.s32.totalorder %s22, 1
    %p59 = por %p57, %p58
    %p61 = scmp.ne.s32.totalorder %s44, %s60
    %p62 = scmp.eq.s32.totalorder %s22, 0
    %p63 = por %p61, %p62
    %s64 = ssub.s32 %s23, %s35
    %s65 = ssub.s32 %s24, %s31
    %s66 = sor.u32 %s64, %s65
    %p67 = scmp.eq.s32.totalorder %s66, 0
    %s69 = sadd.s32 %s68, 1
    %s70 = scalar_select %p67, %s68, %s69
    %p73 = pneg %p67
    %p74 = scmp.eq.s32.totalorder %s16, 1
    %p75 = por %p73, %p74
    %p76 = scmp.ne.s32.totalorder %s68, %s71
    %p77 = scmp.eq.s32.totalorder %s16, 0
    %p78 = por %p76, %p77
    %p79 = scmp.ne.s32.totalorder %s68, %s71
    %p80 = scmp.eq.s32.totalorder %s21, 1
    %p81 = por %p79, %p80
    %p82 = scmp.ne.s32.totalorder %s71, %s72
    %p83 = scmp.eq.s32.totalorder %s21, 0
    %p84 = por %p82, %p83
    %p85 = scmp.ne.s32.totalorder %s71, %s72
    %p86 = scmp.eq.s32.totalorder %s22, 1
    %p87 = por %p85, %p86
    %p89 = scmp.ne.s32.totalorder %s72, %s88
    %p90 = scmp.eq.s32.totalorder %s22, 0
    %p91 = por %p89, %p90
    %s93 = sadd.s32 %s92, 1
    %p96 = scmp.eq.s32.totalorder %s16, 1
    %p97 = scmp.ne.s32.totalorder %s92, %s94
    %p98 = scmp.eq.s32.totalorder %s16, 0
    %p99 = por %p97, %p98
    %p100 = scmp.ne.s32.totalorder %s92, %s94
    %p101 = scmp.eq.s32.totalorder %s21, 1
    %p102 = por %p100, %p101
    %p103 = scmp.ne.s32.totalorder %s94, %s95
    %p104 = scmp.eq.s32.totalorder %s21, 0
    %p105 = por %p103, %p104
    %p106 = scmp.ne.s32.totalorder %s94, %s95
    %p107 = scmp.eq.s32.totalorder %s22, 1
    %p108 = por %p106, %p107
    %p110 = scmp.ne.s32.totalorder %s95, %s109
    %p111 = scmp.eq.s32.totalorder %s22, 0
    %p112 = por %p110, %p111
    %s114 = sadd.s32 %s113, 1
    %p117 = scmp.eq.s32.totalorder %s16, 1
    %p118 = scmp.ne.s32.totalorder %s113, %s115
    %p119 = scmp.eq.s32.totalorder %s16, 0
    %p120 = por %p118, %p119
    %p121 = scmp.ne.s32.totalorder %s113, %s115
    %p122 = scmp.eq.s32.totalorder %s21, 1
    %p123 = por %p121, %p122
    %p124 = scmp.ne.s32.totalorder %s115, %s116
    %p125 = scmp.eq.s32.totalorder %s21, 0
    %p126 = por %p124, %p125
    %p127 = scmp.ne.s32.totalorder %s115, %s116
    %p128 = scmp.eq.s32.totalorder %s22, 1
    %p129 = por %p127, %p128
    %p131 = scmp.ne.s32.totalorder %s116, %s130
    %p132 = scmp.eq.s32.totalorder %s22, 0
    %p133 = por %p131, %p132
    %s134 = ssub.s32 %s24, %s31
    %p135 = scmp.eq.s32.totalorder %s134, 0
    %s137 = sadd.s32 %s136, 1
    %s138 = scalar_select %p135, %s136, %s137
    %p141 = pneg %p135
    %p142 = scmp.eq.s32.totalorder %s16, 1
    %p143 = por %p141, %p142
    %p144 = scmp.ne.s32.totalorder %s136, %s139
    %p145 = scmp.eq.s32.totalorder %s16, 0
    %p146 = por %p144, %p145
    %p147 = scmp.ne.s32.totalorder %s136, %s139
    %p148 = scmp.eq.s32.totalorder %s21, 1
    %p149 = por %p147, %p148
    %p150 = scmp.ne.s32.totalorder %s139, %s140
    %p151 = scmp.eq.s32.totalorder %s21, 0
    %p152 = por %p150, %p151
    %p153 = scmp.ne.s32.totalorder %s139, %s140
    %p154 = scmp.eq.s32.totalorder %s22, 1
    %p155 = por %p153, %p154
    %p157 = scmp.ne.s32.totalorder %s140, %s156
    %p158 = scmp.eq.s32.totalorder %s22, 0
    %p159 = por %p157, %p158
    %s160 = ssub.s32 %s23, %s35
    %s161 = ssub.s32 %s24, %s31
    %s162 = sor.u32 %s160, %s161
    %p163 = scmp.eq.s32.totalorder %s162, 0
    %s165 = sadd.s32 %s164, 1
    %s166 = scalar_select %p163, %s164, %s165
    %p169 = pneg %p163
    %p170 = scmp.eq.s32.totalorder %s16, 1
    %p171 = por %p169, %p170
    %p172 = scmp.ne.s32.totalorder %s164, %s167
    %p173 = scmp.eq.s32.totalorder %s16, 0
    %p174 = por %p172, %p173
    %p175 = scmp.ne.s32.totalorder %s164, %s167
    %p176 = scmp.eq.s32.totalorder %s21, 1
    %p177 = por %p175, %p176
    %p178 = scmp.ne.s32.totalorder %s167, %s168
    %p179 = scmp.eq.s32.totalorder %s21, 0
    %p180 = por %p178, %p179
    %p181 = scmp.ne.s32.totalorder %s167, %s168
    %p182 = scmp.eq.s32.totalorder %s22, 1
    %p183 = por %p181, %p182
    %p185 = scmp.ne.s32.totalorder %s168, %s184
    %p186 = scmp.eq.s32.totalorder %s22, 0
    %p187 = por %p185, %p186
    %s189 = sadd.s32 %s188, 1
    %p192 = scmp.eq.s32.totalorder %s16, 1
    %p193 = scmp.ne.s32.totalorder %s188, %s190
    %p194 = scmp.eq.s32.totalorder %s16, 0
    %p195 = por %p193, %p194
    %p196 = scmp.ne.s32.totalorder %s188, %s190
    %p197 = scmp.eq.s32.totalorder %s21, 1
    %p198 = por %p196, %p197
    %p199 = scmp.ne.s32.totalorder %s190, %s191
    %p200 = scmp.eq.s32.totalorder %s21, 0
    %p201 = por %p199, %p200
    %p202 = scmp.ne.s32.totalorder %s190, %s191
    %p203 = scmp.eq.s32.totalorder %s22, 1
    %p204 = por %p202, %p203
    %p206 = scmp.ne.s32.totalorder %s191, %s205
    %p207 = scmp.eq.s32.totalorder %s22, 0
    %p208 = por %p206, %p207
    %s210 = sadd.s32 %s209, 1
    %p213 = scmp.eq.s32.totalorder %s16, 1
    %p214 = scmp.ne.s32.totalorder %s209, %s211
    %p215 = scmp.eq.s32.totalorder %s16, 0
    %p216 = por %p214, %p215
    %p217 = scmp.ne.s32.totalorder %s209, %s211
    %p218 = scmp.eq.s32.totalorder %s21, 1
    %p219 = por %p217, %p218
    %p220 = scmp.ne.s32.totalorder %s211, %s212
    %p221 = scmp.eq.s32.totalorder %s21, 0
    %p222 = por %p220, %p221
    %p223 = scmp.ne.s32.totalorder %s211, %s212
    %p224 = scmp.eq.s32.totalorder %s22, 1
    %p225 = por %p223, %p224
    %p227 = scmp.ne.s32.totalorder %s212, %s226
    %p228 = scmp.eq.s32.totalorder %s22, 0
    %p229 = por %p227, %p228
    %s230 = ssub.s32 %s23, %s35
    %s231 = ssub.s32 %s24, %s31
    %s232 = sor.u32 %s230, %s231
    %p233 = scmp.eq.s32.totalorder %s232, 0
    %s235 = sadd.s32 %s234, 1
    %s236 = scalar_select %p233, %s234, %s235
    %p239 = pneg %p233
    %p240 = scmp.eq.s32.totalorder %s16, 1
    %p241 = por %p239, %p240
    %p242 = scmp.ne.s32.totalorder %s234, %s237
    %p243 = scmp.eq.s32.totalorder %s16, 0
    %p244 = por %p242, %p243
    %p245 = scmp.ne.s32.totalorder %s234, %s237
    %p246 = scmp.eq.s32.totalorder %s21, 1
    %p247 = por %p245, %p246
    %p248 = scmp.ne.s32.totalorder %s237, %s238
    %p249 = scmp.eq.s32.totalorder %s21, 0
    %p250 = por %p248, %p249
    %p251 = scmp.ne.s32.totalorder %s237, %s238
    %p252 = scmp.eq.s32.totalorder %s22, 1
    %p253 = por %p251, %p252
    %p255 = scmp.ne.s32.totalorder %s238, %s254
    %p256 = scmp.eq.s32.totalorder %s22, 0
    %p257 = por %p255, %p256
    %s258 = ssub.s32 %s23, %s35
    %s259 = ssub.s32 %s24, %s31
    %s260 = sor.u32 %s258, %s259
    %p261 = scmp.eq.s32.totalorder %s260, 0
    %s263 = sadd.s32 %s262, 1
    %s264 = scalar_select %p261, %s262, %s263
    %p267 = pneg %p261
    %p268 = scmp.eq.s32.totalorder %s16, 1
    %p269 = por %p267, %p268
    %p270 = scmp.ne.s32.totalorder %s262, %s265
    %p271 = scmp.eq.s32.totalorder %s16, 0
    %p272 = por %p270, %p271
    %p273 = scmp.ne.s32.totalorder %s262, %s265
    %p274 = scmp.eq.s32.totalorder %s21, 1
    %p275 = por %p273, %p274
    %p276 = scmp.ne.s32.totalorder %s265, %s266
    %p277 = scmp.eq.s32.totalorder %s21, 0
    %p278 = por %p276, %p277
    %p279 = scmp.ne.s32.totalorder %s265, %s266
    %p280 = scmp.eq.s32.totalorder %s22, 1
    %p281 = por %p279, %p280
    %p283 = scmp.ne.s32.totalorder %s266, %s282
    %p284 = scmp.eq.s32.totalorder %s22, 0
    %p285 = por %p283, %p284
    %p286 = scmp.le.s32.totalorder 1, %s16
    %p287 = scmp.lt.s32.totalorder %s16, 3
    %p288 = pnand %p286, %p287
    %p289 = pneg %p288
    // Predicated region
    $region9: #{partial2d_block_forward.3} parent=5 // pred_check
      _
    $region10: #{partial2d_block_forward.3} parent=5 // pred_check_branch
      %291 = sbr.rel (%p288) target = $region12
    $region11: #{partial2d_block_forward.3} parent=5 // pred_region
      %s292 = ssub.s32 %s16, 1
      // Predicated region
      $region13: #{partial2d_block_forward.3} parent=11 // pred_check
        %p293 = pneg %p105
      $region14: #{partial2d_block_forward.3} parent=11 // pred_check_branch
        %295 = sbr.rel (%p293) target = $region16
      $region15: #{partial2d_block_forward.3} parent=11 // pred_region
        _
      $region16: #{partial2d_block_forward.3} parent=11 // pred_fallthru
        _
      // Predicated region
      $region17: #{partial2d_block_forward.3} parent=11 // pred_check
        %p296 = pneg %p126
      $region18: #{partial2d_block_forward.3} parent=11 // pred_check_branch
        %298 = sbr.rel (%p296) target = $region20
      $region19: #{partial2d_block_forward.3} parent=11 // pred_region
        _
      $region20: #{partial2d_block_forward.3} parent=11 // pred_fallthru
        _
      // Predicated region
      $region21: #{partial2d_block_forward.3} parent=11 // pred_check
        %p299 = pneg %p152
      $region22: #{partial2d_block_forward.3} parent=11 // pred_check_branch
        %301 = sbr.rel (%p299) target = $region24
      $region23: #{partial2d_block_forward.3} parent=11 // pred_region
        %p302 = scmp.lt.s32.totalorder %s26, 0
        %s303 = scalar_select %p302, %s26, 0
        %s304 = smul.addr %s303, 36
        %s305 = smul.addr %s304, 8
        %s306 = scalar_lea.vmem %s4, %s305
      $region24: #{partial2d_block_forward.3} parent=11 // pred_fallthru
        _
      // Predicated region
      $region25: #{partial2d_block_forward.3} parent=11 // pred_check
        %p307 = pneg %p201
      $region26: #{partial2d_block_forward.3} parent=11 // pred_check_branch
        %309 = sbr.rel (%p307) target = $region28
      $region27: #{partial2d_block_forward.3} parent=11 // pred_region
        _
      $region28: #{partial2d_block_forward.3} parent=11 // pred_fallthru
        _
      // Predicated region
      $region29: #{partial2d_block_forward.3} parent=11 // pred_check
        %p310 = pneg %p222
      $region30: #{partial2d_block_forward.3} parent=11 // pred_check_branch
        %312 = sbr.rel (%p310) target = $region32
      $region31: #{partial2d_block_forward.3} parent=11 // pred_region
        _
      $region32: #{partial2d_block_forward.3} parent=11 // pred_fallthru
        _
    $region12: #{partial2d_block_forward.3} parent=5 // pred_fallthru
      _
    %p313 = scmp.lt.s32.totalorder %s16, 2
    // Predicated region
    $region33: #{partial2d_block_forward.3} parent=5 // pred_check
      %p314 = pneg %p313
    $region34: #{partial2d_block_forward.3} parent=5 // pred_check_branch
      %316 = sbr.rel (%p314) target = $region36
    $region35: #{partial2d_block_forward.3} parent=5 // pred_region
      // Predicated region
      $region37: #{partial2d_block_forward.3} parent=35 // pred_check
        %p317 = pneg %p50
      $region38: #{partial2d_block_forward.3} parent=35 // pred_check_branch
        %319 = sbr.rel (%p317) target = $region40
      $region39: #{partial2d_block_forward.3} parent=35 // pred_region
        %s320 = smul.u32 16, %s24
        %p321 = scmp.lt.s32.totalorder %s23, 1
        %s322 = scalar_select %p321, %s23, 1
        %p323 = scmp.lt.s32.totalorder %s320, 15
        %s324 = scalar_select %p323, %s320, 15
        %s325 = smul.addr %s324, 4
        %s326 = smul.addr %s322, 64
        %s327 = sadd.s32 %s325, %s326
        %s328 = smul.addr %s327, 4
        %s329 = scalar_lea.vmem %s0, %s328
        %s330 = smul.u32 16, %s24
      $region40: #{partial2d_block_forward.3} parent=35 // pred_fallthru
        _
      // Predicated region
      $region41: #{partial2d_block_forward.3} parent=35 // pred_check
        %p331 = pneg %p78
      $region42: #{partial2d_block_forward.3} parent=35 // pred_check_branch
        %333 = sbr.rel (%p331) target = $region44
      $region43: #{partial2d_block_forward.3} parent=35 // pred_region
        %p334 = scmp.lt.s32.totalorder %s23, 1
        %s335 = scalar_select %p334, %s23, 1
        %p336 = scmp.lt.s32.totalorder %s24, 0
        %s337 = scalar_select %p336, %s24, 0
        %s338 = smul.addr %s337, 4
        %s339 = smul.addr %s335, 4
        %s340 = sadd.s32 %s338, %s339
        %s341 = smul.addr %s340, 4
        %s342 = scalar_lea.vmem %s1, %s341
      $region44: #{partial2d_block_forward.3} parent=35 // pred_fallthru
        _
      // Predicated region
      $region45: #{partial2d_block_forward.3} parent=35 // pred_check
        %p343 = pneg %p174
      $region46: #{partial2d_block_forward.3} parent=35 // pred_check_branch
        %345 = sbr.rel (%p343) target = $region48
      $region47: #{partial2d_block_forward.3} parent=35 // pred_region
        %s346 = smul.u32 8, %s24
        %p347 = scmp.lt.s32.totalorder %s23, 1
        %s348 = scalar_select %p347, %s23, 1
        %p349 = scmp.lt.s32.totalorder %s346, 7
        %s350 = scalar_select %p349, %s346, 7
        %s351 = smul.addr %s348, 8
        %s352 = sadd.s32 %s350, %s351
        %s353 = smul.addr %s352, 8
        %s354 = scalar_lea.vmem %s5, %s353
        %s355 = smul.u32 8, %s24
      $region48: #{partial2d_block_forward.3} parent=35 // pred_fallthru
        _
    $region36: #{partial2d_block_forward.3} parent=5 // pred_fallthru
      _
    %p356 = scmp.le.s32.totalorder 1, %s16
    %p357 = scmp.lt.s32.totalorder %s16, 3
    %p358 = pnand %p356, %p357
    %p359 = pneg %p358
    // Predicated region
    $region49: #{partial2d_block_forward.3} parent=5 // pred_check
      _
    $region50: #{partial2d_block_forward.3} parent=5 // pred_check_branch
      %361 = sbr.rel (%p358) target = $region52
    $region51: #{partial2d_block_forward.3} parent=5 // pred_region
      %s362 = ssub.s32 %s16, 1
      %s363 = smul.u32 16, %s26
      %p364 = scmp.lt.s32.totalorder %s25, 1
      %s365 = scalar_select %p364, %s25, 1
      %p366 = scmp.lt.s32.totalorder %s363, 15
      %s367 = scalar_select %p366, %s363, 15
      %s368 = smul.addr %s367, 4
      %s369 = smul.addr %s365, 64
      %s370 = sadd.s32 %s368, %s369
      %s371 = smul.addr %s370, 4
      %s372 = scalar_lea.vmem %s0, %s371
      %p373 = pneg %p56
      %p374 = pneg %p53
      %p375 = scmp.lt.s32.totalorder %s25, 1
      %s376 = scalar_select %p375, %s25, 1
      %p377 = scmp.lt.s32.totalorder %s26, 0
      %s378 = scalar_select %p377, %s26, 0
      %s379 = smul.addr %s378, 4
      %s380 = smul.addr %s376, 4
      %s381 = sadd.s32 %s379, %s380
      %s382 = smul.addr %s381, 4
      %s383 = scalar_lea.vmem %s1, %s382
      %p384 = pneg %p84
      %p385 = pneg %p81
      %p386 = pneg %p105
      %p387 = pneg %p102
      %p388 = pneg %p126
      %p389 = pneg %p123
      %p390 = scmp.lt.s32.totalorder %s26, 0
      %s391 = scalar_select %p390, %s26, 0
      %s392 = smul.addr %s391, 36
      %s393 = smul.addr %s392, 8
      %s394 = scalar_lea.vmem %s4, %s393
      %p395 = pneg %p152
      %p396 = pneg %p149
      %s397 = smul.u32 8, %s26
      %p398 = scmp.lt.s32.totalorder %s25, 1
      %s399 = scalar_select %p398, %s25, 1
      %p400 = scmp.lt.s32.totalorder %s397, 7
      %s401 = scalar_select %p400, %s397, 7
      %s402 = smul.addr %s399, 8
      %s403 = sadd.s32 %s401, %s402
      %s404 = smul.addr %s403, 8
      %s405 = scalar_lea.vmem %s5, %s404
      %p406 = pneg %p180
      %p407 = pneg %p177
      %p408 = pneg %p201
      %p409 = pneg %p198
      %p410 = pneg %p222
      %p411 = pneg %p219
      %p412 = pneg %p250
      %p413 = pneg %p247
      %s414 = smul.u32 8, %s26
      %p415 = scmp.lt.s32.totalorder %s25, 1
      %s416 = scalar_select %p415, %s25, 1
      %p417 = scmp.lt.s32.totalorder %s414, 7
      %s418 = scalar_select %p417, %s414, 7
      %s419 = smul.addr %s416, 8
      %s420 = sadd.s32 %s418, %s419
      %s421 = smul.addr %s420, 8
      %s422 = scalar_lea.vmem %s8, %s421
      %p423 = pneg %p278
      %p424 = pneg %p275
      %s425 = smul.u32 8, %s26
      %p426 = scmp.lt.s32.totalorder %s25, 1
      %s427 = scalar_select %p426, %s25, 1
      %p428 = scmp.lt.s32.totalorder %s425, 7
      %s429 = scalar_select %p428, %s425, 7
      %s430 = smul.addr %s427, 8
      %s431 = sadd.s32 %s429, %s430
      %s432 = smul.addr %s431, 8
      %s433 = scalar_lea.vmem %s9, %s432
      %s434 = smul.u32 16, %s26
      %p435 = scmp.lt.s32.totalorder %s25, 1
      %s436 = scalar_select %p435, %s25, 1
      %p437 = scmp.lt.s32.totalorder %s434, 15
      %s438 = scalar_select %p437, %s434, 15
      %s439 = smul.addr %s438, 4
      %s440 = smul.addr %s436, 64
      %s441 = sadd.s32 %s439, %s440
      %s442 = smul.addr %s441, 4
      %s443 = scalar_lea.vmem %s0, %s442
      %s444 = smul.u32 16, %s26
      %p445 = scmp.lt.s32.totalorder %s25, 1
      %s446 = scalar_select %p445, %s25, 1
      %p447 = scmp.lt.s32.totalorder %s26, 0
      %s448 = scalar_select %p447, %s26, 0
      %s449 = smul.addr %s448, 4
      %s450 = smul.addr %s446, 4
      %s451 = sadd.s32 %s449, %s450
      %s452 = smul.addr %s451, 4
      %s453 = scalar_lea.vmem %s1, %s452
      %p454 = scmp.lt.s32.totalorder %s26, 0
      %s455 = scalar_select %p454, %s26, 0
      %s456 = smul.addr %s455, 36
      %s457 = smul.addr %s456, 8
      %s458 = scalar_lea.vmem %s4, %s457
      %s459 = smul.u32 8, %s26
      %p460 = scmp.lt.s32.totalorder %s25, 1
      %s461 = scalar_select %p460, %s25, 1
      %p462 = scmp.lt.s32.totalorder %s459, 7
      %s463 = scalar_select %p462, %s459, 7
      %s464 = smul.addr %s461, 8
      %s465 = sadd.s32 %s463, %s464
      %s466 = smul.addr %s465, 8
      %s467 = scalar_lea.vmem %s5, %s466
      %s468 = smul.u32 8, %s26
      %s469 = smul.u32 8, %s26
      %p470 = scmp.lt.s32.totalorder %s25, 1
      %s471 = scalar_select %p470, %s25, 1
      %p472 = scmp.lt.s32.totalorder %s469, 7
      %s473 = scalar_select %p472, %s469, 7
      %s474 = smul.addr %s471, 8
      %s475 = sadd.s32 %s473, %s474
      %s476 = smul.addr %s475, 8
      %s477 = scalar_lea.vmem %s8, %s476
      %s478 = smul.u32 8, %s26
      %s479 = smul.u32 8, %s26
      %p480 = scmp.lt.s32.totalorder %s25, 1
      %s481 = scalar_select %p480, %s25, 1
      %p482 = scmp.lt.s32.totalorder %s479, 7
      %s483 = scalar_select %p482, %s479, 7
      %s484 = smul.addr %s481, 8
      %s485 = sadd.s32 %s483, %s484
      %s486 = smul.addr %s485, 8
      %s487 = scalar_lea.vmem %s9, %s486
      %s488 = smul.u32 8, %s26
      %v490 = vld [vmem:[%s453] sm:$0xff]
      %v491 = vld [vmem:[%s453 + $0x8] sm:$0x11]
      %v492 = vld [vmem:[%s443] sm:$0xff]
      %v493 = vld [vmem:[%s443 + $0x8] sm:$0x11]
      %v494 = vld [vmem:[%s443 + $0x10] sm:$0xff]
      %v495 = vld [vmem:[%s443 + $0x18] sm:$0x11]
      %v496 = vld [vmem:[%s443 + $0x20] sm:$0xff]
      %v497 = vld [vmem:[%s443 + $0x28] sm:$0x11]
      %v498 = vld [vmem:[%s443 + $0x30] sm:$0xff]
      %v499 = vld [vmem:[%s443 + $0x38] sm:$0x11]
      %v500 = vld [vmem:[%s443 + $0x40] sm:$0xff]
      %v501 = vld [vmem:[%s443 + $0x48] sm:$0x11]
      %v502 = vld [vmem:[%s443 + $0x50] sm:$0xff]
      %v503 = vld [vmem:[%s443 + $0x58] sm:$0x11]
      %v504 = vld [vmem:[%s443 + $0x60] sm:$0xff]
      %v505 = vld [vmem:[%s443 + $0x68] sm:$0x11]
      %v506 = vld [vmem:[%s443 + $0x70] sm:$0xff]
      %v507 = vld [vmem:[%s443 + $0x78] sm:$0x11]
      %v508 = vld [vmem:[%s443 + $0x80] sm:$0xff]
      %v509 = vld [vmem:[%s443 + $0x88] sm:$0x11]
      %v510 = vld [vmem:[%s443 + $0x90] sm:$0xff]
      %v511 = vld [vmem:[%s443 + $0x98] sm:$0x11]
      %v512 = vld [vmem:[%s443 + $0xa0] sm:$0xff]
      %v513 = vld [vmem:[%s443 + $0xa8] sm:$0x11]
      %v514 = vld [vmem:[%s443 + $0xb0] sm:$0xff]
      %v515 = vld [vmem:[%s443 + $0xb8] sm:$0x11]
      %v516 = vld [vmem:[%s443 + $0xc0] sm:$0xff]
      %v517 = vld [vmem:[%s443 + $0xc8] sm:$0x11]
      %v518 = vld [vmem:[%s443 + $0xd0] sm:$0xff]
      %v519 = vld [vmem:[%s443 + $0xd8] sm:$0x11]
      %v520 = vld [vmem:[%s443 + $0xe0] sm:$0xff]
      %v521 = vld [vmem:[%s443 + $0xe8] sm:$0x11]
      %v522 = vld [vmem:[%s443 + $0xf0] sm:$0xff]
      %v523 = vld [vmem:[%s443 + $0xf8] sm:$0x11]
      %v524 = vunpack.c.l.bf16 %v490
      %v525 = vunpack.c.h.bf16 %v490
      %v526 = vunpack.c.l.bf16 %v491
      %v527 = vunpack.c.h.bf16 %v491
      %v528 = vunpack.c.l.bf16 %v492
      %v529 = vunpack.c.h.bf16 %v492
      %v530 = vunpack.c.l.bf16 %v493
      %v531 = vunpack.c.h.bf16 %v493
      %v532 = vunpack.c.l.bf16 %v494
      %v533 = vunpack.c.h.bf16 %v494
      %v534 = vunpack.c.l.bf16 %v495
      %v535 = vunpack.c.h.bf16 %v495
      %v536 = vunpack.c.l.bf16 %v496
      %v537 = vunpack.c.h.bf16 %v496
      %v538 = vunpack.c.l.bf16 %v497
      %v539 = vunpack.c.h.bf16 %v497
      %v540 = vunpack.c.l.bf16 %v498
      %v541 = vunpack.c.h.bf16 %v498
      %v542 = vunpack.c.l.bf16 %v499
      %v543 = vunpack.c.h.bf16 %v499
      %v544 = vunpack.c.l.bf16 %v500
      %v545 = vunpack.c.h.bf16 %v500
      %v546 = vunpack.c.l.bf16 %v501
      %v547 = vunpack.c.h.bf16 %v501
      %v548 = vunpack.c.l.bf16 %v502
      %v549 = vunpack.c.h.bf16 %v502
      %v550 = vunpack.c.l.bf16 %v503
      %v551 = vunpack.c.h.bf16 %v503
      %v552 = vunpack.c.l.bf16 %v504
      %v553 = vunpack.c.h.bf16 %v504
      %v554 = vunpack.c.l.bf16 %v505
      %v555 = vunpack.c.h.bf16 %v505
      %v556 = vunpack.c.l.bf16 %v506
      %v557 = vunpack.c.h.bf16 %v506
      %v558 = vunpack.c.l.bf16 %v507
      %v559 = vunpack.c.h.bf16 %v507
      %v560 = vunpack.c.l.bf16 %v508
      %v561 = vunpack.c.h.bf16 %v508
      %v562 = vunpack.c.l.bf16 %v509
      %v563 = vunpack.c.h.bf16 %v509
      %v564 = vunpack.c.l.bf16 %v510
      %v565 = vunpack.c.h.bf16 %v510
      %v566 = vunpack.c.l.bf16 %v511
      %v567 = vunpack.c.h.bf16 %v511
      %v568 = vunpack.c.l.bf16 %v512
      %v569 = vunpack.c.h.bf16 %v512
      %v570 = vunpack.c.l.bf16 %v513
      %v571 = vunpack.c.h.bf16 %v513
      %v572 = vunpack.c.l.bf16 %v514
      %v573 = vunpack.c.h.bf16 %v514
      %v574 = vunpack.c.l.bf16 %v515
      %v575 = vunpack.c.h.bf16 %v515
      %v576 = vunpack.c.l.bf16 %v516
      %v577 = vunpack.c.h.bf16 %v516
      %v578 = vunpack.c.l.bf16 %v517
      %v579 = vunpack.c.h.bf16 %v517
      %v580 = vunpack.c.l.bf16 %v518
      %v581 = vunpack.c.h.bf16 %v518
      %v582 = vunpack.c.l.bf16 %v519
      %v583 = vunpack.c.h.bf16 %v519
      %v584 = vunpack.c.l.bf16 %v520
      %v585 = vunpack.c.h.bf16 %v520
      %v586 = vunpack.c.l.bf16 %v521
      %v587 = vunpack.c.h.bf16 %v521
      %v588 = vunpack.c.l.bf16 %v522
      %v589 = vunpack.c.h.bf16 %v522
      %v590 = vunpack.c.l.bf16 %v523
      %v591 = vunpack.c.h.bf16 %v523
      %v592 = vld [vmem:[%s2] ss:$2 sm:$0x3]
      %s593 = scalar_lea.vmem %s2, 1
      %v594 = vld [vmem:[%s593] ss:$2 sm:$0x3]
      %v596 = vlaneseq
      %v597 = vshrl.u32 %v596, 7
      %v598 = vsub.s32 0, %v597
      %v599 = vrot.slane %v592, %v598
      %v600 = vlaneseq
      %v601 = vshrl.u32 %v600, 7
      %v602 = vsub.s32 1, %v601
      %v603 = vrot.slane %v592, %v602
      %v606 = vmul.f32 %v524, %v599
      %v607 = vmul.f32 %v525, %v603
      %v608 = vmul.f32 %v526, %v599
      %v609 = vmul.f32 %v527, %v603
      %v610 = vmul.f32 %v528, %v599
      %v611 = vmul.f32 %v529, %v603
      %v612 = vmul.f32 %v530, %v599
      %v613 = vmul.f32 %v531, %v603
      %v614 = vmul.f32 %v532, %v599
      %v615 = vmul.f32 %v533, %v603
      %v616 = vmul.f32 %v534, %v599
      %v617 = vmul.f32 %v535, %v603
      %v618 = vmul.f32 %v536, %v599
      %v619 = vmul.f32 %v537, %v603
      %v620 = vmul.f32 %v538, %v599
      %v621 = vmul.f32 %v539, %v603
      %v622 = vmul.f32 %v540, %v599
      %v623 = vmul.f32 %v541, %v603
      %v624 = vmul.f32 %v542, %v599
      %v625 = vmul.f32 %v543, %v603
      %v626 = vmul.f32 %v544, %v599
      %v627 = vmul.f32 %v545, %v603
      %v628 = vmul.f32 %v546, %v599
      %v629 = vmul.f32 %v547, %v603
      %v630 = vmul.f32 %v548, %v599
      %v631 = vmul.f32 %v549, %v603
      %v632 = vmul.f32 %v550, %v599
      %v633 = vmul.f32 %v551, %v603
      %v634 = vmul.f32 %v552, %v599
      %v635 = vmul.f32 %v553, %v603
      %v636 = vmul.f32 %v554, %v599
      %v637 = vmul.f32 %v555, %v603
      %v638 = vmul.f32 %v556, %v599
      %v639 = vmul.f32 %v557, %v603
      %v640 = vmul.f32 %v558, %v599
      %v641 = vmul.f32 %v559, %v603
      %v642 = vmul.f32 %v560, %v599
      %v643 = vmul.f32 %v561, %v603
      %v644 = vmul.f32 %v562, %v599
      %v645 = vmul.f32 %v563, %v603
      %v646 = vmul.f32 %v564, %v599
      %v647 = vmul.f32 %v565, %v603
      %v648 = vmul.f32 %v566, %v599
      %v649 = vmul.f32 %v567, %v603
      %v650 = vmul.f32 %v568, %v599
      %v651 = vmul.f32 %v569, %v603
      %v652 = vmul.f32 %v570, %v599
      %v653 = vmul.f32 %v571, %v603
      %v654 = vmul.f32 %v572, %v599
      %v655 = vmul.f32 %v573, %v603
      %v656 = vmul.f32 %v574, %v599
      %v657 = vmul.f32 %v575, %v603
      %v658 = vmul.f32 %v576, %v599
      %v659 = vmul.f32 %v577, %v603
      %v660 = vmul.f32 %v578, %v599
      %v661 = vmul.f32 %v579, %v603
      %v662 = vmul.f32 %v580, %v599
      %v663 = vmul.f32 %v581, %v603
      %v664 = vmul.f32 %v582, %v599
      %v665 = vmul.f32 %v583, %v603
      %v666 = vmul.f32 %v584, %v599
      %v667 = vmul.f32 %v585, %v603
      %v668 = vmul.f32 %v586, %v599
      %v669 = vmul.f32 %v587, %v603
      %v670 = vmul.f32 %v588, %v599
      %v671 = vmul.f32 %v589, %v603
      %v672 = vmul.f32 %v590, %v599
      %v673 = vmul.f32 %v591, %v603
      %v675 = vlaneseq
      %v676 = vshrl.u32 %v675, 7
      %v677 = vsub.s32 0, %v676
      %v678 = vrot.slane %v594, %v677
      %v679 = vlaneseq
      %v680 = vshrl.u32 %v679, 7
      %v681 = vsub.s32 1, %v680
      %v682 = vrot.slane %v594, %v681
      %v685 = vadd.f32 %v606, %v678
      %v686 = vadd.f32 %v607, %v682
      %v687 = vadd.f32 %v608, %v678
      %v688 = vadd.f32 %v609, %v682
      %v689 = vadd.f32 %v610, %v678
      %v690 = vadd.f32 %v611, %v682
      %v691 = vadd.f32 %v612, %v678
      %v692 = vadd.f32 %v613, %v682
      %v693 = vadd.f32 %v614, %v678
      %v694 = vadd.f32 %v615, %v682
      %v695 = vadd.f32 %v616, %v678
      %v696 = vadd.f32 %v617, %v682
      %v697 = vadd.f32 %v618, %v678
      %v698 = vadd.f32 %v619, %v682
      %v699 = vadd.f32 %v620, %v678
      %v700 = vadd.f32 %v621, %v682
      %v701 = vadd.f32 %v622, %v678
      %v702 = vadd.f32 %v623, %v682
      %v703 = vadd.f32 %v624, %v678
      %v704 = vadd.f32 %v625, %v682
      %v705 = vadd.f32 %v626, %v678
      %v706 = vadd.f32 %v627, %v682
      %v707 = vadd.f32 %v628, %v678
      %v708 = vadd.f32 %v629, %v682
      %v709 = vadd.f32 %v630, %v678
      %v710 = vadd.f32 %v631, %v682
      %v711 = vadd.f32 %v632, %v678
      %v712 = vadd.f32 %v633, %v682
      %v713 = vadd.f32 %v634, %v678
      %v714 = vadd.f32 %v635, %v682
      %v715 = vadd.f32 %v636, %v678
      %v716 = vadd.f32 %v637, %v682
      %v717 = vadd.f32 %v638, %v678
      %v718 = vadd.f32 %v639, %v682
      %v719 = vadd.f32 %v640, %v678
      %v720 = vadd.f32 %v641, %v682
      %v721 = vadd.f32 %v642, %v678
      %v722 = vadd.f32 %v643, %v682
      %v723 = vadd.f32 %v644, %v678
      %v724 = vadd.f32 %v645, %v682
      %v725 = vadd.f32 %v646, %v678
      %v726 = vadd.f32 %v647, %v682
      %v727 = vadd.f32 %v648, %v678
      %v728 = vadd.f32 %v649, %v682
      %v729 = vadd.f32 %v650, %v678
      %v730 = vadd.f32 %v651, %v682
      %v731 = vadd.f32 %v652, %v678
      %v732 = vadd.f32 %v653, %v682
      %v733 = vadd.f32 %v654, %v678
      %v734 = vadd.f32 %v655, %v682
      %v735 = vadd.f32 %v656, %v678
      %v736 = vadd.f32 %v657, %v682
      %v737 = vadd.f32 %v658, %v678
      %v738 = vadd.f32 %v659, %v682
      %v739 = vadd.f32 %v660, %v678
      %v740 = vadd.f32 %v661, %v682
      %v741 = vadd.f32 %v662, %v678
      %v742 = vadd.f32 %v663, %v682
      %v743 = vadd.f32 %v664, %v678
      %v744 = vadd.f32 %v665, %v682
      %v745 = vadd.f32 %v666, %v678
      %v746 = vadd.f32 %v667, %v682
      %v747 = vadd.f32 %v668, %v678
      %v748 = vadd.f32 %v669, %v682
      %v749 = vadd.f32 %v670, %v678
      %v750 = vadd.f32 %v671, %v682
      %v751 = vadd.f32 %v672, %v678
      %v752 = vadd.f32 %v673, %v682
      %v753 = vmax.f32 %v685, 0.0
      %v754 = vmax.f32 %v686, 0.0
      %v755 = vmax.f32 %v687, 0.0
      %v756 = vmax.f32 %v688, 0.0
      %v757 = vmax.f32 %v689, 0.0
      %v758 = vmax.f32 %v690, 0.0
      %v759 = vmax.f32 %v691, 0.0
      %v760 = vmax.f32 %v692, 0.0
      %v761 = vmax.f32 %v693, 0.0
      %v762 = vmax.f32 %v694, 0.0
      %v763 = vmax.f32 %v695, 0.0
      %v764 = vmax.f32 %v696, 0.0
      %v765 = vmax.f32 %v697, 0.0
      %v766 = vmax.f32 %v698, 0.0
      %v767 = vmax.f32 %v699, 0.0
      %v768 = vmax.f32 %v700, 0.0
      %v769 = vmax.f32 %v701, 0.0
      %v770 = vmax.f32 %v702, 0.0
      %v771 = vmax.f32 %v703, 0.0
      %v772 = vmax.f32 %v704, 0.0
      %v773 = vmax.f32 %v705, 0.0
      %v774 = vmax.f32 %v706, 0.0
      %v775 = vmax.f32 %v707, 0.0
      %v776 = vmax.f32 %v708, 0.0
      %v777 = vmax.f32 %v709, 0.0
      %v778 = vmax.f32 %v710, 0.0
      %v779 = vmax.f32 %v711, 0.0
      %v780 = vmax.f32 %v712, 0.0
      %v781 = vmax.f32 %v713, 0.0
      %v782 = vmax.f32 %v714, 0.0
      %v783 = vmax.f32 %v715, 0.0
      %v784 = vmax.f32 %v716, 0.0
      %v785 = vmax.f32 %v717, 0.0
      %v786 = vmax.f32 %v718, 0.0
      %v787 = vmax.f32 %v719, 0.0
      %v788 = vmax.f32 %v720, 0.0
      %v789 = vmax.f32 %v721, 0.0
      %v790 = vmax.f32 %v722, 0.0
      %v791 = vmax.f32 %v723, 0.0
      %v792 = vmax.f32 %v724, 0.0
      %v793 = vmax.f32 %v725, 0.0
      %v794 = vmax.f32 %v726, 0.0
      %v795 = vmax.f32 %v727, 0.0
      %v796 = vmax.f32 %v728, 0.0
      %v797 = vmax.f32 %v729, 0.0
      %v798 = vmax.f32 %v730, 0.0
      %v799 = vmax.f32 %v731, 0.0
      %v800 = vmax.f32 %v732, 0.0
      %v801 = vmax.f32 %v733, 0.0
      %v802 = vmax.f32 %v734, 0.0
      %v803 = vmax.f32 %v735, 0.0
      %v804 = vmax.f32 %v736, 0.0
      %v805 = vmax.f32 %v737, 0.0
      %v806 = vmax.f32 %v738, 0.0
      %v807 = vmax.f32 %v739, 0.0
      %v808 = vmax.f32 %v740, 0.0
      %v809 = vmax.f32 %v741, 0.0
      %v810 = vmax.f32 %v742, 0.0
      %v811 = vmax.f32 %v743, 0.0
      %v812 = vmax.f32 %v744, 0.0
      %v813 = vmax.f32 %v745, 0.0
      %v814 = vmax.f32 %v746, 0.0
      %v815 = vmax.f32 %v747, 0.0
      %v816 = vmax.f32 %v748, 0.0
      %v817 = vmax.f32 %v749, 0.0
      %v818 = vmax.f32 %v750, 0.0
      %v819 = vmax.f32 %v751, 0.0
      %v820 = vmax.f32 %v752, 0.0
      %v821 = vld [vmem:[%s3] sm:$0xff]
      %v822 = vld [vmem:[%s3 + $0x8] sm:$0xff]
      %v823 = vld [vmem:[%s3 + $0x10] sm:$0x1]
      %v824 = vld [vmem:[%s3 + $0x18] sm:$0x1]
      %v825 = vmul.f32 %v753, %v821
      %v826 = vmul.f32 %v754, %v822
      %v827 = vmul.f32 %v755, %v823
      %v828 = vmul.f32 %v756, %v824
      %v829 = vmul.f32 %v757, %v821
      %v830 = vmul.f32 %v758, %v822
      %v831 = vmul.f32 %v759, %v823
      %v832 = vmul.f32 %v760, %v824
      %v833 = vmul.f32 %v761, %v821
      %v834 = vmul.f32 %v762, %v822
      %v835 = vmul.f32 %v763, %v823
      %v836 = vmul.f32 %v764, %v824
      %v837 = vmul.f32 %v765, %v821
      %v838 = vmul.f32 %v766, %v822
      %v839 = vmul.f32 %v767, %v823
      %v840 = vmul.f32 %v768, %v824
      %v841 = vmul.f32 %v769, %v821
      %v842 = vmul.f32 %v770, %v822
      %v843 = vmul.f32 %v771, %v823
      %v844 = vmul.f32 %v772, %v824
      %v845 = vmul.f32 %v773, %v821
      %v846 = vmul.f32 %v774, %v822
      %v847 = vmul.f32 %v775, %v823
      %v848 = vmul.f32 %v776, %v824
      %v849 = vmul.f32 %v777, %v821
      %v850 = vmul.f32 %v778, %v822
      %v851 = vmul.f32 %v779, %v823
      %v852 = vmul.f32 %v780, %v824
      %v853 = vmul.f32 %v781, %v821
      %v854 = vmul.f32 %v782, %v822
      %v855 = vmul.f32 %v783, %v823
      %v856 = vmul.f32 %v784, %v824
      %v857 = vmul.f32 %v785, %v821
      %v858 = vmul.f32 %v786, %v822
      %v859 = vmul.f32 %v787, %v823
      %v860 = vmul.f32 %v788, %v824
      %v861 = vmul.f32 %v789, %v821
      %v862 = vmul.f32 %v790, %v822
      %v863 = vmul.f32 %v791, %v823
      %v864 = vmul.f32 %v792, %v824
      %v865 = vmul.f32 %v793, %v821
      %v866 = vmul.f32 %v794, %v822
      %v867 = vmul.f32 %v795, %v823
      %v868 = vmul.f32 %v796, %v824
      %v869 = vmul.f32 %v797, %v821
      %v870 = vmul.f32 %v798, %v822
      %v871 = vmul.f32 %v799, %v823
      %v872 = vmul.f32 %v800, %v824
      %v873 = vmul.f32 %v801, %v821
      %v874 = vmul.f32 %v802, %v822
      %v875 = vmul.f32 %v803, %v823
      %v876 = vmul.f32 %v804, %v824
      %v877 = vmul.f32 %v805, %v821
      %v878 = vmul.f32 %v806, %v822
      %v879 = vmul.f32 %v807, %v823
      %v880 = vmul.f32 %v808, %v824
      %v881 = vmul.f32 %v809, %v821
      %v882 = vmul.f32 %v810, %v822
      %v883 = vmul.f32 %v811, %v823
      %v884 = vmul.f32 %v812, %v824
      %v885 = vmul.f32 %v813, %v821
      %v886 = vmul.f32 %v814, %v822
      %v887 = vmul.f32 %v815, %v823
      %v888 = vmul.f32 %v816, %v824
      %v889 = vmul.f32 %v817, %v821
      %v890 = vmul.f32 %v818, %v822
      %v891 = vmul.f32 %v819, %v823
      %v892 = vmul.f32 %v820, %v824
      %v893 = vld [vmem:[%s458] sm:$0xff]
      %v894 = vld [vmem:[%s458 + $0x8] sm:$0x1]
      %v895 = vld [vmem:[%s458 + $0x10] sm:$0xff]
      %v896 = vld [vmem:[%s458 + $0x18] sm:$0x1]
      %v897 = vld [vmem:[%s458 + $0x20] sm:$0xff]
      %v898 = vld [vmem:[%s458 + $0x28] sm:$0x1]
      %v899 = vld [vmem:[%s458 + $0x30] sm:$0xff]
      %v900 = vld [vmem:[%s458 + $0x38] sm:$0x1]
      %v901 = vld [vmem:[%s458 + $0x40] sm:$0xff]
      %v902 = vld [vmem:[%s458 + $0x48] sm:$0x1]
      %v903 = vld [vmem:[%s458 + $0x50] sm:$0xff]
      %v904 = vld [vmem:[%s458 + $0x58] sm:$0x1]
      %v905 = vld [vmem:[%s458 + $0x60] sm:$0xff]
      %v906 = vld [vmem:[%s458 + $0x68] sm:$0x1]
      %v907 = vld [vmem:[%s458 + $0x70] sm:$0xff]
      %v908 = vld [vmem:[%s458 + $0x78] sm:$0x1]
      %v909 = vld [vmem:[%s458 + $0x80] sm:$0xff]
      %v910 = vld [vmem:[%s458 + $0x88] sm:$0x1]
      %v911 = vld [vmem:[%s458 + $0x90] sm:$0xff]
      %v912 = vld [vmem:[%s458 + $0x98] sm:$0x1]
      %v913 = vld [vmem:[%s458 + $0xa0] sm:$0xff]
      %v914 = vld [vmem:[%s458 + $0xa8] sm:$0x1]
      %v915 = vld [vmem:[%s458 + $0xb0] sm:$0xff]
      %v916 = vld [vmem:[%s458 + $0xb8] sm:$0x1]
      %v917 = vld [vmem:[%s458 + $0xc0] sm:$0xff]
      %v918 = vld [vmem:[%s458 + $0xc8] sm:$0x1]
      %v919 = vld [vmem:[%s458 + $0xd0] sm:$0xff]
      %v920 = vld [vmem:[%s458 + $0xd8] sm:$0x1]
      %v921 = vld [vmem:[%s458 + $0xe0] sm:$0xff]
      %v922 = vld [vmem:[%s458 + $0xe8] sm:$0x1]
      %v923 = vld [vmem:[%s458 + $0xf0] sm:$0xff]
      %v924 = vld [vmem:[%s458 + $0xf8] sm:$0x1]
      %v925 = vld [vmem:[%s458 + $0x100] sm:$0xff]
      %v926 = vld [vmem:[%s458 + $0x108] sm:$0x1]
      %928 = vset.pattern.permute.xlu0 0
      %929 = vperm.xlu0 %928, %v893
      %v930 = vpop.permute.xlu0 %929
      %933 = vset.pattern.permute.xlu0 0
      %934 = vperm.xlu0 %933, %v894
      %v935 = vpop.permute.xlu0 %934
      %938 = vset.pattern.permute.xlu0 0
      %939 = vperm.xlu0 %938, %v895
      %v940 = vpop.permute.xlu0 %939
      %943 = vset.pattern.permute.xlu0 0
      %944 = vperm.xlu0 %943, %v896
      %v945 = vpop.permute.xlu0 %944
      %948 = vset.pattern.permute.xlu0 0
      %949 = vperm.xlu0 %948, %v897
      %v950 = vpop.permute.xlu0 %949
      %953 = vset.pattern.permute.xlu0 0
      %954 = vperm.xlu0 %953, %v898
      %v955 = vpop.permute.xlu0 %954
      %958 = vset.pattern.permute.xlu0 0
      %959 = vperm.xlu0 %958, %v899
      %v960 = vpop.permute.xlu0 %959
      %963 = vset.pattern.permute.xlu0 0
      %964 = vperm.xlu0 %963, %v900
      %v965 = vpop.permute.xlu0 %964
      %968 = vset.pattern.permute.xlu0 0
      %969 = vperm.xlu0 %968, %v901
      %v970 = vpop.permute.xlu0 %969
      %973 = vset.pattern.permute.xlu0 0
      %974 = vperm.xlu0 %973, %v902
      %v975 = vpop.permute.xlu0 %974
      %978 = vset.pattern.permute.xlu0 0
      %979 = vperm.xlu0 %978, %v903
      %v980 = vpop.permute.xlu0 %979
      %983 = vset.pattern.permute.xlu0 0
      %984 = vperm.xlu0 %983, %v904
      %v985 = vpop.permute.xlu0 %984
      %988 = vset.pattern.permute.xlu0 0
      %989 = vperm.xlu0 %988, %v905
      %v990 = vpop.permute.xlu0 %989
      %993 = vset.pattern.permute.xlu0 0
      %994 = vperm.xlu0 %993, %v906
      %v995 = vpop.permute.xlu0 %994
      %998 = vset.pattern.permute.xlu0 0
      %999 = vperm.xlu0 %998, %v907
      %v1000 = vpop.permute.xlu0 %999
      %1003 = vset.pattern.permute.xlu0 0
      %1004 = vperm.xlu0 %1003, %v908
      %v1005 = vpop.permute.xlu0 %1004
      %1008 = vset.pattern.permute.xlu0 0
      %1009 = vperm.xlu0 %1008, %v909
      %v1010 = vpop.permute.xlu0 %1009
      %1013 = vset.pattern.permute.xlu0 0
      %1014 = vperm.xlu0 %1013, %v910
      %v1015 = vpop.permute.xlu0 %1014
      %1018 = vset.pattern.permute.xlu0 0
      %1019 = vperm.xlu0 %1018, %v911
      %v1020 = vpop.permute.xlu0 %1019
      %1023 = vset.pattern.permute.xlu0 0
      %1024 = vperm.xlu0 %1023, %v912
      %v1025 = vpop.permute.xlu0 %1024
      %1028 = vset.pattern.permute.xlu0 0
      %1029 = vperm.xlu0 %1028, %v913
      %v1030 = vpop.permute.xlu0 %1029
      %1033 = vset.pattern.permute.xlu0 0
      %1034 = vperm.xlu0 %1033, %v914
      %v1035 = vpop.permute.xlu0 %1034
      %1038 = vset.pattern.permute.xlu0 0
      %1039 = vperm.xlu0 %1038, %v915
      %v1040 = vpop.permute.xlu0 %1039
      %1043 = vset.pattern.permute.xlu0 0
      %1044 = vperm.xlu0 %1043, %v916
      %v1045 = vpop.permute.xlu0 %1044
      %1048 = vset.pattern.permute.xlu0 0
      %1049 = vperm.xlu0 %1048, %v917
      %v1050 = vpop.permute.xlu0 %1049
      %1053 = vset.pattern.permute.xlu0 0
      %1054 = vperm.xlu0 %1053, %v918
      %v1055 = vpop.permute.xlu0 %1054
      %1058 = vset.pattern.permute.xlu0 0
      %1059 = vperm.xlu0 %1058, %v919
      %v1060 = vpop.permute.xlu0 %1059
      %1063 = vset.pattern.permute.xlu0 0
      %1064 = vperm.xlu0 %1063, %v920
      %v1065 = vpop.permute.xlu0 %1064
      %1068 = vset.pattern.permute.xlu0 0
      %1069 = vperm.xlu0 %1068, %v921
      %v1070 = vpop.permute.xlu0 %1069
      %1073 = vset.pattern.permute.xlu0 0
      %1074 = vperm.xlu0 %1073, %v922
      %v1075 = vpop.permute.xlu0 %1074
      %1078 = vset.pattern.permute.xlu0 0
      %1079 = vperm.xlu0 %1078, %v923
      %v1080 = vpop.permute.xlu0 %1079
      %1083 = vset.pattern.permute.xlu0 0
      %1084 = vperm.xlu0 %1083, %v924
      %v1085 = vpop.permute.xlu0 %1084
      %1088 = vset.pattern.permute.xlu0 0
      %1089 = vperm.xlu0 %1088, %v925
      %v1090 = vpop.permute.xlu0 %1089
      %1093 = vset.pattern.permute.xlu0 0
      %1094 = vperm.xlu0 %1093, %v926
      %v1095 = vpop.permute.xlu0 %1094
      %v1097 = vmul.f32 %v825, %v930
      %v1098 = vmul.f32 %v826, %v930
      %v1099 = vmul.f32 %v827, %v935
      %v1100 = vmul.f32 %v828, %v935
      %v1101 = vmul.f32 %v829, %v940
      %v1102 = vmul.f32 %v830, %v940
      %v1103 = vmul.f32 %v831, %v945
      %v1104 = vmul.f32 %v832, %v945
      %v1105 = vmul.f32 %v833, %v950
      %v1106 = vmul.f32 %v834, %v950
      %v1107 = vmul.f32 %v835, %v955
      %v1108 = vmul.f32 %v836, %v955
      %v1109 = vmul.f32 %v837, %v960
      %v1110 = vmul.f32 %v838, %v960
      %v1111 = vmul.f32 %v839, %v965
      %v1112 = vmul.f32 %v840, %v965
      %v1113 = vmul.f32 %v841, %v970
      %v1114 = vmul.f32 %v842, %v970
      %v1115 = vmul.f32 %v843, %v975
      %v1116 = vmul.f32 %v844, %v975
      %v1117 = vmul.f32 %v845, %v980
      %v1118 = vmul.f32 %v846, %v980
      %v1119 = vmul.f32 %v847, %v985
      %v1120 = vmul.f32 %v848, %v985
      %v1121 = vmul.f32 %v849, %v990
      %v1122 = vmul.f32 %v850, %v990
      %v1123 = vmul.f32 %v851, %v995
      %v1124 = vmul.f32 %v852, %v995
      %v1125 = vmul.f32 %v853, %v1000
      %v1126 = vmul.f32 %v854, %v1000
      %v1127 = vmul.f32 %v855, %v1005
      %v1128 = vmul.f32 %v856, %v1005
      %v1129 = vmul.f32 %v857, %v1010
      %v1130 = vmul.f32 %v858, %v1010
      %v1131 = vmul.f32 %v859, %v1015
      %v1132 = vmul.f32 %v860, %v1015
      %v1133 = vmul.f32 %v861, %v1020
      %v1134 = vmul.f32 %v862, %v1020
      %v1135 = vmul.f32 %v863, %v1025
      %v1136 = vmul.f32 %v864, %v1025
      %v1137 = vmul.f32 %v865, %v1030
      %v1138 = vmul.f32 %v866, %v1030
      %v1139 = vmul.f32 %v867, %v1035
      %v1140 = vmul.f32 %v868, %v1035
      %v1141 = vmul.f32 %v869, %v1040
      %v1142 = vmul.f32 %v870, %v1040
      %v1143 = vmul.f32 %v871, %v1045
      %v1144 = vmul.f32 %v872, %v1045
      %v1145 = vmul.f32 %v873, %v1050
      %v1146 = vmul.f32 %v874, %v1050
      %v1147 = vmul.f32 %v875, %v1055
      %v1148 = vmul.f32 %v876, %v1055
      %v1149 = vmul.f32 %v877, %v1060
      %v1150 = vmul.f32 %v878, %v1060
      %v1151 = vmul.f32 %v879, %v1065
      %v1152 = vmul.f32 %v880, %v1065
      %v1153 = vmul.f32 %v881, %v1070
      %v1154 = vmul.f32 %v882, %v1070
      %v1155 = vmul.f32 %v883, %v1075
      %v1156 = vmul.f32 %v884, %v1075
      %v1157 = vmul.f32 %v885, %v1080
      %v1158 = vmul.f32 %v886, %v1080
      %v1159 = vmul.f32 %v887, %v1085
      %v1160 = vmul.f32 %v888, %v1085
      %v1161 = vmul.f32 %v889, %v1090
      %v1162 = vmul.f32 %v890, %v1090
      %v1163 = vmul.f32 %v891, %v1095
      %v1164 = vmul.f32 %v892, %v1095
      %v1165 = vpack.c.bf16 %v1099, %v1097
      %v1166 = vpack.c.bf16 %v1100, %v1098
      %v1167 = vpack.c.bf16 %v1103, %v1101
      %v1168 = vpack.c.bf16 %v1104, %v1102
      %v1169 = vpack.c.bf16 %v1107, %v1105
      %v1170 = vpack.c.bf16 %v1108, %v1106
      %v1171 = vpack.c.bf16 %v1111, %v1109
      %v1172 = vpack.c.bf16 %v1112, %v1110
      %v1173 = vpack.c.bf16 %v1115, %v1113
      %v1174 = vpack.c.bf16 %v1116, %v1114
      %v1175 = vpack.c.bf16 %v1119, %v1117
      %v1176 = vpack.c.bf16 %v1120, %v1118
      %v1177 = vpack.c.bf16 %v1123, %v1121
      %v1178 = vpack.c.bf16 %v1124, %v1122
      %v1179 = vpack.c.bf16 %v1127, %v1125
      %v1180 = vpack.c.bf16 %v1128, %v1126
      %v1181 = vpack.c.bf16 %v1131, %v1129
      %v1182 = vpack.c.bf16 %v1132, %v1130
      %v1183 = vpack.c.bf16 %v1135, %v1133
      %v1184 = vpack.c.bf16 %v1136, %v1134
      %v1185 = vpack.c.bf16 %v1139, %v1137
      %v1186 = vpack.c.bf16 %v1140, %v1138
      %v1187 = vpack.c.bf16 %v1143, %v1141
      %v1188 = vpack.c.bf16 %v1144, %v1142
      %v1189 = vpack.c.bf16 %v1147, %v1145
      %v1190 = vpack.c.bf16 %v1148, %v1146
      %v1191 = vpack.c.bf16 %v1151, %v1149
      %v1192 = vpack.c.bf16 %v1152, %v1150
      %v1193 = vpack.c.bf16 %v1155, %v1153
      %v1194 = vpack.c.bf16 %v1156, %v1154
      %v1195 = vpack.c.bf16 %v1159, %v1157
      %v1196 = vpack.c.bf16 %v1160, %v1158
      %v1197 = vpack.c.bf16 %v1163, %v1161
      %v1198 = vpack.c.bf16 %v1164, %v1162
      %v1200 = vshrl.u32 %v1165, 16
      %v1202 = vshll.u32 %v1165, 16
      %v1204 = vrot.slane %v1202, 1
      %v1205 = vor.u32 %v1200, %v1204
      %v1207 = vshrl.u32 %v1169, 16
      %v1209 = vshll.u32 %v1169, 16
      %v1211 = vrot.slane %v1209, 1
      %v1212 = vor.u32 %v1207, %v1211
      %v1214 = vshrl.u32 %v1173, 16
      %v1216 = vshll.u32 %v1173, 16
      %v1218 = vrot.slane %v1216, 1
      %v1219 = vor.u32 %v1214, %v1218
      %v1221 = vshrl.u32 %v1177, 16
      %v1223 = vshll.u32 %v1177, 16
      %v1225 = vrot.slane %v1223, 1
      %v1226 = vor.u32 %v1221, %v1225
      %v1228 = vshrl.u32 %v1181, 16
      %v1230 = vshll.u32 %v1181, 16
      %v1232 = vrot.slane %v1230, 1
      %v1233 = vor.u32 %v1228, %v1232
      %v1235 = vshrl.u32 %v1185, 16
      %v1237 = vshll.u32 %v1185, 16
      %v1239 = vrot.slane %v1237, 1
      %v1240 = vor.u32 %v1235, %v1239
      %v1242 = vshrl.u32 %v1189, 16
      %v1244 = vshll.u32 %v1189, 16
      %v1246 = vrot.slane %v1244, 1
      %v1247 = vor.u32 %v1242, %v1246
      %v1249 = vshrl.u32 %v1193, 16
      %v1251 = vshll.u32 %v1193, 16
      %v1253 = vrot.slane %v1251, 1
      %v1254 = vor.u32 %v1249, %v1253
      %v1256 = vshrl.u32 %v1167, 16
      %v1258 = vshll.u32 %v1167, 16
      %v1260 = vrot.slane %v1258, 1
      %v1261 = vor.u32 %v1256, %v1260
      %v1263 = vshrl.u32 %v1171, 16
      %v1265 = vshll.u32 %v1171, 16
      %v1267 = vrot.slane %v1265, 1
      %v1268 = vor.u32 %v1263, %v1267
      %v1270 = vshrl.u32 %v1175, 16
      %v1272 = vshll.u32 %v1175, 16
      %v1274 = vrot.slane %v1272, 1
      %v1275 = vor.u32 %v1270, %v1274
      %v1277 = vshrl.u32 %v1179, 16
      %v1279 = vshll.u32 %v1179, 16
      %v1281 = vrot.slane %v1279, 1
      %v1282 = vor.u32 %v1277, %v1281
      %v1284 = vshrl.u32 %v1183, 16
      %v1286 = vshll.u32 %v1183, 16
      %v1288 = vrot.slane %v1286, 1
      %v1289 = vor.u32 %v1284, %v1288
      %v1291 = vshrl.u32 %v1187, 16
      %v1293 = vshll.u32 %v1187, 16
      %v1295 = vrot.slane %v1293, 1
      %v1296 = vor.u32 %v1291, %v1295
      %v1298 = vshrl.u32 %v1191, 16
      %v1300 = vshll.u32 %v1191, 16
      %v1302 = vrot.slane %v1300, 1
      %v1303 = vor.u32 %v1298, %v1302
      %v1305 = vshrl.u32 %v1195, 16
      %v1307 = vshll.u32 %v1195, 16
      %v1309 = vrot.slane %v1307, 1
      %v1310 = vor.u32 %v1305, %v1309
      %v1312 = vshrl.u32 %v1197, 16
      %v1314 = vshll.u32 %v1197, 16
      %v1316 = vrot.slane %v1314, 1
      %v1317 = vor.u32 %v1312, %v1316
      %v1352 = vunpack.c.l.b16 %v1165
      %v1353 = vunpack.c.l.b16 %v1166
      %v1354 = vunpack.c.l.b16 %v1205
      %v1355 = vunpack.c.l.b16 %v1167
      %v1356 = vunpack.c.l.b16 %v1168
      %v1357 = vunpack.c.l.b16 %v1261
      %v1358 = vunpack.c.l.b16 %v1169
      %v1359 = vunpack.c.l.b16 %v1170
      %v1360 = vunpack.c.l.b16 %v1212
      %v1361 = vunpack.c.l.b16 %v1171
      %v1362 = vunpack.c.l.b16 %v1172
      %v1363 = vunpack.c.l.b16 %v1268
      %v1364 = vunpack.c.l.b16 %v1173
      %v1365 = vunpack.c.l.b16 %v1174
      %v1366 = vunpack.c.l.b16 %v1219
      %v1367 = vunpack.c.l.b16 %v1175
      %v1368 = vunpack.c.l.b16 %v1176
      %v1369 = vunpack.c.l.b16 %v1275
      %v1370 = vunpack.c.l.b16 %v1177
      %v1371 = vunpack.c.l.b16 %v1178
      %v1372 = vunpack.c.l.b16 %v1226
      %v1373 = vunpack.c.l.b16 %v1179
      %v1374 = vunpack.c.l.b16 %v1180
      %v1375 = vunpack.c.l.b16 %v1282
      %v1376 = vunpack.c.l.b16 %v1181
      %v1377 = vunpack.c.l.b16 %v1182
      %v1378 = vunpack.c.l.b16 %v1233
      %v1379 = vunpack.c.l.b16 %v1183
      %v1380 = vunpack.c.l.b16 %v1184
      %v1381 = vunpack.c.l.b16 %v1289
      %v1382 = vunpack.c.l.b16 %v1185
      %v1383 = vunpack.c.l.b16 %v1186
      %v1384 = vunpack.c.l.b16 %v1240
      %v1385 = vunpack.c.l.b16 %v1187
      %v1386 = vunpack.c.l.b16 %v1188
      %v1387 = vunpack.c.l.b16 %v1296
      %v1388 = vunpack.c.l.b16 %v1189
      %v1389 = vunpack.c.l.b16 %v1190
      %v1390 = vunpack.c.l.b16 %v1247
      %v1391 = vunpack.c.l.b16 %v1191
      %v1392 = vunpack.c.l.b16 %v1192
      %v1393 = vunpack.c.l.b16 %v1303
      %v1394 = vunpack.c.l.b16 %v1193
      %v1395 = vunpack.c.l.b16 %v1194
      %v1396 = vunpack.c.l.b16 %v1254
      %v1397 = vunpack.c.l.b16 %v1195
      %v1398 = vunpack.c.l.b16 %v1196
      %v1399 = vunpack.c.l.b16 %v1310
      %v1400 = vunpack.c.l.b16 %v1197
      %v1401 = vunpack.c.l.b16 %v1198
      %v1402 = vunpack.c.l.b16 %v1317
      %v1403 = vld [vmem:[%s6] sm:$0xf]
      %v1404 = vld [vmem:[%s6 + $0x4] sm:$0xf]
      %v1405 = vld [vmem:[%s6 + $0x8] sm:$0xf]
      %v1406 = vld [vmem:[%s6 + $0xc] sm:$0xf]
      %v1407 = vld [vmem:[%s6 + $0x10] sm:$0xf]
      %v1408 = vld [vmem:[%s6 + $0x14] sm:$0xf]
      %v1409 = vld [vmem:[%s6 + $0x18] sm:$0xf]
      %v1410 = vld [vmem:[%s6 + $0x1c] sm:$0xf]
      %v1411 = vld [vmem:[%s6 + $0x20] sm:$0xf]
      %v1412 = vld [vmem:[%s6 + $0x24] sm:$0xf]
      %v1413 = vld [vmem:[%s6 + $0x28] sm:$0xf]
      %v1414 = vld [vmem:[%s6 + $0x2c] sm:$0xf]
      %v1415 = vld [vmem:[%s6 + $0x30] sm:$0xf]
      %v1416 = vld [vmem:[%s6 + $0x34] sm:$0xf]
      %v1417 = vld [vmem:[%s6 + $0x38] sm:$0xf]
      %v1418 = vld [vmem:[%s6 + $0x3c] sm:$0xf]
      %v1419 = vld [vmem:[%s6 + $0x40] sm:$0xf]
      %v1420 = vld [vmem:[%s6 + $0x44] sm:$0xf]
      %v1421 = vld [vmem:[%s6 + $0x48] sm:$0xf]
      %v1422 = vld [vmem:[%s6 + $0x4c] sm:$0xf]
      %v1423 = vld [vmem:[%s6 + $0x50] sm:$0xf]
      %v1424 = vld [vmem:[%s6 + $0x54] sm:$0xf]
      %v1425 = vld [vmem:[%s6 + $0x58] sm:$0xf]
      %v1426 = vld [vmem:[%s6 + $0x5c] sm:$0xf]
      %v1427 = vld [vmem:[%s6 + $0x60] sm:$0xf]
      %v1428 = vld [vmem:[%s6 + $0x64] sm:$0xf]
      %v1429 = vld [vmem:[%s6 + $0x68] sm:$0xf]
      %v1430 = vld [vmem:[%s6 + $0x6c] sm:$0xf]
      %v1431 = vld [vmem:[%s6 + $0x70] sm:$0xf]
      %v1432 = vld [vmem:[%s6 + $0x74] sm:$0xf]
      %v1433 = vld [vmem:[%s6 + $0x78] sm:$0xf]
      %v1434 = vld [vmem:[%s6 + $0x7c] sm:$0xf]
      %v1435 = vld [vmem:[%s6 + $0x80] sm:$0xf]
      %v1436 = vld [vmem:[%s6 + $0x84] sm:$0xf]
      %v1437 = vld [vmem:[%s6 + $0x88] sm:$0xf]
      %v1438 = vld [vmem:[%s6 + $0x8c] sm:$0xf]
      %v1439 = vld [vmem:[%s6 + $0x90] sm:$0xf]
      %v1440 = vld [vmem:[%s6 + $0x94] sm:$0xf]
      %v1441 = vld [vmem:[%s6 + $0x98] sm:$0xf]
      %v1442 = vld [vmem:[%s6 + $0x9c] sm:$0xf]
      %v1443 = vld [vmem:[%s6 + $0xa0] sm:$0xf]
      %v1444 = vld [vmem:[%s6 + $0xa4] sm:$0xf]
      %v1445 = vld [vmem:[%s6 + $0xa8] sm:$0xf]
      %v1446 = vld [vmem:[%s6 + $0xac] sm:$0xf]
      %v1447 = vld [vmem:[%s6 + $0xb0] sm:$0xf]
      %v1448 = vld [vmem:[%s6 + $0xb4] sm:$0xf]
      %v1449 = vld [vmem:[%s6 + $0xb8] sm:$0xf]
      %v1450 = vld [vmem:[%s6 + $0xbc] sm:$0xf]
      %v1451 = vld [vmem:[%s6 + $0xc0] sm:$0xf]
      %v1452 = vld [vmem:[%s6 + $0xc4] sm:$0xf]
      %v1453 = vld [vmem:[%s6 + $0xc8] sm:$0xf]
      %v1454 = vld [vmem:[%s6 + $0xcc] sm:$0xf]
      %v1455 = vld [vmem:[%s6 + $0xd0] sm:$0xf]
      %v1456 = vld [vmem:[%s6 + $0xd4] sm:$0xf]
      %v1457 = vld [vmem:[%s6 + $0xd8] sm:$0xf]
      %v1458 = vld [vmem:[%s6 + $0xdc] sm:$0xf]
      %v1459 = vld [vmem:[%s6 + $0xe0] sm:$0xf]
      %v1460 = vld [vmem:[%s6 + $0xe4] sm:$0xf]
      %v1461 = vld [vmem:[%s6 + $0xe8] sm:$0xf]
      %v1462 = vld [vmem:[%s6 + $0xec] sm:$0xf]
      %v1463 = vld [vmem:[%s6 + $0xf0] sm:$0xf]
      %v1464 = vld [vmem:[%s6 + $0xf4] sm:$0xf]
      %v1465 = vld [vmem:[%s6 + $0xf8] sm:$0xf]
      %v1466 = vld [vmem:[%s6 + $0xfc] sm:$0xf]
      %v1467 = vld [vmem:[%s6 + $0x100] sm:$0xf]
      %v1468 = vld [vmem:[%s6 + $0x104] sm:$0xf]
      %v1469 = vld [vmem:[%s6 + $0x108] sm:$0xf]
      %v1470 = vld [vmem:[%s6 + $0x10c] sm:$0xf]
      %v1471 = vld [vmem:[%s6 + $0x110] sm:$0xf]
      %v1472 = vld [vmem:[%s6 + $0x114] sm:$0xf]
      %v1473 = vld [vmem:[%s6 + $0x118] sm:$0xf]
      %v1474 = vld [vmem:[%s6 + $0x11c] sm:$0xf]
      %v1475 = vld [vmem:[%s6 + $0x120] sm:$0xf]
      %v1476 = vld [vmem:[%s6 + $0x124] sm:$0xf]
      %v1477 = vld [vmem:[%s6 + $0x128] sm:$0xf]
      %v1478 = vld [vmem:[%s6 + $0x12c] sm:$0xf]
      %v1479 = vld [vmem:[%s6 + $0x130] sm:$0xf]
      %v1480 = vld [vmem:[%s6 + $0x134] sm:$0xf]
      %v1481 = vld [vmem:[%s6 + $0x138] sm:$0xf]
      %v1482 = vld [vmem:[%s6 + $0x13c] sm:$0xf]
      %v1483 = vld [vmem:[%s6 + $0x140] sm:$0xf]
      %v1484 = vld [vmem:[%s6 + $0x144] sm:$0xf]
      %v1485 = vld [vmem:[%s6 + $0x148] sm:$0xf]
      %v1486 = vld [vmem:[%s6 + $0x14c] sm:$0xf]
      %v1487 = vld [vmem:[%s6 + $0x150] sm:$0xf]
      %v1488 = vld [vmem:[%s6 + $0x154] sm:$0xf]
      %v1489 = vld [vmem:[%s6 + $0x158] sm:$0xf]
      %v1490 = vld [vmem:[%s6 + $0x15c] sm:$0xf]
      %v1491 = vld [vmem:[%s6 + $0x160] sm:$0xf]
      %v1492 = vld [vmem:[%s6 + $0x164] sm:$0xf]
      %v1493 = vld [vmem:[%s6 + $0x168] sm:$0xf]
      %v1494 = vld [vmem:[%s6 + $0x16c] sm:$0xf]
      %v1495 = vld [vmem:[%s6 + $0x170] sm:$0xf]
      %v1496 = vld [vmem:[%s6 + $0x174] sm:$0xf]
      %v1497 = vld [vmem:[%s6 + $0x178] sm:$0xf]
      %v1498 = vld [vmem:[%s6 + $0x17c] sm:$0xf]
      %v1499 = vld [vmem:[%s6 + $0x180] sm:$0xf]
      %v1500 = vld [vmem:[%s6 + $0x184] sm:$0xf]
      %v1501 = vld [vmem:[%s6 + $0x188] sm:$0xf]
      %v1502 = vld [vmem:[%s6 + $0x18c] sm:$0xf]
      %v1503 = vld [vmem:[%s6 + $0x190] sm:$0xf]
      %v1504 = vld [vmem:[%s6 + $0x194] sm:$0xf]
      %v1505 = vld [vmem:[%s6 + $0x198] sm:$0xf]
      %v1506 = vld [vmem:[%s6 + $0x19c] sm:$0xf]
      %v1507 = vld [vmem:[%s6 + $0x1a0] sm:$0xf]
      %v1508 = vld [vmem:[%s6 + $0x1a4] sm:$0xf]
      %v1509 = vld [vmem:[%s6 + $0x1a8] sm:$0xf]
      %v1510 = vld [vmem:[%s6 + $0x1ac] sm:$0xf]
      %v1511 = vld [vmem:[%s6 + $0x1b0] sm:$0xf]
      %v1512 = vld [vmem:[%s6 + $0x1b4] sm:$0xf]
      %v1513 = vld [vmem:[%s6 + $0x1b8] sm:$0xf]
      %v1514 = vld [vmem:[%s6 + $0x1bc] sm:$0xf]
      %v1515 = vld [vmem:[%s6 + $0x1c0] sm:$0xf]
      %v1516 = vld [vmem:[%s6 + $0x1c4] sm:$0xf]
      %v1517 = vld [vmem:[%s6 + $0x1c8] sm:$0xf]
      %v1518 = vld [vmem:[%s6 + $0x1cc] sm:$0xf]
      %v1519 = vld [vmem:[%s6 + $0x1d0] sm:$0xf]
      %v1520 = vld [vmem:[%s6 + $0x1d4] sm:$0xf]
      %v1521 = vld [vmem:[%s6 + $0x1d8] sm:$0xf]
      %v1522 = vld [vmem:[%s6 + $0x1dc] sm:$0xf]
      %v1523 = vld [vmem:[%s6 + $0x1e0] sm:$0xf]
      %v1524 = vld [vmem:[%s6 + $0x1e4] sm:$0xf]
      %v1525 = vld [vmem:[%s6 + $0x1e8] sm:$0xf]
      %v1526 = vld [vmem:[%s6 + $0x1ec] sm:$0xf]
      %v1527 = vld [vmem:[%s6 + $0x1f0] sm:$0xf]
      %v1528 = vld [vmem:[%s6 + $0x1f4] sm:$0xf]
      %v1529 = vld [vmem:[%s6 + $0x1f8] sm:$0xf]
      %v1530 = vld [vmem:[%s6 + $0x1fc] sm:$0xf]
      %v1531 = vld [vmem:[%s6 + $0x200] sm:$0xf]
      %v1532 = vld [vmem:[%s6 + $0x204] sm:$0xf]
      %v1533 = vld [vmem:[%s6 + $0x208] sm:$0xf]
      %v1534 = vld [vmem:[%s6 + $0x20c] sm:$0xf]
      %v1535 = vld [vmem:[%s6 + $0x210] sm:$0xf]
      %v1536 = vld [vmem:[%s6 + $0x214] sm:$0xf]
      %v1537 = vld [vmem:[%s6 + $0x218] sm:$0xf]
      %v1538 = vld [vmem:[%s6 + $0x21c] sm:$0xf]
      %v1539 = vld [vmem:[%s6 + $0x220] sm:$0xf]
      %v1540 = vld [vmem:[%s6 + $0x224] sm:$0xf]
      %v1541 = vld [vmem:[%s6 + $0x228] sm:$0xf]
      %v1542 = vld [vmem:[%s6 + $0x22c] sm:$0xf]
      %v1543 = vld [vmem:[%s6 + $0x230] sm:$0xf]
      %v1544 = vld [vmem:[%s6 + $0x234] sm:$0xf]
      %v1545 = vld [vmem:[%s6 + $0x238] sm:$0xf]
      %v1546 = vld [vmem:[%s6 + $0x23c] sm:$0xf]
      %v1547 = vpack.c.b16 %v1358, %v1352
      %v1548 = vpack.c.b16 %v1359, %v1353
      %v1549 = vpack.c.b16 %v1360, %v1354
      %v1550 = vpack.c.b16 %v1361, %v1355
      %v1551 = vpack.c.b16 %v1362, %v1356
      %v1552 = vpack.c.b16 %v1363, %v1357
      %v1553 = vpack.c.b16 %v1364, %v1358
      %v1554 = vpack.c.b16 %v1365, %v1359
      %v1555 = vpack.c.b16 %v1366, %v1360
      %v1556 = vpack.c.b16 %v1370, %v1364
      %v1557 = vpack.c.b16 %v1371, %v1365
      %v1558 = vpack.c.b16 %v1372, %v1366
      %v1559 = vpack.c.b16 %v1373, %v1367
      %v1560 = vpack.c.b16 %v1374, %v1368
      %v1561 = vpack.c.b16 %v1375, %v1369
      %v1562 = vpack.c.b16 %v1376, %v1370
      %v1563 = vpack.c.b16 %v1377, %v1371
      %v1564 = vpack.c.b16 %v1378, %v1372
      %v1565 = vpack.c.b16 %v1382, %v1376
      %v1566 = vpack.c.b16 %v1383, %v1377
      %v1567 = vpack.c.b16 %v1384, %v1378
      %v1568 = vpack.c.b16 %v1385, %v1379
      %v1569 = vpack.c.b16 %v1386, %v1380
      %v1570 = vpack.c.b16 %v1387, %v1381
      %v1571 = vpack.c.b16 %v1388, %v1382
      %v1572 = vpack.c.b16 %v1389, %v1383
      %v1573 = vpack.c.b16 %v1390, %v1384
      %v1574 = vpack.c.b16 %v1394, %v1388
      %v1575 = vpack.c.b16 %v1395, %v1389
      %v1576 = vpack.c.b16 %v1396, %v1390
      %v1577 = vpack.c.b16 %v1397, %v1391
      %v1578 = vpack.c.b16 %v1398, %v1392
      %v1579 = vpack.c.b16 %v1399, %v1393
      %v1580 = vpack.c.b16 %v1400, %v1394
      %v1581 = vpack.c.b16 %v1401, %v1395
      %v1582 = vpack.c.b16 %v1402, %v1396
      %v1763 = vunpack.c.l.b16 %v1403
      %v1764 = vunpack.c.l.b16 %v1404
      %v1765 = vunpack.c.l.b16 %v1405
      %v1766 = vunpack.c.l.b16 %v1406
      %v1767 = vunpack.c.l.b16 %v1407
      %v1768 = vunpack.c.l.b16 %v1408
      %v1769 = vunpack.c.l.b16 %v1409
      %v1770 = vunpack.c.l.b16 %v1410
      %v1771 = vunpack.c.l.b16 %v1411
      %v1772 = vunpack.c.l.b16 %v1412
      %v1773 = vunpack.c.l.b16 %v1413
      %v1774 = vunpack.c.l.b16 %v1414
      %v1775 = vunpack.c.l.b16 %v1415
      %v1776 = vunpack.c.l.b16 %v1416
      %v1777 = vunpack.c.l.b16 %v1417
      %v1778 = vunpack.c.l.b16 %v1418
      %v1779 = vunpack.c.l.b16 %v1419
      %v1780 = vunpack.c.l.b16 %v1420
      %v1781 = vunpack.c.l.b16 %v1421
      %v1782 = vunpack.c.l.b16 %v1422
      %v1783 = vunpack.c.l.b16 %v1423
      %v1784 = vunpack.c.l.b16 %v1424
      %v1785 = vunpack.c.l.b16 %v1425
      %v1786 = vunpack.c.l.b16 %v1426
      %v1787 = vunpack.c.l.b16 %v1427
      %v1788 = vunpack.c.l.b16 %v1428
      %v1789 = vunpack.c.l.b16 %v1429
      %v1790 = vunpack.c.l.b16 %v1430
      %v1791 = vunpack.c.l.b16 %v1431
      %v1792 = vunpack.c.l.b16 %v1432
      %v1793 = vunpack.c.l.b16 %v1433
      %v1794 = vunpack.c.l.b16 %v1434
      %v1795 = vunpack.c.l.b16 %v1435
      %v1796 = vunpack.c.l.b16 %v1436
      %v1797 = vunpack.c.l.b16 %v1437
      %v1798 = vunpack.c.l.b16 %v1438
      %v1799 = vunpack.c.l.b16 %v1439
      %v1800 = vunpack.c.l.b16 %v1440
      %v1801 = vunpack.c.l.b16 %v1441
      %v1802 = vunpack.c.l.b16 %v1442
      %v1803 = vunpack.c.l.b16 %v1443
      %v1804 = vunpack.c.l.b16 %v1444
      %v1805 = vunpack.c.l.b16 %v1445
      %v1806 = vunpack.c.l.b16 %v1446
      %v1807 = vunpack.c.l.b16 %v1447
      %v1808 = vunpack.c.l.b16 %v1448
      %v1809 = vunpack.c.l.b16 %v1449
      %v1810 = vunpack.c.l.b16 %v1450
      %v1811 = vunpack.c.l.b16 %v1451
      %v1812 = vunpack.c.l.b16 %v1452
      %v1813 = vunpack.c.l.b16 %v1453
      %v1814 = vunpack.c.l.b16 %v1454
      %v1815 = vunpack.c.l.b16 %v1455
      %v1816 = vunpack.c.l.b16 %v1456
      %v1817 = vunpack.c.l.b16 %v1457
      %v1818 = vunpack.c.l.b16 %v1458
      %v1819 = vunpack.c.l.b16 %v1459
      %v1820 = vunpack.c.l.b16 %v1460
      %v1821 = vunpack.c.l.b16 %v1461
      %v1822 = vunpack.c.l.b16 %v1462
      %v1823 = vunpack.c.l.b16 %v1463
      %v1824 = vunpack.c.l.b16 %v1464
      %v1825 = vunpack.c.l.b16 %v1465
      %v1826 = vunpack.c.l.b16 %v1466
      %v1827 = vunpack.c.l.b16 %v1467
      %v1828 = vunpack.c.l.b16 %v1468
      %v1829 = vunpack.c.l.b16 %v1469
      %v1830 = vunpack.c.l.b16 %v1470
      %v1831 = vunpack.c.l.b16 %v1471
      %v1832 = vunpack.c.l.b16 %v1472
      %v1833 = vunpack.c.l.b16 %v1473
      %v1834 = vunpack.c.l.b16 %v1474
      %v1835 = vunpack.c.l.b16 %v1475
      %v1836 = vunpack.c.l.b16 %v1476
      %v1837 = vunpack.c.l.b16 %v1477
      %v1838 = vunpack.c.l.b16 %v1478
      %v1839 = vunpack.c.l.b16 %v1479
      %v1840 = vunpack.c.l.b16 %v1480
      %v1841 = vunpack.c.l.b16 %v1481
      %v1842 = vunpack.c.l.b16 %v1482
      %v1843 = vunpack.c.l.b16 %v1483
      %v1844 = vunpack.c.l.b16 %v1484
      %v1845 = vunpack.c.l.b16 %v1485
      %v1846 = vunpack.c.l.b16 %v1486
      %v1847 = vunpack.c.l.b16 %v1487
      %v1848 = vunpack.c.l.b16 %v1488
      %v1849 = vunpack.c.l.b16 %v1489
      %v1850 = vunpack.c.l.b16 %v1490
      %v1851 = vunpack.c.l.b16 %v1491
      %v1852 = vunpack.c.l.b16 %v1492
      %v1853 = vunpack.c.l.b16 %v1493
      %v1854 = vunpack.c.l.b16 %v1494
      %v1855 = vunpack.c.l.b16 %v1495
      %v1856 = vunpack.c.l.b16 %v1496
      %v1857 = vunpack.c.l.b16 %v1497
      %v1858 = vunpack.c.l.b16 %v1498
      %v1859 = vunpack.c.l.b16 %v1499
      %v1860 = vunpack.c.l.b16 %v1500
      %v1861 = vunpack.c.l.b16 %v1501
      %v1862 = vunpack.c.l.b16 %v1502
      %v1863 = vunpack.c.l.b16 %v1503
      %v1864 = vunpack.c.l.b16 %v1504
      %v1865 = vunpack.c.l.b16 %v1505
      %v1866 = vunpack.c.l.b16 %v1506
      %v1867 = vunpack.c.l.b16 %v1507
      %v1868 = vunpack.c.l.b16 %v1508
      %v1869 = vunpack.c.l.b16 %v1509
      %v1870 = vunpack.c.l.b16 %v1510
      %v1871 = vunpack.c.l.b16 %v1511
      %v1872 = vunpack.c.l.b16 %v1512
      %v1873 = vunpack.c.l.b16 %v1513
      %v1874 = vunpack.c.l.b16 %v1514
      %v1875 = vunpack.c.l.b16 %v1515
      %v1876 = vunpack.c.l.b16 %v1516
      %v1877 = vunpack.c.l.b16 %v1517
      %v1878 = vunpack.c.l.b16 %v1518
      %v1879 = vunpack.c.l.b16 %v1519
      %v1880 = vunpack.c.l.b16 %v1520
      %v1881 = vunpack.c.l.b16 %v1521
      %v1882 = vunpack.c.l.b16 %v1522
      %v1883 = vunpack.c.l.b16 %v1523
      %v1884 = vunpack.c.l.b16 %v1524
      %v1885 = vunpack.c.l.b16 %v1525
      %v1886 = vunpack.c.l.b16 %v1526
      %v1887 = vunpack.c.l.b16 %v1527
      %v1888 = vunpack.c.l.b16 %v1528
      %v1889 = vunpack.c.l.b16 %v1529
      %v1890 = vunpack.c.l.b16 %v1530
      %v1891 = vunpack.c.l.b16 %v1531
      %v1892 = vunpack.c.l.b16 %v1532
      %v1893 = vunpack.c.l.b16 %v1533
      %v1894 = vunpack.c.l.b16 %v1534
      %v1895 = vunpack.c.l.b16 %v1535
      %v1896 = vunpack.c.l.b16 %v1536
      %v1897 = vunpack.c.l.b16 %v1537
      %v1898 = vunpack.c.l.b16 %v1538
      %v1899 = vunpack.c.l.b16 %v1539
      %v1900 = vunpack.c.l.b16 %v1540
      %v1901 = vunpack.c.l.b16 %v1541
      %v1902 = vunpack.c.l.b16 %v1542
      %v1903 = vunpack.c.l.b16 %v1543
      %v1904 = vunpack.c.l.b16 %v1544
      %v1905 = vunpack.c.l.b16 %v1545
      %v1906 = vunpack.c.l.b16 %v1546
      %v1907 = vpack.c.b16 %v1764, %v1763
      %v1908 = vpack.c.b16 %v1766, %v1765
      %v1909 = vpack.c.b16 %v1768, %v1767
      %v1910 = vpack.c.b16 %v1770, %v1769
      %v1911 = vpack.c.b16 %v1772, %v1771
      %v1912 = vpack.c.b16 %v1774, %v1773
      %v1913 = vpack.c.b16 %v1776, %v1775
      %v1914 = vpack.c.b16 %v1778, %v1777
      %v1915 = vpack.c.b16 %v1780, %v1779
      %v1916 = vpack.c.b16 %v1782, %v1781
      %v1917 = vpack.c.b16 %v1784, %v1783
      %v1918 = vpack.c.b16 %v1786, %v1785
      %v1919 = vpack.c.b16 %v1788, %v1787
      %v1920 = vpack.c.b16 %v1790, %v1789
      %v1921 = vpack.c.b16 %v1792, %v1791
      %v1922 = vpack.c.b16 %v1794, %v1793
      %v1923 = vpack.c.b16 %v1796, %v1795
      %v1924 = vpack.c.b16 %v1798, %v1797
      %v1925 = vpack.c.b16 %v1800, %v1799
      %v1926 = vpack.c.b16 %v1802, %v1801
      %v1927 = vpack.c.b16 %v1804, %v1803
      %v1928 = vpack.c.b16 %v1806, %v1805
      %v1929 = vpack.c.b16 %v1808, %v1807
      %v1930 = vpack.c.b16 %v1810, %v1809
      %v1931 = vpack.c.b16 %v1812, %v1811
      %v1932 = vpack.c.b16 %v1814, %v1813
      %v1933 = vpack.c.b16 %v1816, %v1815
      %v1934 = vpack.c.b16 %v1818, %v1817
      %v1935 = vpack.c.b16 %v1820, %v1819
      %v1936 = vpack.c.b16 %v1822, %v1821
      %v1937 = vpack.c.b16 %v1824, %v1823
      %v1938 = vpack.c.b16 %v1826, %v1825
      %v1939 = vpack.c.b16 %v1828, %v1827
      %v1940 = vpack.c.b16 %v1830, %v1829
      %v1941 = vpack.c.b16 %v1832, %v1831
      %v1942 = vpack.c.b16 %v1834, %v1833
      %v1943 = vpack.c.b16 %v1836, %v1835
      %v1944 = vpack.c.b16 %v1838, %v1837
      %v1945 = vpack.c.b16 %v1840, %v1839
      %v1946 = vpack.c.b16 %v1842, %v1841
      %v1947 = vpack.c.b16 %v1844, %v1843
      %v1948 = vpack.c.b16 %v1846, %v1845
      %v1949 = vpack.c.b16 %v1848, %v1847
      %v1950 = vpack.c.b16 %v1850, %v1849
      %v1951 = vpack.c.b16 %v1852, %v1851
      %v1952 = vpack.c.b16 %v1854, %v1853
      %v1953 = vpack.c.b16 %v1856, %v1855
      %v1954 = vpack.c.b16 %v1858, %v1857
      %v1955 = vpack.c.b16 %v1860, %v1859
      %v1956 = vpack.c.b16 %v1862, %v1861
      %v1957 = vpack.c.b16 %v1864, %v1863
      %v1958 = vpack.c.b16 %v1866, %v1865
      %v1959 = vpack.c.b16 %v1868, %v1867
      %v1960 = vpack.c.b16 %v1870, %v1869
      %v1961 = vpack.c.b16 %v1872, %v1871
      %v1962 = vpack.c.b16 %v1874, %v1873
      %v1963 = vpack.c.b16 %v1876, %v1875
      %v1964 = vpack.c.b16 %v1878, %v1877
      %v1965 = vpack.c.b16 %v1880, %v1879
      %v1966 = vpack.c.b16 %v1882, %v1881
      %v1967 = vpack.c.b16 %v1884, %v1883
      %v1968 = vpack.c.b16 %v1886, %v1885
      %v1969 = vpack.c.b16 %v1888, %v1887
      %v1970 = vpack.c.b16 %v1890, %v1889
      %v1971 = vpack.c.b16 %v1892, %v1891
      %v1972 = vpack.c.b16 %v1894, %v1893
      %v1973 = vpack.c.b16 %v1896, %v1895
      %v1974 = vpack.c.b16 %v1898, %v1897
      %v1975 = vpack.c.b16 %v1900, %v1899
      %v1976 = vpack.c.b16 %v1902, %v1901
      %v1977 = vpack.c.b16 %v1904, %v1903
      %v1978 = vpack.c.b16 %v1906, %v1905
      %2051 = vmatprep.subr.bf16.mxu0 0
      %2052 = vmatpush1.bf16.msra.mxu0 %v1914
      %2053 = vmatprep.subr.bf16.mxu0 0
      %2054 = vmatpush1.bf16.msra.mxu0 %v1913
      %2055 = vmatprep.subr.bf16.mxu0 0
      %2056 = vmatpush1.bf16.msra.mxu0 %v1912
      %2057 = vmatprep.subr.bf16.mxu0 0
      %2058 = vmatpush1.bf16.msra.mxu0 %v1911
      %2059 = vmatprep.subr.bf16.mxu0 0
      %2060 = vmatpush1.bf16.msra.mxu0 %v1910
      %2061 = vmatprep.subr.bf16.mxu0 0
      %2062 = vmatpush1.bf16.msra.mxu0 %v1909
      %2063 = vmatprep.subr.bf16.mxu0 0
      %2064 = vmatpush1.bf16.msra.mxu0 %v1908
      %2065 = vmatprep.subr.bf16.mxu0 0
      %2066 = vmatpush1.bf16.msra.mxu0 %v1907
      %2067 = vmatprep.subr.bf16.mxu0 0
      %2068 = vmatpush2.bf16.msra.mxu0 %v1922
      %2069 = vmatprep.subr.bf16.mxu0 0
      %2070 = vmatpush2.bf16.msra.mxu0 %v1921
      %2071 = vmatprep.subr.bf16.mxu0 0
      %2072 = vmatpush2.bf16.msra.mxu0 %v1920
      %2073 = vmatprep.subr.bf16.mxu0 0
      %2074 = vmatpush2.bf16.msra.mxu0 %v1919
      %2075 = vmatprep.subr.bf16.mxu0 0
      %2076 = vmatpush2.bf16.msra.mxu0 %v1918
      %2077 = vmatprep.subr.bf16.mxu0 0
      %2078 = vmatpush2.bf16.msra.mxu0 %v1917
      %2079 = vmatprep.subr.bf16.mxu0 0
      %2080 = vmatpush2.bf16.msra.mxu0 %v1916
      %2081 = vmatprep.subr.bf16.mxu0 0
      %2082 = vmatpush2.bf16.msra.mxu0 %v1915
      %2083 = vmatprep.mubr.bf16.mxu0 %v1548
      %2084 = vmatmul.mubr.bf16.gmra.mxu0 %v1547
      %v2085 = vpop.f32.mrf.mxu0
      %v2086 = vadd.f32 0.0, %v2085
      %v2087 = vpop.f32.mrf.mxu0
      %v2088 = vpop.f32.mrf.mxu0
      %v2089 = vadd.f32 0.0, %v2088
      %v2090 = vpop.f32.mrf.mxu0
      %2091 = vmatprep.mubr.bf16.mxu0 %v1557
      %2092 = vmatmul.mubr.bf16.gmra.mxu0 %v1556
      %v2093 = vpop.f32.mrf.mxu0
      %v2094 = vadd.f32 0.0, %v2093
      %v2095 = vpop.f32.mrf.mxu0
      %v2096 = vpop.f32.mrf.mxu0
      %v2097 = vadd.f32 0.0, %v2096
      %v2098 = vpop.f32.mrf.mxu0
      %2099 = vmatprep.mubr.bf16.mxu0 %v1566
      %2100 = vmatmul.mubr.bf16.gmra.mxu0 %v1565
      %v2101 = vpop.f32.mrf.mxu0
      %v2102 = vadd.f32 0.0, %v2101
      %v2103 = vpop.f32.mrf.mxu0
      %v2104 = vpop.f32.mrf.mxu0
      %v2105 = vadd.f32 0.0, %v2104
      %v2106 = vpop.f32.mrf.mxu0
      %2107 = vmatprep.mubr.bf16.mxu0 %v1575
      %2108 = vmatmul.mubr.bf16.gmra.mxu0 %v1574
      %v2109 = vpop.f32.mrf.mxu0
      %v2110 = vadd.f32 0.0, %v2109
      %v2111 = vpop.f32.mrf.mxu0
      %v2112 = vpop.f32.mrf.mxu0
      %v2113 = vadd.f32 0.0, %v2112
      %v2114 = vpop.f32.mrf.mxu0
      %2115 = vdwg.mxu0
      %2116 = vmatprep.subr.bf16.mxu0 0
      %2117 = vmatpush1.bf16.msra.mxu0 %v1930
      %2118 = vmatprep.subr.bf16.mxu0 0
      %2119 = vmatpush1.bf16.msra.mxu0 %v1929
      %2120 = vmatprep.subr.bf16.mxu0 0
      %2121 = vmatpush1.bf16.msra.mxu0 %v1928
      %2122 = vmatprep.subr.bf16.mxu0 0
      %2123 = vmatpush1.bf16.msra.mxu0 %v1927
      %2124 = vmatprep.subr.bf16.mxu0 0
      %2125 = vmatpush1.bf16.msra.mxu0 %v1926
      %2126 = vmatprep.subr.bf16.mxu0 0
      %2127 = vmatpush1.bf16.msra.mxu0 %v1925
      %2128 = vmatprep.subr.bf16.mxu0 0
      %2129 = vmatpush1.bf16.msra.mxu0 %v1924
      %2130 = vmatprep.subr.bf16.mxu0 0
      %2131 = vmatpush1.bf16.msra.mxu0 %v1923
      %2132 = vmatprep.subr.bf16.mxu0 0
      %2133 = vmatpush2.bf16.msra.mxu0 %v1938
      %2134 = vmatprep.subr.bf16.mxu0 0
      %2135 = vmatpush2.bf16.msra.mxu0 %v1937
      %2136 = vmatprep.subr.bf16.mxu0 0
      %2137 = vmatpush2.bf16.msra.mxu0 %v1936
      %2138 = vmatprep.subr.bf16.mxu0 0
      %2139 = vmatpush2.bf16.msra.mxu0 %v1935
      %2140 = vmatprep.subr.bf16.mxu0 0
      %2141 = vmatpush2.bf16.msra.mxu0 %v1934
      %2142 = vmatprep.subr.bf16.mxu0 0
      %2143 = vmatpush2.bf16.msra.mxu0 %v1933
      %2144 = vmatprep.subr.bf16.mxu0 0
      %2145 = vmatpush2.bf16.msra.mxu0 %v1932
      %2146 = vmatprep.subr.bf16.mxu0 0
      %2147 = vmatpush2.bf16.msra.mxu0 %v1931
      %2148 = vmatprep.mubr.bf16.mxu0 %v1550
      %2149 = vmatmul.mubr.bf16.gmra.mxu0 %v1549
      %v2150 = vpop.f32.mrf.mxu0
      %v2151 = vadd.f32 %v2086, %v2150
      %v2152 = vpop.f32.mrf.mxu0
      %v2153 = vpop.f32.mrf.mxu0
      %v2154 = vadd.f32 %v2089, %v2153
      %v2155 = vpop.f32.mrf.mxu0
      %2156 = vmatprep.mubr.bf16.mxu0 %v1559
      %2157 = vmatmul.mubr.bf16.gmra.mxu0 %v1558
      %v2158 = vpop.f32.mrf.mxu0
      %v2159 = vadd.f32 %v2094, %v2158
      %v2160 = vpop.f32.mrf.mxu0
      %v2161 = vpop.f32.mrf.mxu0
      %v2162 = vadd.f32 %v2097, %v2161
      %v2163 = vpop.f32.mrf.mxu0
      %2164 = vmatprep.mubr.bf16.mxu0 %v1568
      %2165 = vmatmul.mubr.bf16.gmra.mxu0 %v1567
      %v2166 = vpop.f32.mrf.mxu0
      %v2167 = vadd.f32 %v2102, %v2166
      %v2168 = vpop.f32.mrf.mxu0
      %v2169 = vpop.f32.mrf.mxu0
      %v2170 = vadd.f32 %v2105, %v2169
      %v2171 = vpop.f32.mrf.mxu0
      %2172 = vmatprep.mubr.bf16.mxu0 %v1577
      %2173 = vmatmul.mubr.bf16.gmra.mxu0 %v1576
      %v2174 = vpop.f32.mrf.mxu0
      %v2175 = vadd.f32 %v2110, %v2174
      %v2176 = vpop.f32.mrf.mxu0
      %v2177 = vpop.f32.mrf.mxu0
      %v2178 = vadd.f32 %v2113, %v2177
      %v2179 = vpop.f32.mrf.mxu0
      %2180 = vdwg.mxu0
      %2181 = vmatprep.subr.bf16.mxu0 0
      %2182 = vmatpush1.bf16.msra.mxu0 %v1946
      %2183 = vmatprep.subr.bf16.mxu0 0
      %2184 = vmatpush1.bf16.msra.mxu0 %v1945
      %2185 = vmatprep.subr.bf16.mxu0 0
      %2186 = vmatpush1.bf16.msra.mxu0 %v1944
      %2187 = vmatprep.subr.bf16.mxu0 0
      %2188 = vmatpush1.bf16.msra.mxu0 %v1943
      %2189 = vmatprep.subr.bf16.mxu0 0
      %2190 = vmatpush1.bf16.msra.mxu0 %v1942
      %2191 = vmatprep.subr.bf16.mxu0 0
      %2192 = vmatpush1.bf16.msra.mxu0 %v1941
      %2193 = vmatprep.subr.bf16.mxu0 0
      %2194 = vmatpush1.bf16.msra.mxu0 %v1940
      %2195 = vmatprep.subr.bf16.mxu0 0
      %2196 = vmatpush1.bf16.msra.mxu0 %v1939
      %2197 = vmatprep.subr.bf16.mxu0 0
      %2198 = vmatpush2.bf16.msra.mxu0 %v1954
      %2199 = vmatprep.subr.bf16.mxu0 0
      %2200 = vmatpush2.bf16.msra.mxu0 %v1953
      %2201 = vmatprep.subr.bf16.mxu0 0
      %2202 = vmatpush2.bf16.msra.mxu0 %v1952
      %2203 = vmatprep.subr.bf16.mxu0 0
      %2204 = vmatpush2.bf16.msra.mxu0 %v1951
      %2205 = vmatprep.subr.bf16.mxu0 0
      %2206 = vmatpush2.bf16.msra.mxu0 %v1950
      %2207 = vmatprep.subr.bf16.mxu0 0
      %2208 = vmatpush2.bf16.msra.mxu0 %v1949
      %2209 = vmatprep.subr.bf16.mxu0 0
      %2210 = vmatpush2.bf16.msra.mxu0 %v1948
      %2211 = vmatprep.subr.bf16.mxu0 0
      %2212 = vmatpush2.bf16.msra.mxu0 %v1947
      %2213 = vmatprep.mubr.bf16.mxu0 %v1552
      %2214 = vmatmul.mubr.bf16.gmra.mxu0 %v1551
      %v2215 = vpop.f32.mrf.mxu0
      %v2216 = vadd.f32 %v2151, %v2215
      %v2217 = vpop.f32.mrf.mxu0
      %v2218 = vpop.f32.mrf.mxu0
      %v2219 = vadd.f32 %v2154, %v2218
      %v2220 = vpop.f32.mrf.mxu0
      %2221 = vmatprep.mubr.bf16.mxu0 %v1561
      %2222 = vmatmul.mubr.bf16.gmra.mxu0 %v1560
      %v2223 = vpop.f32.mrf.mxu0
      %v2224 = vadd.f32 %v2159, %v2223
      %v2225 = vpop.f32.mrf.mxu0
      %v2226 = vpop.f32.mrf.mxu0
      %v2227 = vadd.f32 %v2162, %v2226
      %v2228 = vpop.f32.mrf.mxu0
      %2229 = vmatprep.mubr.bf16.mxu0 %v1570
      %2230 = vmatmul.mubr.bf16.gmra.mxu0 %v1569
      %v2231 = vpop.f32.mrf.mxu0
      %v2232 = vadd.f32 %v2167, %v2231
      %v2233 = vpop.f32.mrf.mxu0
      %v2234 = vpop.f32.mrf.mxu0
      %v2235 = vadd.f32 %v2170, %v2234
      %v2236 = vpop.f32.mrf.mxu0
      %2237 = vmatprep.mubr.bf16.mxu0 %v1579
      %2238 = vmatmul.mubr.bf16.gmra.mxu0 %v1578
      %v2239 = vpop.f32.mrf.mxu0
      %v2240 = vadd.f32 %v2175, %v2239
      %v2241 = vpop.f32.mrf.mxu0
      %v2242 = vpop.f32.mrf.mxu0
      %v2243 = vadd.f32 %v2178, %v2242
      %v2244 = vpop.f32.mrf.mxu0
      %2245 = vdwg.mxu0
      %2246 = vmatprep.subr.bf16.mxu0 0
      %2247 = vmatpush1.bf16.msra.mxu0 %v1962
      %2248 = vmatprep.subr.bf16.mxu0 0
      %2249 = vmatpush1.bf16.msra.mxu0 %v1961
      %2250 = vmatprep.subr.bf16.mxu0 0
      %2251 = vmatpush1.bf16.msra.mxu0 %v1960
      %2252 = vmatprep.subr.bf16.mxu0 0
      %2253 = vmatpush1.bf16.msra.mxu0 %v1959
      %2254 = vmatprep.subr.bf16.mxu0 0
      %2255 = vmatpush1.bf16.msra.mxu0 %v1958
      %2256 = vmatprep.subr.bf16.mxu0 0
      %2257 = vmatpush1.bf16.msra.mxu0 %v1957
      %2258 = vmatprep.subr.bf16.mxu0 0
      %2259 = vmatpush1.bf16.msra.mxu0 %v1956
      %2260 = vmatprep.subr.bf16.mxu0 0
      %2261 = vmatpush1.bf16.msra.mxu0 %v1955
      %2262 = vmatprep.subr.bf16.mxu0 0
      %2263 = vmatpush2.bf16.msra.mxu0 %v1970
      %2264 = vmatprep.subr.bf16.mxu0 0
      %2265 = vmatpush2.bf16.msra.mxu0 %v1969
      %2266 = vmatprep.subr.bf16.mxu0 0
      %2267 = vmatpush2.bf16.msra.mxu0 %v1968
      %2268 = vmatprep.subr.bf16.mxu0 0
      %2269 = vmatpush2.bf16.msra.mxu0 %v1967
      %2270 = vmatprep.subr.bf16.mxu0 0
      %2271 = vmatpush2.bf16.msra.mxu0 %v1966
      %2272 = vmatprep.subr.bf16.mxu0 0
      %2273 = vmatpush2.bf16.msra.mxu0 %v1965
      %2274 = vmatprep.subr.bf16.mxu0 0
      %2275 = vmatpush2.bf16.msra.mxu0 %v1964
      %2276 = vmatprep.subr.bf16.mxu0 0
      %2277 = vmatpush2.bf16.msra.mxu0 %v1963
      %2278 = vmatprep.mubr.bf16.mxu0 %v1554
      %2279 = vmatmul.mubr.bf16.gmra.mxu0 %v1553
      %v2280 = vpop.f32.mrf.mxu0
      %v2281 = vadd.f32 %v2216, %v2280
      %v2282 = vpop.f32.mrf.mxu0
      %v2283 = vpop.f32.mrf.mxu0
      %v2284 = vadd.f32 %v2219, %v2283
      %v2285 = vpop.f32.mrf.mxu0
      %2286 = vmatprep.mubr.bf16.mxu0 %v1563
      %2287 = vmatmul.mubr.bf16.gmra.mxu0 %v1562
      %v2288 = vpop.f32.mrf.mxu0
      %v2289 = vadd.f32 %v2224, %v2288
      %v2290 = vpop.f32.mrf.mxu0
      %v2291 = vpop.f32.mrf.mxu0
      %v2292 = vadd.f32 %v2227, %v2291
      %v2293 = vpop.f32.mrf.mxu0
      %2294 = vmatprep.mubr.bf16.mxu0 %v1572
      %2295 = vmatmul.mubr.bf16.gmra.mxu0 %v1571
      %v2296 = vpop.f32.mrf.mxu0
      %v2297 = vadd.f32 %v2232, %v2296
      %v2298 = vpop.f32.mrf.mxu0
      %v2299 = vpop.f32.mrf.mxu0
      %v2300 = vadd.f32 %v2235, %v2299
      %v2301 = vpop.f32.mrf.mxu0
      %2302 = vmatprep.mubr.bf16.mxu0 %v1581
      %2303 = vmatmul.mubr.bf16.gmra.mxu0 %v1580
      %v2304 = vpop.f32.mrf.mxu0
      %v2305 = vadd.f32 %v2240, %v2304
      %v2306 = vpop.f32.mrf.mxu0
      %v2307 = vpop.f32.mrf.mxu0
      %v2308 = vadd.f32 %v2243, %v2307
      %v2309 = vpop.f32.mrf.mxu0
      %2310 = vdwg.mxu0
      %2311 = vmatprep.subr.bf16.mxu0 0
      %2312 = vmatpush1.bf16.msra.mxu0 %v1978
      %2313 = vmatprep.subr.bf16.mxu0 0
      %2314 = vmatpush1.bf16.msra.mxu0 %v1977
      %2315 = vmatprep.subr.bf16.mxu0 0
      %2316 = vmatpush1.bf16.msra.mxu0 %v1976
      %2317 = vmatprep.subr.bf16.mxu0 0
      %2318 = vmatpush1.bf16.msra.mxu0 %v1975
      %2319 = vmatprep.subr.bf16.mxu0 0
      %2320 = vmatpush1.bf16.msra.mxu0 %v1974
      %2321 = vmatprep.subr.bf16.mxu0 0
      %2322 = vmatpush1.bf16.msra.mxu0 %v1973
      %2323 = vmatprep.subr.bf16.mxu0 0
      %2324 = vmatpush1.bf16.msra.mxu0 %v1972
      %2325 = vmatprep.subr.bf16.mxu0 0
      %2326 = vmatpush1.bf16.msra.mxu0 %v1971
      %2327 = vmatprep.subr.bf16.mxu0 0
      %2328 = vmatpush2.bf16.msra.mxu0 0
      %2329 = vmatprep.subr.bf16.mxu0 0
      %2330 = vmatpush2.bf16.msra.mxu0 0
      %2331 = vmatprep.subr.bf16.mxu0 0
      %2332 = vmatpush2.bf16.msra.mxu0 0
      %2333 = vmatprep.subr.bf16.mxu0 0
      %2334 = vmatpush2.bf16.msra.mxu0 0
      %2335 = vmatprep.subr.bf16.mxu0 0
      %2336 = vmatpush2.bf16.msra.mxu0 0
      %2337 = vmatprep.subr.bf16.mxu0 0
      %2338 = vmatpush2.bf16.msra.mxu0 0
      %2339 = vmatprep.subr.bf16.mxu0 0
      %2340 = vmatpush2.bf16.msra.mxu0 0
      %2341 = vmatprep.subr.bf16.mxu0 0
      %2342 = vmatpush2.bf16.msra.mxu0 0
      %2343 = vmatprep.mubr.bf16.mxu0 0
      %2344 = vmatmul.mubr.bf16.gmra.mxu0 %v1555
      %v2345 = vpop.f32.mrf.mxu0
      %v2346 = vadd.f32 %v2281, %v2345
      %v2347 = vpop.f32.mrf.mxu0
      %v2348 = vpop.f32.mrf.mxu0
      %v2349 = vadd.f32 %v2284, %v2348
      %v2350 = vpop.f32.mrf.mxu0
      %2351 = vmatprep.mubr.bf16.mxu0 0
      %2352 = vmatmul.mubr.bf16.gmra.mxu0 %v1564
      %v2353 = vpop.f32.mrf.mxu0
      %v2354 = vadd.f32 %v2289, %v2353
      %v2355 = vpop.f32.mrf.mxu0
      %v2356 = vpop.f32.mrf.mxu0
      %v2357 = vadd.f32 %v2292, %v2356
      %v2358 = vpop.f32.mrf.mxu0
      %2359 = vmatprep.mubr.bf16.mxu0 0
      %2360 = vmatmul.mubr.bf16.gmra.mxu0 %v1573
      %v2361 = vpop.f32.mrf.mxu0
      %v2362 = vadd.f32 %v2297, %v2361
      %v2363 = vpop.f32.mrf.mxu0
      %v2364 = vpop.f32.mrf.mxu0
      %v2365 = vadd.f32 %v2300, %v2364
      %v2366 = vpop.f32.mrf.mxu0
      %2367 = vmatprep.mubr.bf16.mxu0 0
      %2368 = vmatmul.mubr.bf16.gmra.mxu0 %v1582
      %v2369 = vpop.f32.mrf.mxu0
      %v2370 = vadd.f32 %v2305, %v2369
      %v2371 = vpop.f32.mrf.mxu0
      %v2372 = vpop.f32.mrf.mxu0
      %v2373 = vadd.f32 %v2308, %v2372
      %v2374 = vpop.f32.mrf.mxu0
      %2375 = vdwg.mxu0
      %2376 = vst [vmem:[%s477] sm:$0xff] %v2346
      %2377 = vst [vmem:[%s477 + $0x8] sm:$0xff] %v2349
      %2378 = vst [vmem:[%s477 + $0x10] sm:$0xff] %v2354
      %2379 = vst [vmem:[%s477 + $0x18] sm:$0xff] %v2357
      %2380 = vst [vmem:[%s477 + $0x20] sm:$0xff] %v2362
      %2381 = vst [vmem:[%s477 + $0x28] sm:$0xff] %v2365
      %2382 = vst [vmem:[%s477 + $0x30] sm:$0xff] %v2370
      %2383 = vst [vmem:[%s477 + $0x38] sm:$0xff] %v2373
      %v2384 = vld [vmem:[%s467] sm:$0xff]
      %v2385 = vld [vmem:[%s467 + $0x8] sm:$0xff]
      %v2386 = vld [vmem:[%s467 + $0x10] sm:$0xff]
      %v2387 = vld [vmem:[%s467 + $0x18] sm:$0xff]
      %v2388 = vld [vmem:[%s467 + $0x20] sm:$0xff]
      %v2389 = vld [vmem:[%s467 + $0x28] sm:$0xff]
      %v2390 = vld [vmem:[%s467 + $0x30] sm:$0xff]
      %v2391 = vld [vmem:[%s467 + $0x38] sm:$0xff]
      %v2392 = vld [vmem:[%s7] sm:$0xff]
      %v2393 = vld [vmem:[%s7 + $0x8] sm:$0x1]
      %vm2394 = vcmask 72704
      %v2396 = vsel %vm2394, %v2384, 0
      %v2399 = vsel %vm2394, %v2385, 0
      %v2402 = vsel %vm2394, %v2386, 0
      %v2405 = vsel %vm2394, %v2387, 0
      %v2408 = vsel %vm2394, %v2388, 0
      %v2411 = vsel %vm2394, %v2389, 0
      %v2414 = vsel %vm2394, %v2390, 0
      %v2417 = vsel %vm2394, %v2391, 0
      %vm2419 = vcmask 1040384
      %v2421 = vsel %vm2419, %v2393, 0
      %2423 = vmatprep.subr.mxu0 0.0
      %2424 = vmatpush1.msra.mxu0 0.0
      %2425 = vmatprep.subr.mxu0 0.0
      %2426 = vmatpush1.msra.mxu0 0.0
      %2427 = vmatprep.subr.mxu0 0.0
      %2428 = vmatpush1.msra.mxu0 0.0
      %2429 = vmatprep.subr.mxu0 0.0
      %2430 = vmatpush1.msra.mxu0 0.0
      %2431 = vmatprep.subr.mxu0 0.0
      %2432 = vmatpush1.msra.mxu0 0.0
      %2433 = vmatprep.subr.mxu0 0.0
      %2434 = vmatpush1.msra.mxu0 0.0
      %2435 = vmatprep.subr.mxu0 0.0
      %2436 = vmatpush1.msra.mxu0 0.0
      %2437 = vmatprep.subr.mxu0 0.0
      %2438 = vmatpush1.msra.mxu0 0.0
      %2439 = vmatprep.subr.mxu0 0.0
      %2440 = vmatpush1.msra.mxu0 0.0
      %2441 = vmatprep.subr.mxu0 0.0
      %2442 = vmatpush1.msra.mxu0 0.0
      %2443 = vmatprep.subr.mxu0 0.0
      %2444 = vmatpush1.msra.mxu0 0.0
      %2445 = vmatprep.subr.mxu0 0.0
      %2446 = vmatpush1.msra.mxu0 0.0
      %2447 = vmatprep.subr.mxu0 0.0
      %2448 = vmatpush1.msra.mxu0 0.0
      %2449 = vmatprep.subr.mxu0 0.0
      %2450 = vmatpush1.msra.mxu0 0.0
      %2451 = vmatprep.subr.mxu0 0.0
      %2452 = vmatpush1.msra.mxu0 %v2421
      %2453 = vmatprep.subr.mxu0 0.0
      %2454 = vmatpush1.msra.mxu0 %v2392
      %2455 = vmatprep.subr.mxu0 0.0
      %2456 = vmatpush2.msra.mxu0 0.0
      %2457 = vmatprep.subr.mxu0 0.0
      %2458 = vmatpush2.msra.mxu0 0.0
      %2459 = vmatprep.subr.mxu0 0.0
      %2460 = vmatpush2.msra.mxu0 0.0
      %2461 = vmatprep.subr.mxu0 0.0
      %2462 = vmatpush2.msra.mxu0 0.0
      %2463 = vmatprep.subr.mxu0 0.0
      %2464 = vmatpush2.msra.mxu0 0.0
      %2465 = vmatprep.subr.mxu0 0.0
      %2466 = vmatpush2.msra.mxu0 0.0
      %2467 = vmatprep.subr.mxu0 0.0
      %2468 = vmatpush2.msra.mxu0 0.0
      %2469 = vmatprep.subr.mxu0 0.0
      %2470 = vmatpush2.msra.mxu0 0.0
      %2471 = vmatprep.subr.mxu0 0.0
      %2472 = vmatpush2.msra.mxu0 0.0
      %2473 = vmatprep.subr.mxu0 0.0
      %2474 = vmatpush2.msra.mxu0 0.0
      %2475 = vmatprep.subr.mxu0 0.0
      %2476 = vmatpush2.msra.mxu0 0.0
      %2477 = vmatprep.subr.mxu0 0.0
      %2478 = vmatpush2.msra.mxu0 0.0
      %2479 = vmatprep.subr.mxu0 0.0
      %2480 = vmatpush2.msra.mxu0 0.0
      %2481 = vmatprep.subr.mxu0 0.0
      %2482 = vmatpush2.msra.mxu0 0.0
      %2483 = vmatprep.subr.mxu0 0.0
      %2484 = vmatpush2.msra.mxu0 0.0
      %2485 = vmatprep.subr.mxu0 0.0
      %2486 = vmatpush2.msra.mxu0 0.0
      %2487 = vmatprep.mubr.f32.mxu0 0.0
      %2488 = vmatmul.mubr.f32.gmra.mxu0 %v2396
      %v2489 = vpop.f32.mrf.mxu0
      %v2490 = vadd.f32 0.0, %v2489
      %v2491 = vpop.f32.mrf.mxu0
      %2492 = vmatprep.mubr.f32.mxu0 0.0
      %2493 = vmatmul.mubr.f32.gmra.mxu0 %v2399
      %v2494 = vpop.f32.mrf.mxu0
      %v2495 = vadd.f32 0.0, %v2494
      %v2496 = vpop.f32.mrf.mxu0
      %2497 = vmatprep.mubr.f32.mxu0 0.0
      %2498 = vmatmul.mubr.f32.gmra.mxu0 %v2402
      %v2499 = vpop.f32.mrf.mxu0
      %v2500 = vadd.f32 0.0, %v2499
      %v2501 = vpop.f32.mrf.mxu0
      %2502 = vmatprep.mubr.f32.mxu0 0.0
      %2503 = vmatmul.mubr.f32.gmra.mxu0 %v2405
      %v2504 = vpop.f32.mrf.mxu0
      %v2505 = vadd.f32 0.0, %v2504
      %v2506 = vpop.f32.mrf.mxu0
      %2507 = vmatprep.mubr.f32.mxu0 0.0
      %2508 = vmatmul.mubr.f32.gmra.mxu0 %v2408
      %v2509 = vpop.f32.mrf.mxu0
      %v2510 = vadd.f32 0.0, %v2509
      %v2511 = vpop.f32.mrf.mxu0
      %2512 = vmatprep.mubr.f32.mxu0 0.0
      %2513 = vmatmul.mubr.f32.gmra.mxu0 %v2411
      %v2514 = vpop.f32.mrf.mxu0
      %v2515 = vadd.f32 0.0, %v2514
      %v2516 = vpop.f32.mrf.mxu0
      %2517 = vmatprep.mubr.f32.mxu0 0.0
      %2518 = vmatmul.mubr.f32.gmra.mxu0 %v2414
      %v2519 = vpop.f32.mrf.mxu0
      %v2520 = vadd.f32 0.0, %v2519
      %v2521 = vpop.f32.mrf.mxu0
      %2522 = vmatprep.mubr.f32.mxu0 0.0
      %2523 = vmatmul.mubr.f32.gmra.mxu0 %v2417
      %v2524 = vpop.f32.mrf.mxu0
      %v2525 = vadd.f32 0.0, %v2524
      %v2526 = vpop.f32.mrf.mxu0
      %2527 = vdwg.mxu0
      %2528 = vst [vmem:[%s487] sm:$0xff] %v2490
      %2529 = vst [vmem:[%s487 + $0x8] sm:$0xff] %v2495
      %2530 = vst [vmem:[%s487 + $0x10] sm:$0xff] %v2500
      %2531 = vst [vmem:[%s487 + $0x18] sm:$0xff] %v2505
      %2532 = vst [vmem:[%s487 + $0x20] sm:$0xff] %v2510
      %2533 = vst [vmem:[%s487 + $0x28] sm:$0xff] %v2515
      %2534 = vst [vmem:[%s487 + $0x30] sm:$0xff] %v2520
      %2535 = vst [vmem:[%s487 + $0x38] sm:$0xff] %v2525
      %s2536 = smul.u32 8, %s26
      %p2537 = scmp.lt.s32.totalorder %s25, 1
      %s2538 = scalar_select %p2537, %s25, 1
      %p2539 = scmp.lt.s32.totalorder %s2536, 7
      %s2540 = scalar_select %p2539, %s2536, 7
      %s2541 = smul.addr %s2538, 8
      %s2542 = sadd.s32 %s2540, %s2541
      %s2543 = smul.addr %s2542, 8
      %s2544 = scalar_lea.vmem %s8, %s2543
      %s2545 = smul.u32 8, %s26
      %p2546 = scmp.lt.s32.totalorder %s25, 1
      %s2547 = scalar_select %p2546, %s25, 1
      %p2548 = scmp.lt.s32.totalorder %s2545, 7
      %s2549 = scalar_select %p2548, %s2545, 7
      %s2550 = smul.addr %s2547, 8
      %s2551 = sadd.s32 %s2549, %s2550
      %s2552 = smul.addr %s2551, 8
      %s2553 = scalar_lea.vmem %s9, %s2552
      // Predicated region
      $region53: #{partial2d_block_forward.3} parent=51 // pred_check
        %p2554 = pneg %p247
      $region54: #{partial2d_block_forward.3} parent=51 // pred_check_branch
        %2556 = sbr.rel (%p2554) target = $region56
      $region55: #{partial2d_block_forward.3} parent=51 // pred_region
        %s2557 = smul.u32 8, %s26
      $region56: #{partial2d_block_forward.3} parent=51 // pred_fallthru
        _
      // Predicated region
      $region57: #{partial2d_block_forward.3} parent=51 // pred_check
        %p2558 = pneg %p275
      $region58: #{partial2d_block_forward.3} parent=51 // pred_check_branch
        %2560 = sbr.rel (%p2558) target = $region60
      $region59: #{partial2d_block_forward.3} parent=51 // pred_region
        %s2561 = smul.u32 8, %s26
      $region60: #{partial2d_block_forward.3} parent=51 // pred_fallthru
        _
    $region52: #{partial2d_block_forward.3} parent=5 // pred_fallthru
      _
    %p2562 = scmp.le.s32.totalorder 2, %s16
    // Predicated region
    $region61: #{partial2d_block_forward.3} parent=5 // pred_check
      %p2563 = pneg %p2562
    $region62: #{partial2d_block_forward.3} parent=5 // pred_check_branch
      %2565 = sbr.rel (%p2563) target = $region64
    $region63: #{partial2d_block_forward.3} parent=5 // pred_region
      %s2566 = ssub.s32 %s16, 2
      // Predicated region
      $region65: #{partial2d_block_forward.3} parent=63 // pred_check
        %p2567 = pneg %p253
      $region66: #{partial2d_block_forward.3} parent=63 // pred_check_branch
        %2569 = sbr.rel (%p2567) target = $region68
      $region67: #{partial2d_block_forward.3} parent=63 // pred_region
        %s2570 = smul.u32 8, %s28
        %p2571 = scmp.lt.s32.totalorder %s27, 1
        %s2572 = scalar_select %p2571, %s27, 1
        %p2573 = scmp.lt.s32.totalorder %s2570, 7
        %s2574 = scalar_select %p2573, %s2570, 7
        %s2575 = smul.addr %s2572, 8
        %s2576 = sadd.s32 %s2574, %s2575
        %s2577 = smul.addr %s2576, 8
        %s2578 = scalar_lea.vmem %s8, %s2577
      $region68: #{partial2d_block_forward.3} parent=63 // pred_fallthru
        _
      // Predicated region
      $region69: #{partial2d_block_forward.3} parent=63 // pred_check
        %p2579 = pneg %p281
      $region70: #{partial2d_block_forward.3} parent=63 // pred_check_branch
        %2581 = sbr.rel (%p2579) target = $region72
      $region71: #{partial2d_block_forward.3} parent=63 // pred_region
        %s2582 = smul.u32 8, %s28
        %p2583 = scmp.lt.s32.totalorder %s27, 1
        %s2584 = scalar_select %p2583, %s27, 1
        %p2585 = scmp.lt.s32.totalorder %s2582, 7
        %s2586 = scalar_select %p2585, %s2582, 7
        %s2587 = smul.addr %s2584, 8
        %s2588 = sadd.s32 %s2586, %s2587
        %s2589 = smul.addr %s2588, 8
        %s2590 = scalar_lea.vmem %s9, %s2589
      $region72: #{partial2d_block_forward.3} parent=63 // pred_fallthru
        _
    $region64: #{partial2d_block_forward.3} parent=5 // pred_fallthru
      _
  $region6: #{partial2d_block_forward.3} parent=0 // loop_footer
    %s20 = sadd.s32 1, %s16
  $region7: #{partial2d_block_forward.3} parent=0 // loop_footer_branch
    %15 = sbr.rel target = $region3
  $region8: #{partial2d_block_forward.3} parent=0 // loop_exit
    _

</llo_original>
